<compile_context>
chip_gen: v5e
topology: v5e:2x2
jax: 0.10.0
libtpu: 0.0.40
codegen_flags: <defaults>
</compile_context>

<pallas_src>
import functools

import jax
import jax.numpy as jnp
from jax.experimental import pallas as pl
from jax.experimental.pallas import tpu as pltpu


# ----------------------------------------------------------------------------
# Small-model config (synthetic, mirrors the shapes implied by the module)
# ----------------------------------------------------------------------------
class Config:
    vocab_size = 64
    hidden_size = 32
    num_heads = 4
    intermediate_size = 64
    num_layers = 2
    max_position = 16
    type_vocab_size = 2
    layer_norm_eps = 1e-12
    num_labels = 64          # == vocab_size: MLM CE uses view(-1, num_labels)
    num_cls_labels = 4       # cls_classifier: Linear(hidden -> 4)


LANE = 128                   # lane-dense padded width for logits / small vectors
VMEM_SPEC = pl.BlockSpec(memory_space=pltpu.MemorySpace.VMEM)


# ----------------------------------------------------------------------------
# In-kernel helpers
# ----------------------------------------------------------------------------
def _gelu(y):
    # TODO(synk): HF BERT uses exact erf-based GELU; tanh approximation kept
    # (single EUP tanh, guaranteed Mosaic lowering).
    return 0.5 * y * (1.0 + jnp.tanh(0.7978845608028654 * (y + 0.044715 * y * y * y)))


def _layernorm(x, gamma, beta, eps):
    mu = jnp.mean(x, axis=-1, keepdims=True)
    var = jnp.mean((x - mu) * (x - mu), axis=-1, keepdims=True)
    return (x - mu) * jax.lax.rsqrt(var + eps) * gamma + beta


# ----------------------------------------------------------------------------
# Single fused forward kernel: emb-LN -> L encoder layers -> MLM head ->
# decoder logits (+ cls logits) -> MLM cross-entropy partial sums.
# ----------------------------------------------------------------------------
def _uhc_forward_kernel(emb_ref, mask_ref, labels_ref,
                        wqkv_ref, wo_ref, w1_ref, w2_ref, lvec_ref,
                        mlm_w_ref, out_w_ref, misc_ref,
                        logits_ref, cls_ref, ce_sum_ref, ce_cnt_ref,
                        *, B, S, H, num_heads, num_layers, inter, vocab, eps):
    Dh = H // num_heads
    scale = 1.0 / (Dh ** 0.5)

    misc = misc_ref[...]                               # (8, LANE) f32 slab
    emb_g, emb_b = misc[0:1, :H], misc[1:2, :H]

    # ---- embedding LayerNorm ----
    x = _layernorm(emb_ref[...], emb_g, emb_b, eps)    # (M=B*S, H) f32
    mask = mask_ref[...]                               # (B, S) additive f32

    # ---- encoder layers (static unroll, weights stacked on layer axis) ----
    for l in range(num_layers):
        wqkv = wqkv_ref[l]                             # (H, 3H) bf16
        wo = wo_ref[l]                                 # (H, H)  bf16
        w1 = w1_ref[l]                                 # (H, I)  bf16
        w2 = w2_ref[l]                                 # (I, H)  bf16
        vec = lvec_ref[l]                              # (8, LANE) f32
        bqkv = vec[0:1, :3 * H]
        bo = vec[1:2, :H]
        ln1g, ln1b = vec[2:3, :H], vec[3:4, :H]
        b1 = vec[4:5, :inter]
        b2 = vec[5:6, :H]
        ln2g, ln2b = vec[6:7, :H], vec[7:8, :H]

        xb = x.astype(jnp.bfloat16)
        # fused QKV projection: one wide MXU dot for all heads
        qkv = jnp.dot(xb, wqkv, preferred_element_type=jnp.float32) + bqkv  # (M, 3H)

        ctx_rows = []
        for b in range(B):                             # static loops: tiny B, nh
            r0 = b * S
            mb = mask[b:b + 1, :]                      # (1, S) key mask
            ctx_heads = []
            for h in range(num_heads):
                c0 = h * Dh
                q = qkv[r0:r0 + S, c0:c0 + Dh].astype(jnp.bfloat16)
                k = qkv[r0:r0 + S, H + c0:H + c0 + Dh].astype(jnp.bfloat16)
                v = qkv[r0:r0 + S, 2 * H + c0:2 * H + c0 + Dh].astype(jnp.bfloat16)
                # q @ k^T without materializing a transpose
                s = jax.lax.dot_general(q, k, (((1,), (1,)), ((), ())),
                                        preferred_element_type=jnp.float32)
                s = s * scale + mb
                s = s - jnp.max(s, axis=-1, keepdims=True)
                p = jnp.exp(s)
                p = p * pl.reciprocal(jnp.sum(p, axis=-1, keepdims=True), approx=True)
                ctx_heads.append(jnp.dot(p.astype(jnp.bfloat16), v,
                                         preferred_element_type=jnp.float32))
            ctx_rows.append(jnp.concatenate(ctx_heads, axis=1))   # (S, H)
        ctx = jnp.concatenate(ctx_rows, axis=0)                   # (M, H)

        # single output projection on the concatenated context
        attn = jnp.dot(ctx.astype(jnp.bfloat16), wo,
                       preferred_element_type=jnp.float32) + bo
        h1 = _layernorm(x + attn, ln1g, ln1b, eps)

        ff = jnp.dot(h1.astype(jnp.bfloat16), w1,
                     preferred_element_type=jnp.float32) + b1
        ff = _gelu(ff)
        ff = jnp.dot(ff.astype(jnp.bfloat16), w2,
                     preferred_element_type=jnp.float32) + b2
        x = _layernorm(h1 + ff, ln2g, ln2b, eps)

    # ---- MLM head: dense + GELU + LN + decoder (vocab padded to 128 lanes) ----
    mlm_b = misc[2:3, :H]
    mlm_g, mlm_be = misc[3:4, :H], misc[4:5, :H]
    dec_b = misc[5:6, :]                               # (1, LANE), zero-padded
    cls_b = misc[6:7, :]                               # (1, LANE), zero-padded

    t = jnp.dot(x.astype(jnp.bfloat16), mlm_w_ref[...],
                preferred_element_type=jnp.float32) + mlm_b
    t = _gelu(t)
    t = _layernorm(t, mlm_g, mlm_be, eps)
    logits = jnp.dot(t.astype(jnp.bfloat16), out_w_ref[0],
                     preferred_element_type=jnp.float32) + dec_b   # (M, LANE)
    logits_ref[...] = logits                                       # lane-dense store

    # ---- cls head on the [CLS] row of each batch item ----
    cls_rows = jnp.concatenate([x[b * S:b * S + 1, :] for b in range(B)], axis=0)
    cls_ref[...] = jnp.dot(cls_rows.astype(jnp.bfloat16), out_w_ref[1],
                           preferred_element_type=jnp.float32) + cls_b

    # ---- fused MLM cross-entropy partial sums (ignore_index = -100) ----
    labels = labels_ref[...]                                       # (M, 1) int32
    col = jax.lax.broadcasted_iota(jnp.int32, logits.shape, 1)
    masked = jnp.where(col < vocab, logits, -1e30)                 # ignore pad columns
    mx = jnp.max(masked, axis=-1, keepdims=True)
    lse = jnp.log(jnp.sum(jnp.exp(masked - mx), axis=-1, keepdims=True)) + mx
    lab_logit = jnp.sum(jnp.where(col == labels, logits, 0.0), axis=-1, keepdims=True)
    valid = (labels != -100).astype(jnp.float32)
    per = (lse - lab_logit) * valid
    ce_sum_ref[...] = jnp.sum(per, axis=0, keepdims=True)
    ce_cnt_ref[...] = jnp.sum(valid, axis=0, keepdims=True)


def uhc_fused_forward(emb2d, add_mask, labels2d, params, *, cfg):
    B, S = add_mask.shape
    M, H = emb2d.shape
    kernel = functools.partial(
        _uhc_forward_kernel,
        B=B, S=S, H=H, num_heads=cfg.num_heads, num_layers=cfg.num_layers,
        inter=cfg.intermediate_size, vocab=cfg.vocab_size, eps=cfg.layer_norm_eps)
    out_shape = (
        jax.ShapeDtypeStruct((M, LANE), jnp.float32),   # padded MLM logits
        jax.ShapeDtypeStruct((B, LANE), jnp.float32),   # padded cls logits
        jax.ShapeDtypeStruct((1, 1), jnp.float32),      # CE sum
        jax.ShapeDtypeStruct((1, 1), jnp.float32),      # CE valid count
    )
    return pl.pallas_call(
        kernel,
        out_shape=out_shape,
        in_specs=[VMEM_SPEC] * 11,
        out_specs=(VMEM_SPEC,) * 4,
    )(emb2d, add_mask, labels2d,
      params["wqkv"], params["wo"], params["w1"], params["w2"], params["lvec"],
      params["mlm_w"], params["out_w"], params["misc"])


# ----------------------------------------------------------------------------
# Parameter construction (deterministic synthetic init — no checkpoint load)
# ----------------------------------------------------------------------------
def init_params(cfg, key):
    H, V, I, L = cfg.hidden_size, cfg.vocab_size, cfg.intermediate_size, cfg.num_layers
    nc = cfg.num_cls_labels

    def nrm(k, shape, dtype=jnp.float32):
        return (0.02 * jax.random.normal(k, shape, dtype=jnp.float32)).astype(dtype)

    def padrow(v):
        return jnp.zeros((LANE,), jnp.float32).at[: v.shape[0]].set(v.astype(jnp.float32))

    keys = iter(jax.random.split(key, 16 + 8 * L))

    wqkv, wo, w1, w2, lvec = [], [], [], [], []
    for _ in range(L):
        wq = nrm(next(keys), (H, H))
        wk = nrm(next(keys), (H, H))
        wv = nrm(next(keys), (H, H))
        wqkv.append(jnp.concatenate([wq, wk, wv], axis=1).astype(jnp.bfloat16))
        wo.append(nrm(next(keys), (H, H), jnp.bfloat16))
        w1.append(nrm(next(keys), (H, I), jnp.bfloat16))
        w2.append(nrm(next(keys), (I, H), jnp.bfloat16))
        lvec.append(jnp.stack([
            padrow(jnp.zeros((3 * H,))),   # bqkv
            padrow(jnp.zeros((H,))),       # bo
            padrow(jnp.ones((H,))),        # ln1 gamma
            padrow(jnp.zeros((H,))),       # ln1 beta
            padrow(jnp.zeros((I,))),       # b1
            padrow(jnp.zeros((H,))),       # b2
            padrow(jnp.ones((H,))),        # ln2 gamma
            padrow(jnp.zeros((H,))),       # ln2 beta
        ]))

    dec_w = nrm(next(keys), (H, V))
    cls_w = nrm(next(keys), (H, nc))
    dec_w_pad = jnp.zeros((H, LANE), jnp.float32).at[:, :V].set(dec_w)
    cls_w_pad = jnp.zeros((H, LANE), jnp.float32).at[:, :nc].set(cls_w)

    misc = jnp.stack([
        padrow(jnp.ones((H,))),    # emb LN gamma
        padrow(jnp.zeros((H,))),   # emb LN beta
        padrow(jnp.zeros((H,))),   # mlm dense bias
        padrow(jnp.ones((H,))),    # mlm LN gamma
        padrow(jnp.zeros((H,))),   # mlm LN beta
        padrow(jnp.zeros((V,))),   # decoder bias
        padrow(jnp.zeros((nc,))),  # cls bias
        padrow(jnp.zeros((1,))),   # spare
    ])

    return {
        "word_emb": nrm(next(keys), (V, H)),
        "pos_emb": nrm(next(keys), (cfg.max_position, H)),
        "type_emb": nrm(next(keys), (cfg.type_vocab_size, H)),
        "wqkv": jnp.stack(wqkv),          # (L, H, 3H) bf16
        "wo": jnp.stack(wo),              # (L, H, H)  bf16
        "w1": jnp.stack(w1),              # (L, H, I)  bf16
        "w2": jnp.stack(w2),              # (L, I, H)  bf16
        "lvec": jnp.stack(lvec),          # (L, 8, 128) f32
        "mlm_w": nrm(next(keys), (H, H), jnp.bfloat16),
        "out_w": jnp.stack([dec_w_pad, cls_w_pad]).astype(jnp.bfloat16),  # (2, H, 128)
        "misc": misc,                     # (8, 128) f32
    }


# ----------------------------------------------------------------------------
# UHCBert forward (mirrors the PyTorch module semantics); fully jit-able
# ----------------------------------------------------------------------------
def uhcbert_forward(params, input_ids, attention_mask, token_type_ids,
                    labels, cls_labels, *, cfg, pair, has_cls):
    B, S = input_ids.shape
    H = cfg.hidden_size

    # embeddings (gathers = glue JAX); LN and everything after is in the kernel
    emb = (jnp.take(params["word_emb"], input_ids, axis=0)
           + params["pos_emb"][None, :S, :]
           + jnp.take(params["type_emb"], token_type_ids, axis=0))
    emb2d = emb.reshape(B * S, H).astype(jnp.float32)
    add_mask = (1.0 - attention_mask.astype(jnp.float32)) * (-1e9)      # (B, S)
    labels2d = labels.reshape(B * S, 1).astype(jnp.int32)

    logits_pad, cls_pad, ce_sum, ce_cnt = uhc_fused_forward(
        emb2d, add_mask, labels2d, params, cfg=cfg)

    student_logits = logits_pad[:, :cfg.vocab_size].reshape(B, S, cfg.vocab_size)
    cls_logits = cls_pad[:, :cfg.num_cls_labels] if pair else None

    loss = jnp.float32(0.0)
    if labels is not None:
        if cfg.num_labels == 1:   # MSE branch of the original module
            loss = jnp.mean((student_logits.reshape(-1)
                             - labels.reshape(-1).astype(jnp.float32)) ** 2)
        else:
            # NOTE: like torch CrossEntropyLoss, NaN if every label is -100.
            loss = ce_sum[0, 0] / ce_cnt[0, 0]
            if pair:
                # cls CE on a (B, 4) tensor is negligible: plain JAX, gated
                # in-graph (no host sync) exactly like the torch data-dependent check.
                valid = (cls_labels != -100).astype(jnp.float32)
                lse = jax.scipy.special.logsumexp(cls_logits, axis=-1)
                ll = jnp.take_along_axis(
                    cls_logits, jnp.clip(cls_labels, 0)[:, None], axis=-1)[:, 0]
                cls_ce = jnp.sum((lse - ll) * valid) / jnp.maximum(jnp.sum(valid), 1.0)
                loss = loss + jnp.where(jnp.sum(valid) > 0, cls_ce, 0.0)

    # TODO(synk): the *tuple structure* (whether cls_logits is returned) must be
    # static under jit, so it uses a host-resolved has_cls flag; the loss itself
    # is computed data-dependently above.
    output = (student_logits, cls_logits) if (pair and has_cls) else (student_logits,)
    return (loss,) + output


# ----------------------------------------------------------------------------
# Main
# ----------------------------------------------------------------------------
if __name__ == "__main__":
    cfg = Config()
    B, S = 2, 8

    key = jax.random.PRNGKey(0)
    kp, k1, k2, k3 = jax.random.split(key, 4)

    params = init_params(cfg, kp)

    input_ids = jax.random.randint(k1, (B, S), 0, cfg.vocab_size, dtype=jnp.int32)
    token_type_ids = jnp.zeros((B, S), dtype=jnp.int32)
    attention_mask = jnp.ones((B, S), dtype=jnp.int32).at[1, S - 1].set(0)

    labels = jax.random.randint(k2, (B, S), 0, cfg.vocab_size, dtype=jnp.int32)
    labels = labels.at[0, 0].set(-100).at[1, 3].set(-100)          # some ignored tokens
    cls_labels = jax.random.randint(k3, (B,), 0, cfg.num_cls_labels, dtype=jnp.int32)

    # Static flag used only for the output-tuple structure (see TODO above).
    has_cls = bool(jnp.any(cls_labels != -100))

    fwd = jax.jit(functools.partial(
        uhcbert_forward, cfg=cfg, pair=True, has_cls=has_cls))

    out = fwd(params, input_ids, attention_mask, token_type_ids, labels, cls_labels)
    jax.block_until_ready(out)
    loss, student_logits, cls_logits = out

    assert student_logits.shape == (B, S, cfg.vocab_size)
    assert cls_logits.shape == (B, cfg.num_cls_labels)
    assert jnp.isfinite(loss)
    print("KERNEL_OK")
</pallas_src>

<mosaic_0001>
module attributes {stable_mosaic.version = 11 : i64} {
  func.func @_uhc_forward_kernel(%arg0: memref<16x32xf32, #tpu.memory_space<vmem>>, %arg1: memref<2x8xf32, #tpu.memory_space<vmem>>, %arg2: memref<16x1xi32, #tpu.memory_space<vmem>>, %arg3: memref<2x32x96xbf16, #tpu.memory_space<vmem>>, %arg4: memref<2x32x32xbf16, #tpu.memory_space<vmem>>, %arg5: memref<2x32x64xbf16, #tpu.memory_space<vmem>>, %arg6: memref<2x64x32xbf16, #tpu.memory_space<vmem>>, %arg7: memref<2x8x128xf32, #tpu.memory_space<vmem>>, %arg8: memref<32x32xbf16, #tpu.memory_space<vmem>>, %arg9: memref<2x32x128xbf16, #tpu.memory_space<vmem>>, %arg10: memref<8x128xf32, #tpu.memory_space<vmem>>, %arg11: memref<16x128xf32, #tpu.memory_space<vmem>>, %arg12: memref<2x128xf32, #tpu.memory_space<vmem>>, %arg13: memref<1x1xf32, #tpu.memory_space<vmem>>, %arg14: memref<1x1xf32, #tpu.memory_space<vmem>>) attributes {dimension_semantics = [], scalar_prefetch = 0 : i64, scratch_operands = 0 : i64, tpu.core_type = #tpu.core_type<tc>} {
    %c0 = arith.constant 0 : index
    %c0_0 = arith.constant 0 : index
    %0 = vector.load %arg10[%c0, %c0_0] : memref<8x128xf32, #tpu.memory_space<vmem>>, vector<8x128xf32>
    %1 = vector.extract_strided_slice %0 {offsets = [0, 0], sizes = [1, 32], strides = [1, 1]} : vector<8x128xf32> to vector<1x32xf32>
    %2 = vector.extract_strided_slice %0 {offsets = [1, 0], sizes = [1, 32], strides = [1, 1]} : vector<8x128xf32> to vector<1x32xf32>
    %c0_1 = arith.constant 0 : index
    %c0_2 = arith.constant 0 : index
    %3 = vector.load %arg0[%c0_1, %c0_2] : memref<16x32xf32, #tpu.memory_space<vmem>>, vector<16x32xf32>
    %cst = arith.constant dense<0.000000e+00> : vector<16xf32>
    %4 = vector.multi_reduction <add>, %3, %cst [1] : vector<16x32xf32> to vector<16xf32>
    %5 = vector.shape_cast %4 : vector<16xf32> to vector<16x1xf32>
    %cst_3 = arith.constant 3.200000e+01 : f32
    %6 = vector.broadcast %cst_3 : f32 to vector<16x1xf32>
    %7 = arith.divf %5, %6 : vector<16x1xf32>
    %8 = vector.broadcast %7 : vector<16x1xf32> to vector<16x32xf32>
    %9 = arith.subf %3, %8 : vector<16x32xf32>
    %10 = vector.broadcast %7 : vector<16x1xf32> to vector<16x32xf32>
    %11 = arith.subf %3, %10 : vector<16x32xf32>
    %12 = arith.mulf %9, %11 : vector<16x32xf32>
    %cst_4 = arith.constant dense<0.000000e+00> : vector<16xf32>
    %13 = vector.multi_reduction <add>, %12, %cst_4 [1] : vector<16x32xf32> to vector<16xf32>
    %14 = vector.shape_cast %13 : vector<16xf32> to vector<16x1xf32>
    %cst_5 = arith.constant 3.200000e+01 : f32
    %15 = vector.broadcast %cst_5 : f32 to vector<16x1xf32>
    %16 = arith.divf %14, %15 : vector<16x1xf32>
    %17 = vector.broadcast %7 : vector<16x1xf32> to vector<16x32xf32>
    %18 = arith.subf %3, %17 : vector<16x32xf32>
    %cst_6 = arith.constant 9.99999996E-13 : f32
    %19 = vector.broadcast %cst_6 : f32 to vector<16x1xf32>
    %20 = arith.addf %16, %19 : vector<16x1xf32>
    %21 = math.rsqrt %20 : vector<16x1xf32>
    %22 = vector.broadcast %21 : vector<16x1xf32> to vector<16x32xf32>
    %23 = arith.mulf %18, %22 : vector<16x32xf32>
    %24 = vector.broadcast %1 : vector<1x32xf32> to vector<16x32xf32>
    %25 = arith.mulf %23, %24 : vector<16x32xf32>
    %26 = vector.broadcast %2 : vector<1x32xf32> to vector<16x32xf32>
    %27 = arith.addf %25, %26 : vector<16x32xf32>
    %c0_7 = arith.constant 0 : index
    %c0_8 = arith.constant 0 : index
    %28 = vector.load %arg1[%c0_7, %c0_8] : memref<2x8xf32, #tpu.memory_space<vmem>>, vector<2x8xf32>
    %c0_9 = arith.constant 0 : index
    %c0_10 = arith.constant 0 : index
    %c0_11 = arith.constant 0 : index
    %29 = vector.load %arg3[%c0_9, %c0_10, %c0_11] : memref<2x32x96xbf16, #tpu.memory_space<vmem>>, vector<1x32x96xbf16>
    %30 = vector.shape_cast %29 : vector<1x32x96xbf16> to vector<32x96xbf16>
    %c0_12 = arith.constant 0 : index
    %c0_13 = arith.constant 0 : index
    %c0_14 = arith.constant 0 : index
    %31 = vector.load %arg4[%c0_12, %c0_13, %c0_14] : memref<2x32x32xbf16, #tpu.memory_space<vmem>>, vector<1x32x32xbf16>
    %32 = vector.shape_cast %31 : vector<1x32x32xbf16> to vector<32x32xbf16>
    %c0_15 = arith.constant 0 : index
    %c0_16 = arith.constant 0 : index
    %c0_17 = arith.constant 0 : index
    %33 = vector.load %arg5[%c0_15, %c0_16, %c0_17] : memref<2x32x64xbf16, #tpu.memory_space<vmem>>, vector<1x32x64xbf16>
    %34 = vector.shape_cast %33 : vector<1x32x64xbf16> to vector<32x64xbf16>
    %c0_18 = arith.constant 0 : index
    %c0_19 = arith.constant 0 : index
    %c0_20 = arith.constant 0 : index
    %35 = vector.load %arg6[%c0_18, %c0_19, %c0_20] : memref<2x64x32xbf16, #tpu.memory_space<vmem>>, vector<1x64x32xbf16>
    %36 = vector.shape_cast %35 : vector<1x64x32xbf16> to vector<64x32xbf16>
    %c0_21 = arith.constant 0 : index
    %c0_22 = arith.constant 0 : index
    %c0_23 = arith.constant 0 : index
    %37 = vector.load %arg7[%c0_21, %c0_22, %c0_23] : memref<2x8x128xf32, #tpu.memory_space<vmem>>, vector<1x8x128xf32>
    %38 = vector.shape_cast %37 : vector<1x8x128xf32> to vector<8x128xf32>
    %39 = vector.extract_strided_slice %38 {offsets = [0, 0], sizes = [1, 96], strides = [1, 1]} : vector<8x128xf32> to vector<1x96xf32>
    %40 = vector.extract_strided_slice %38 {offsets = [1, 0], sizes = [1, 32], strides = [1, 1]} : vector<8x128xf32> to vector<1x32xf32>
    %41 = vector.extract_strided_slice %38 {offsets = [2, 0], sizes = [1, 32], strides = [1, 1]} : vector<8x128xf32> to vector<1x32xf32>
    %42 = vector.extract_strided_slice %38 {offsets = [3, 0], sizes = [1, 32], strides = [1, 1]} : vector<8x128xf32> to vector<1x32xf32>
    %43 = vector.extract_strided_slice %38 {offsets = [4, 0], sizes = [1, 64], strides = [1, 1]} : vector<8x128xf32> to vector<1x64xf32>
    %44 = vector.extract_strided_slice %38 {offsets = [5, 0], sizes = [1, 32], strides = [1, 1]} : vector<8x128xf32> to vector<1x32xf32>
    %45 = vector.extract_strided_slice %38 {offsets = [6, 0], sizes = [1, 32], strides = [1, 1]} : vector<8x128xf32> to vector<1x32xf32>
    %46 = vector.extract_strided_slice %38 {offsets = [7, 0], sizes = [1, 32], strides = [1, 1]} : vector<8x128xf32> to vector<1x32xf32>
    %47 = arith.truncf %27 : vector<16x32xf32> to vector<16x32xbf16>
    %cst_24 = arith.constant dense<0.000000e+00> : vector<16x96xf32>
    %48 = tpu.matmul %47, %30, %cst_24 {dimension_numbers = #tpu.dot_dimension_numbers<[1], [0], [0], [1], [0, 0, 1, 1], [], []>} : vector<16x32xbf16>, vector<32x96xbf16>, vector<16x96xf32> -> vector<16x96xf32>
    %49 = vector.broadcast %39 : vector<1x96xf32> to vector<16x96xf32>
    %50 = arith.addf %48, %49 : vector<16x96xf32>
    %51 = vector.extract_strided_slice %28 {offsets = [0, 0], sizes = [1, 8], strides = [1, 1]} : vector<2x8xf32> to vector<1x8xf32>
    %52 = vector.extract_strided_slice %50 {offsets = [0, 0], sizes = [8, 8], strides = [1, 1]} : vector<16x96xf32> to vector<8x8xf32>
    %53 = arith.truncf %52 : vector<8x8xf32> to vector<8x8xbf16>
    %54 = vector.extract_strided_slice %50 {offsets = [0, 32], sizes = [8, 8], strides = [1, 1]} : vector<16x96xf32> to vector<8x8xf32>
    %55 = arith.truncf %54 : vector<8x8xf32> to vector<8x8xbf16>
    %56 = vector.extract_strided_slice %50 {offsets = [0, 64], sizes = [8, 8], strides = [1, 1]} : vector<16x96xf32> to vector<8x8xf32>
    %57 = arith.truncf %56 : vector<8x8xf32> to vector<8x8xbf16>
    %cst_25 = arith.constant dense<0.000000e+00> : vector<8x8xf32>
    %58 = tpu.matmul %53, %55, %cst_25 {dimension_numbers = #tpu.dot_dimension_numbers<[1], [1], [0], [0], [0, 0, 1, 0], [], []>} : vector<8x8xbf16>, vector<8x8xbf16>, vector<8x8xf32> -> vector<8x8xf32>
    %cst_26 = arith.constant 0.353553385 : f32
    %59 = vector.broadcast %cst_26 : f32 to vector<8x8xf32>
    %60 = arith.mulf %58, %59 : vector<8x8xf32>
    %61 = vector.broadcast %51 : vector<1x8xf32> to vector<8x8xf32>
    %62 = arith.addf %60, %61 : vector<8x8xf32>
    %cst_27 = arith.constant dense<0xFF800000> : vector<8xf32>
    %63 = vector.multi_reduction <maximumf>, %62, %cst_27 [1] : vector<8x8xf32> to vector<8xf32>
    %64 = vector.shape_cast %63 : vector<8xf32> to vector<8x1xf32>
    %65 = vector.broadcast %64 : vector<8x1xf32> to vector<8x8xf32>
    %66 = arith.subf %62, %65 : vector<8x8xf32>
    %67 = math.exp %66 : vector<8x8xf32>
    %cst_28 = arith.constant dense<0.000000e+00> : vector<8xf32>
    %68 = vector.multi_reduction <add>, %67, %cst_28 [1] : vector<8x8xf32> to vector<8xf32>
    %69 = vector.shape_cast %68 : vector<8xf32> to vector<8x1xf32>
    %70 = tpu.reciprocal %69 {approx = true} : vector<8x1xf32> -> vector<8x1xf32>
    %71 = vector.broadcast %70 : vector<8x1xf32> to vector<8x8xf32>
    %72 = arith.mulf %67, %71 : vector<8x8xf32>
    %73 = arith.truncf %72 : vector<8x8xf32> to vector<8x8xbf16>
    %cst_29 = arith.constant dense<0.000000e+00> : vector<8x8xf32>
    %74 = tpu.matmul %73, %57, %cst_29 {dimension_numbers = #tpu.dot_dimension_numbers<[1], [0], [0], [1], [0, 0, 1, 1], [], []>} : vector<8x8xbf16>, vector<8x8xbf16>, vector<8x8xf32> -> vector<8x8xf32>
    %75 = vector.extract_strided_slice %50 {offsets = [0, 8], sizes = [8, 8], strides = [1, 1]} : vector<16x96xf32> to vector<8x8xf32>
    %76 = arith.truncf %75 : vector<8x8xf32> to vector<8x8xbf16>
    %77 = vector.extract_strided_slice %50 {offsets = [0, 40], sizes = [8, 8], strides = [1, 1]} : vector<16x96xf32> to vector<8x8xf32>
    %78 = arith.truncf %77 : vector<8x8xf32> to vector<8x8xbf16>
    %79 = vector.extract_strided_slice %50 {offsets = [0, 72], sizes = [8, 8], strides = [1, 1]} : vector<16x96xf32> to vector<8x8xf32>
    %80 = arith.truncf %79 : vector<8x8xf32> to vector<8x8xbf16>
    %cst_30 = arith.constant dense<0.000000e+00> : vector<8x8xf32>
    %81 = tpu.matmul %76, %78, %cst_30 {dimension_numbers = #tpu.dot_dimension_numbers<[1], [1], [0], [0], [0, 0, 1, 0], [], []>} : vector<8x8xbf16>, vector<8x8xbf16>, vector<8x8xf32> -> vector<8x8xf32>
    %cst_31 = arith.constant 0.353553385 : f32
    %82 = vector.broadcast %cst_31 : f32 to vector<8x8xf32>
    %83 = arith.mulf %81, %82 : vector<8x8xf32>
    %84 = vector.broadcast %51 : vector<1x8xf32> to vector<8x8xf32>
    %85 = arith.addf %83, %84 : vector<8x8xf32>
    %cst_32 = arith.constant dense<0xFF800000> : vector<8xf32>
    %86 = vector.multi_reduction <maximumf>, %85, %cst_32 [1] : vector<8x8xf32> to vector<8xf32>
    %87 = vector.shape_cast %86 : vector<8xf32> to vector<8x1xf32>
    %88 = vector.broadcast %87 : vector<8x1xf32> to vector<8x8xf32>
    %89 = arith.subf %85, %88 : vector<8x8xf32>
    %90 = math.exp %89 : vector<8x8xf32>
    %cst_33 = arith.constant dense<0.000000e+00> : vector<8xf32>
    %91 = vector.multi_reduction <add>, %90, %cst_33 [1] : vector<8x8xf32> to vector<8xf32>
    %92 = vector.shape_cast %91 : vector<8xf32> to vector<8x1xf32>
    %93 = tpu.reciprocal %92 {approx = true} : vector<8x1xf32> -> vector<8x1xf32>
    %94 = vector.broadcast %93 : vector<8x1xf32> to vector<8x8xf32>
    %95 = arith.mulf %90, %94 : vector<8x8xf32>
    %96 = arith.truncf %95 : vector<8x8xf32> to vector<8x8xbf16>
    %cst_34 = arith.constant dense<0.000000e+00> : vector<8x8xf32>
    %97 = tpu.matmul %96, %80, %cst_34 {dimension_numbers = #tpu.dot_dimension_numbers<[1], [0], [0], [1], [0, 0, 1, 1], [], []>} : vector<8x8xbf16>, vector<8x8xbf16>, vector<8x8xf32> -> vector<8x8xf32>
    %98 = vector.extract_strided_slice %50 {offsets = [0, 16], sizes = [8, 8], strides = [1, 1]} : vector<16x96xf32> to vector<8x8xf32>
    %99 = arith.truncf %98 : vector<8x8xf32> to vector<8x8xbf16>
    %100 = vector.extract_strided_slice %50 {offsets = [0, 48], sizes = [8, 8], strides = [1, 1]} : vector<16x96xf32> to vector<8x8xf32>
    %101 = arith.truncf %100 : vector<8x8xf32> to vector<8x8xbf16>
    %102 = vector.extract_strided_slice %50 {offsets = [0, 80], sizes = [8, 8], strides = [1, 1]} : vector<16x96xf32> to vector<8x8xf32>
    %103 = arith.truncf %102 : vector<8x8xf32> to vector<8x8xbf16>
    %cst_35 = arith.constant dense<0.000000e+00> : vector<8x8xf32>
    %104 = tpu.matmul %99, %101, %cst_35 {dimension_numbers = #tpu.dot_dimension_numbers<[1], [1], [0], [0], [0, 0, 1, 0], [], []>} : vector<8x8xbf16>, vector<8x8xbf16>, vector<8x8xf32> -> vector<8x8xf32>
    %cst_36 = arith.constant 0.353553385 : f32
    %105 = vector.broadcast %cst_36 : f32 to vector<8x8xf32>
    %106 = arith.mulf %104, %105 : vector<8x8xf32>
    %107 = vector.broadcast %51 : vector<1x8xf32> to vector<8x8xf32>
    %108 = arith.addf %106, %107 : vector<8x8xf32>
    %cst_37 = arith.constant dense<0xFF800000> : vector<8xf32>
    %109 = vector.multi_reduction <maximumf>, %108, %cst_37 [1] : vector<8x8xf32> to vector<8xf32>
    %110 = vector.shape_cast %109 : vector<8xf32> to vector<8x1xf32>
    %111 = vector.broadcast %110 : vector<8x1xf32> to vector<8x8xf32>
    %112 = arith.subf %108, %111 : vector<8x8xf32>
    %113 = math.exp %112 : vector<8x8xf32>
    %cst_38 = arith.constant dense<0.000000e+00> : vector<8xf32>
    %114 = vector.multi_reduction <add>, %113, %cst_38 [1] : vector<8x8xf32> to vector<8xf32>
    %115 = vector.shape_cast %114 : vector<8xf32> to vector<8x1xf32>
    %116 = tpu.reciprocal %115 {approx = true} : vector<8x1xf32> -> vector<8x1xf32>
    %117 = vector.broadcast %116 : vector<8x1xf32> to vector<8x8xf32>
    %118 = arith.mulf %113, %117 : vector<8x8xf32>
    %119 = arith.truncf %118 : vector<8x8xf32> to vector<8x8xbf16>
    %cst_39 = arith.constant dense<0.000000e+00> : vector<8x8xf32>
    %120 = tpu.matmul %119, %103, %cst_39 {dimension_numbers = #tpu.dot_dimension_numbers<[1], [0], [0], [1], [0, 0, 1, 1], [], []>} : vector<8x8xbf16>, vector<8x8xbf16>, vector<8x8xf32> -> vector<8x8xf32>
    %121 = vector.extract_strided_slice %50 {offsets = [0, 24], sizes = [8, 8], strides = [1, 1]} : vector<16x96xf32> to vector<8x8xf32>
    %122 = arith.truncf %121 : vector<8x8xf32> to vector<8x8xbf16>
    %123 = vector.extract_strided_slice %50 {offsets = [0, 56], sizes = [8, 8], strides = [1, 1]} : vector<16x96xf32> to vector<8x8xf32>
    %124 = arith.truncf %123 : vector<8x8xf32> to vector<8x8xbf16>
    %125 = vector.extract_strided_slice %50 {offsets = [0, 88], sizes = [8, 8], strides = [1, 1]} : vector<16x96xf32> to vector<8x8xf32>
    %126 = arith.truncf %125 : vector<8x8xf32> to vector<8x8xbf16>
    %cst_40 = arith.constant dense<0.000000e+00> : vector<8x8xf32>
    %127 = tpu.matmul %122, %124, %cst_40 {dimension_numbers = #tpu.dot_dimension_numbers<[1], [1], [0], [0], [0, 0, 1, 0], [], []>} : vector<8x8xbf16>, vector<8x8xbf16>, vector<8x8xf32> -> vector<8x8xf32>
    %cst_41 = arith.constant 0.353553385 : f32
    %128 = vector.broadcast %cst_41 : f32 to vector<8x8xf32>
    %129 = arith.mulf %127, %128 : vector<8x8xf32>
    %130 = vector.broadcast %51 : vector<1x8xf32> to vector<8x8xf32>
    %131 = arith.addf %129, %130 : vector<8x8xf32>
    %cst_42 = arith.constant dense<0xFF800000> : vector<8xf32>
    %132 = vector.multi_reduction <maximumf>, %131, %cst_42 [1] : vector<8x8xf32> to vector<8xf32>
    %133 = vector.shape_cast %132 : vector<8xf32> to vector<8x1xf32>
    %134 = vector.broadcast %133 : vector<8x1xf32> to vector<8x8xf32>
    %135 = arith.subf %131, %134 : vector<8x8xf32>
    %136 = math.exp %135 : vector<8x8xf32>
    %cst_43 = arith.constant dense<0.000000e+00> : vector<8xf32>
    %137 = vector.multi_reduction <add>, %136, %cst_43 [1] : vector<8x8xf32> to vector<8xf32>
    %138 = vector.shape_cast %137 : vector<8xf32> to vector<8x1xf32>
    %139 = tpu.reciprocal %138 {approx = true} : vector<8x1xf32> -> vector<8x1xf32>
    %140 = vector.broadcast %139 : vector<8x1xf32> to vector<8x8xf32>
    %141 = arith.mulf %136, %140 : vector<8x8xf32>
    %142 = arith.truncf %141 : vector<8x8xf32> to vector<8x8xbf16>
    %cst_44 = arith.constant dense<0.000000e+00> : vector<8x8xf32>
    %143 = tpu.matmul %142, %126, %cst_44 {dimension_numbers = #tpu.dot_dimension_numbers<[1], [0], [0], [1], [0, 0, 1, 1], [], []>} : vector<8x8xbf16>, vector<8x8xbf16>, vector<8x8xf32> -> vector<8x8xf32>
    %144 = tpu.concatenate %74, %97, %120, %143 in 1 : vector<8x8xf32>, vector<8x8xf32>, vector<8x8xf32>, vector<8x8xf32> -> vector<8x32xf32>
    %145 = vector.extract_strided_slice %28 {offsets = [1, 0], sizes = [1, 8], strides = [1, 1]} : vector<2x8xf32> to vector<1x8xf32>
    %146 = vector.extract_strided_slice %50 {offsets = [8, 0], sizes = [8, 8], strides = [1, 1]} : vector<16x96xf32> to vector<8x8xf32>
    %147 = arith.truncf %146 : vector<8x8xf32> to vector<8x8xbf16>
    %148 = vector.extract_strided_slice %50 {offsets = [8, 32], sizes = [8, 8], strides = [1, 1]} : vector<16x96xf32> to vector<8x8xf32>
    %149 = arith.truncf %148 : vector<8x8xf32> to vector<8x8xbf16>
    %150 = vector.extract_strided_slice %50 {offsets = [8, 64], sizes = [8, 8], strides = [1, 1]} : vector<16x96xf32> to vector<8x8xf32>
    %151 = arith.truncf %150 : vector<8x8xf32> to vector<8x8xbf16>
    %cst_45 = arith.constant dense<0.000000e+00> : vector<8x8xf32>
    %152 = tpu.matmul %147, %149, %cst_45 {dimension_numbers = #tpu.dot_dimension_numbers<[1], [1], [0], [0], [0, 0, 1, 0], [], []>} : vector<8x8xbf16>, vector<8x8xbf16>, vector<8x8xf32> -> vector<8x8xf32>
    %cst_46 = arith.constant 0.353553385 : f32
    %153 = vector.broadcast %cst_46 : f32 to vector<8x8xf32>
    %154 = arith.mulf %152, %153 : vector<8x8xf32>
    %155 = vector.broadcast %145 : vector<1x8xf32> to vector<8x8xf32>
    %156 = arith.addf %154, %155 : vector<8x8xf32>
    %cst_47 = arith.constant dense<0xFF800000> : vector<8xf32>
    %157 = vector.multi_reduction <maximumf>, %156, %cst_47 [1] : vector<8x8xf32> to vector<8xf32>
    %158 = vector.shape_cast %157 : vector<8xf32> to vector<8x1xf32>
    %159 = vector.broadcast %158 : vector<8x1xf32> to vector<8x8xf32>
    %160 = arith.subf %156, %159 : vector<8x8xf32>
    %161 = math.exp %160 : vector<8x8xf32>
    %cst_48 = arith.constant dense<0.000000e+00> : vector<8xf32>
    %162 = vector.multi_reduction <add>, %161, %cst_48 [1] : vector<8x8xf32> to vector<8xf32>
    %163 = vector.shape_cast %162 : vector<8xf32> to vector<8x1xf32>
    %164 = tpu.reciprocal %163 {approx = true} : vector<8x1xf32> -> vector<8x1xf32>
    %165 = vector.broadcast %164 : vector<8x1xf32> to vector<8x8xf32>
    %166 = arith.mulf %161, %165 : vector<8x8xf32>
    %167 = arith.truncf %166 : vector<8x8xf32> to vector<8x8xbf16>
    %cst_49 = arith.constant dense<0.000000e+00> : vector<8x8xf32>
    %168 = tpu.matmul %167, %151, %cst_49 {dimension_numbers = #tpu.dot_dimension_numbers<[1], [0], [0], [1], [0, 0, 1, 1], [], []>} : vector<8x8xbf16>, vector<8x8xbf16>, vector<8x8xf32> -> vector<8x8xf32>
    %169 = vector.extract_strided_slice %50 {offsets = [8, 8], sizes = [8, 8], strides = [1, 1]} : vector<16x96xf32> to vector<8x8xf32>
    %170 = arith.truncf %169 : vector<8x8xf32> to vector<8x8xbf16>
    %171 = vector.extract_strided_slice %50 {offsets = [8, 40], sizes = [8, 8], strides = [1, 1]} : vector<16x96xf32> to vector<8x8xf32>
    %172 = arith.truncf %171 : vector<8x8xf32> to vector<8x8xbf16>
    %173 = vector.extract_strided_slice %50 {offsets = [8, 72], sizes = [8, 8], strides = [1, 1]} : vector<16x96xf32> to vector<8x8xf32>
    %174 = arith.truncf %173 : vector<8x8xf32> to vector<8x8xbf16>
    %cst_50 = arith.constant dense<0.000000e+00> : vector<8x8xf32>
    %175 = tpu.matmul %170, %172, %cst_50 {dimension_numbers = #tpu.dot_dimension_numbers<[1], [1], [0], [0], [0, 0, 1, 0], [], []>} : vector<8x8xbf16>, vector<8x8xbf16>, vector<8x8xf32> -> vector<8x8xf32>
    %cst_51 = arith.constant 0.353553385 : f32
    %176 = vector.broadcast %cst_51 : f32 to vector<8x8xf32>
    %177 = arith.mulf %175, %176 : vector<8x8xf32>
    %178 = vector.broadcast %145 : vector<1x8xf32> to vector<8x8xf32>
    %179 = arith.addf %177, %178 : vector<8x8xf32>
    %cst_52 = arith.constant dense<0xFF800000> : vector<8xf32>
    %180 = vector.multi_reduction <maximumf>, %179, %cst_52 [1] : vector<8x8xf32> to vector<8xf32>
    %181 = vector.shape_cast %180 : vector<8xf32> to vector<8x1xf32>
    %182 = vector.broadcast %181 : vector<8x1xf32> to vector<8x8xf32>
    %183 = arith.subf %179, %182 : vector<8x8xf32>
    %184 = math.exp %183 : vector<8x8xf32>
    %cst_53 = arith.constant dense<0.000000e+00> : vector<8xf32>
    %185 = vector.multi_reduction <add>, %184, %cst_53 [1] : vector<8x8xf32> to vector<8xf32>
    %186 = vector.shape_cast %185 : vector<8xf32> to vector<8x1xf32>
    %187 = tpu.reciprocal %186 {approx = true} : vector<8x1xf32> -> vector<8x1xf32>
    %188 = vector.broadcast %187 : vector<8x1xf32> to vector<8x8xf32>
    %189 = arith.mulf %184, %188 : vector<8x8xf32>
    %190 = arith.truncf %189 : vector<8x8xf32> to vector<8x8xbf16>
    %cst_54 = arith.constant dense<0.000000e+00> : vector<8x8xf32>
    %191 = tpu.matmul %190, %174, %cst_54 {dimension_numbers = #tpu.dot_dimension_numbers<[1], [0], [0], [1], [0, 0, 1, 1], [], []>} : vector<8x8xbf16>, vector<8x8xbf16>, vector<8x8xf32> -> vector<8x8xf32>
    %192 = vector.extract_strided_slice %50 {offsets = [8, 16], sizes = [8, 8], strides = [1, 1]} : vector<16x96xf32> to vector<8x8xf32>
    %193 = arith.truncf %192 : vector<8x8xf32> to vector<8x8xbf16>
    %194 = vector.extract_strided_slice %50 {offsets = [8, 48], sizes = [8, 8], strides = [1, 1]} : vector<16x96xf32> to vector<8x8xf32>
    %195 = arith.truncf %194 : vector<8x8xf32> to vector<8x8xbf16>
    %196 = vector.extract_strided_slice %50 {offsets = [8, 80], sizes = [8, 8], strides = [1, 1]} : vector<16x96xf32> to vector<8x8xf32>
    %197 = arith.truncf %196 : vector<8x8xf32> to vector<8x8xbf16>
    %cst_55 = arith.constant dense<0.000000e+00> : vector<8x8xf32>
    %198 = tpu.matmul %193, %195, %cst_55 {dimension_numbers = #tpu.dot_dimension_numbers<[1], [1], [0], [0], [0, 0, 1, 0], [], []>} : vector<8x8xbf16>, vector<8x8xbf16>, vector<8x8xf32> -> vector<8x8xf32>
    %cst_56 = arith.constant 0.353553385 : f32
    %199 = vector.broadcast %cst_56 : f32 to vector<8x8xf32>
    %200 = arith.mulf %198, %199 : vector<8x8xf32>
    %201 = vector.broadcast %145 : vector<1x8xf32> to vector<8x8xf32>
    %202 = arith.addf %200, %201 : vector<8x8xf32>
    %cst_57 = arith.constant dense<0xFF800000> : vector<8xf32>
    %203 = vector.multi_reduction <maximumf>, %202, %cst_57 [1] : vector<8x8xf32> to vector<8xf32>
    %204 = vector.shape_cast %203 : vector<8xf32> to vector<8x1xf32>
    %205 = vector.broadcast %204 : vector<8x1xf32> to vector<8x8xf32>
    %206 = arith.subf %202, %205 : vector<8x8xf32>
    %207 = math.exp %206 : vector<8x8xf32>
    %cst_58 = arith.constant dense<0.000000e+00> : vector<8xf32>
    %208 = vector.multi_reduction <add>, %207, %cst_58 [1] : vector<8x8xf32> to vector<8xf32>
    %209 = vector.shape_cast %208 : vector<8xf32> to vector<8x1xf32>
    %210 = tpu.reciprocal %209 {approx = true} : vector<8x1xf32> -> vector<8x1xf32>
    %211 = vector.broadcast %210 : vector<8x1xf32> to vector<8x8xf32>
    %212 = arith.mulf %207, %211 : vector<8x8xf32>
    %213 = arith.truncf %212 : vector<8x8xf32> to vector<8x8xbf16>
    %cst_59 = arith.constant dense<0.000000e+00> : vector<8x8xf32>
    %214 = tpu.matmul %213, %197, %cst_59 {dimension_numbers = #tpu.dot_dimension_numbers<[1], [0], [0], [1], [0, 0, 1, 1], [], []>} : vector<8x8xbf16>, vector<8x8xbf16>, vector<8x8xf32> -> vector<8x8xf32>
    %215 = vector.extract_strided_slice %50 {offsets = [8, 24], sizes = [8, 8], strides = [1, 1]} : vector<16x96xf32> to vector<8x8xf32>
    %216 = arith.truncf %215 : vector<8x8xf32> to vector<8x8xbf16>
    %217 = vector.extract_strided_slice %50 {offsets = [8, 56], sizes = [8, 8], strides = [1, 1]} : vector<16x96xf32> to vector<8x8xf32>
    %218 = arith.truncf %217 : vector<8x8xf32> to vector<8x8xbf16>
    %219 = vector.extract_strided_slice %50 {offsets = [8, 88], sizes = [8, 8], strides = [1, 1]} : vector<16x96xf32> to vector<8x8xf32>
    %220 = arith.truncf %219 : vector<8x8xf32> to vector<8x8xbf16>
    %cst_60 = arith.constant dense<0.000000e+00> : vector<8x8xf32>
    %221 = tpu.matmul %216, %218, %cst_60 {dimension_numbers = #tpu.dot_dimension_numbers<[1], [1], [0], [0], [0, 0, 1, 0], [], []>} : vector<8x8xbf16>, vector<8x8xbf16>, vector<8x8xf32> -> vector<8x8xf32>
    %cst_61 = arith.constant 0.353553385 : f32
    %222 = vector.broadcast %cst_61 : f32 to vector<8x8xf32>
    %223 = arith.mulf %221, %222 : vector<8x8xf32>
    %224 = vector.broadcast %145 : vector<1x8xf32> to vector<8x8xf32>
    %225 = arith.addf %223, %224 : vector<8x8xf32>
    %cst_62 = arith.constant dense<0xFF800000> : vector<8xf32>
    %226 = vector.multi_reduction <maximumf>, %225, %cst_62 [1] : vector<8x8xf32> to vector<8xf32>
    %227 = vector.shape_cast %226 : vector<8xf32> to vector<8x1xf32>
    %228 = vector.broadcast %227 : vector<8x1xf32> to vector<8x8xf32>
    %229 = arith.subf %225, %228 : vector<8x8xf32>
    %230 = math.exp %229 : vector<8x8xf32>
    %cst_63 = arith.constant dense<0.000000e+00> : vector<8xf32>
    %231 = vector.multi_reduction <add>, %230, %cst_63 [1] : vector<8x8xf32> to vector<8xf32>
    %232 = vector.shape_cast %231 : vector<8xf32> to vector<8x1xf32>
    %233 = tpu.reciprocal %232 {approx = true} : vector<8x1xf32> -> vector<8x1xf32>
    %234 = vector.broadcast %233 : vector<8x1xf32> to vector<8x8xf32>
    %235 = arith.mulf %230, %234 : vector<8x8xf32>
    %236 = arith.truncf %235 : vector<8x8xf32> to vector<8x8xbf16>
    %cst_64 = arith.constant dense<0.000000e+00> : vector<8x8xf32>
    %237 = tpu.matmul %236, %220, %cst_64 {dimension_numbers = #tpu.dot_dimension_numbers<[1], [0], [0], [1], [0, 0, 1, 1], [], []>} : vector<8x8xbf16>, vector<8x8xbf16>, vector<8x8xf32> -> vector<8x8xf32>
    %238 = tpu.concatenate %168, %191, %214, %237 in 1 : vector<8x8xf32>, vector<8x8xf32>, vector<8x8xf32>, vector<8x8xf32> -> vector<8x32xf32>
    %239 = tpu.concatenate %144, %238 in 0 : vector<8x32xf32>, vector<8x32xf32> -> vector<16x32xf32>
    %240 = arith.truncf %239 : vector<16x32xf32> to vector<16x32xbf16>
    %cst_65 = arith.constant dense<0.000000e+00> : vector<16x32xf32>
    %241 = tpu.matmul %240, %32, %cst_65 {dimension_numbers = #tpu.dot_dimension_numbers<[1], [0], [0], [1], [0, 0, 1, 1], [], []>} : vector<16x32xbf16>, vector<32x32xbf16>, vector<16x32xf32> -> vector<16x32xf32>
    %242 = vector.broadcast %40 : vector<1x32xf32> to vector<16x32xf32>
    %243 = arith.addf %241, %242 : vector<16x32xf32>
    %244 = arith.addf %27, %243 : vector<16x32xf32>
    %cst_66 = arith.constant dense<0.000000e+00> : vector<16xf32>
    %245 = vector.multi_reduction <add>, %244, %cst_66 [1] : vector<16x32xf32> to vector<16xf32>
    %246 = vector.shape_cast %245 : vector<16xf32> to vector<16x1xf32>
    %cst_67 = arith.constant 3.200000e+01 : f32
    %247 = vector.broadcast %cst_67 : f32 to vector<16x1xf32>
    %248 = arith.divf %246, %247 : vector<16x1xf32>
    %249 = vector.broadcast %248 : vector<16x1xf32> to vector<16x32xf32>
    %250 = arith.subf %244, %249 : vector<16x32xf32>
    %251 = vector.broadcast %248 : vector<16x1xf32> to vector<16x32xf32>
    %252 = arith.subf %244, %251 : vector<16x32xf32>
    %253 = arith.mulf %250, %252 : vector<16x32xf32>
    %cst_68 = arith.constant dense<0.000000e+00> : vector<16xf32>
    %254 = vector.multi_reduction <add>, %253, %cst_68 [1] : vector<16x32xf32> to vector<16xf32>
    %255 = vector.shape_cast %254 : vector<16xf32> to vector<16x1xf32>
    %cst_69 = arith.constant 3.200000e+01 : f32
    %256 = vector.broadcast %cst_69 : f32 to vector<16x1xf32>
    %257 = arith.divf %255, %256 : vector<16x1xf32>
    %258 = vector.broadcast %248 : vector<16x1xf32> to vector<16x32xf32>
    %259 = arith.subf %244, %258 : vector<16x32xf32>
    %cst_70 = arith.constant 9.99999996E-13 : f32
    %260 = vector.broadcast %cst_70 : f32 to vector<16x1xf32>
    %261 = arith.addf %257, %260 : vector<16x1xf32>
    %262 = math.rsqrt %261 : vector<16x1xf32>
    %263 = vector.broadcast %262 : vector<16x1xf32> to vector<16x32xf32>
    %264 = arith.mulf %259, %263 : vector<16x32xf32>
    %265 = vector.broadcast %41 : vector<1x32xf32> to vector<16x32xf32>
    %266 = arith.mulf %264, %265 : vector<16x32xf32>
    %267 = vector.broadcast %42 : vector<1x32xf32> to vector<16x32xf32>
    %268 = arith.addf %266, %267 : vector<16x32xf32>
    %269 = arith.truncf %268 : vector<16x32xf32> to vector<16x32xbf16>
    %cst_71 = arith.constant dense<0.000000e+00> : vector<16x64xf32>
    %270 = tpu.matmul %269, %34, %cst_71 {dimension_numbers = #tpu.dot_dimension_numbers<[1], [0], [0], [1], [0, 0, 1, 1], [], []>} : vector<16x32xbf16>, vector<32x64xbf16>, vector<16x64xf32> -> vector<16x64xf32>
    %271 = vector.broadcast %43 : vector<1x64xf32> to vector<16x64xf32>
    %272 = arith.addf %270, %271 : vector<16x64xf32>
    %cst_72 = arith.constant 5.000000e-01 : f32
    %273 = vector.broadcast %cst_72 : f32 to vector<16x64xf32>
    %274 = arith.mulf %273, %272 : vector<16x64xf32>
    %cst_73 = arith.constant 4.471500e-02 : f32
    %275 = vector.broadcast %cst_73 : f32 to vector<16x64xf32>
    %276 = arith.mulf %275, %272 : vector<16x64xf32>
    %277 = arith.mulf %276, %272 : vector<16x64xf32>
    %278 = arith.mulf %277, %272 : vector<16x64xf32>
    %279 = arith.addf %272, %278 : vector<16x64xf32>
    %cst_74 = arith.constant 0.797884583 : f32
    %280 = vector.broadcast %cst_74 : f32 to vector<16x64xf32>
    %281 = arith.mulf %280, %279 : vector<16x64xf32>
    %282 = math.tanh %281 : vector<16x64xf32>
    %cst_75 = arith.constant 1.000000e+00 : f32
    %283 = vector.broadcast %cst_75 : f32 to vector<16x64xf32>
    %284 = arith.addf %283, %282 : vector<16x64xf32>
    %285 = arith.mulf %274, %284 : vector<16x64xf32>
    %286 = arith.truncf %285 : vector<16x64xf32> to vector<16x64xbf16>
    %cst_76 = arith.constant dense<0.000000e+00> : vector<16x32xf32>
    %287 = tpu.matmul %286, %36, %cst_76 {dimension_numbers = #tpu.dot_dimension_numbers<[1], [0], [0], [1], [0, 0, 1, 1], [], []>} : vector<16x64xbf16>, vector<64x32xbf16>, vector<16x32xf32> -> vector<16x32xf32>
    %288 = vector.broadcast %44 : vector<1x32xf32> to vector<16x32xf32>
    %289 = arith.addf %287, %288 : vector<16x32xf32>
    %290 = arith.addf %268, %289 : vector<16x32xf32>
    %cst_77 = arith.constant dense<0.000000e+00> : vector<16xf32>
    %291 = vector.multi_reduction <add>, %290, %cst_77 [1] : vector<16x32xf32> to vector<16xf32>
    %292 = vector.shape_cast %291 : vector<16xf32> to vector<16x1xf32>
    %cst_78 = arith.constant 3.200000e+01 : f32
    %293 = vector.broadcast %cst_78 : f32 to vector<16x1xf32>
    %294 = arith.divf %292, %293 : vector<16x1xf32>
    %295 = vector.broadcast %294 : vector<16x1xf32> to vector<16x32xf32>
    %296 = arith.subf %290, %295 : vector<16x32xf32>
    %297 = vector.broadcast %294 : vector<16x1xf32> to vector<16x32xf32>
    %298 = arith.subf %290, %297 : vector<16x32xf32>
    %299 = arith.mulf %296, %298 : vector<16x32xf32>
    %cst_79 = arith.constant dense<0.000000e+00> : vector<16xf32>
    %300 = vector.multi_reduction <add>, %299, %cst_79 [1] : vector<16x32xf32> to vector<16xf32>
    %301 = vector.shape_cast %300 : vector<16xf32> to vector<16x1xf32>
    %cst_80 = arith.constant 3.200000e+01 : f32
    %302 = vector.broadcast %cst_80 : f32 to vector<16x1xf32>
    %303 = arith.divf %301, %302 : vector<16x1xf32>
    %304 = vector.broadcast %294 : vector<16x1xf32> to vector<16x32xf32>
    %305 = arith.subf %290, %304 : vector<16x32xf32>
    %cst_81 = arith.constant 9.99999996E-13 : f32
    %306 = vector.broadcast %cst_81 : f32 to vector<16x1xf32>
    %307 = arith.addf %303, %306 : vector<16x1xf32>
    %308 = math.rsqrt %307 : vector<16x1xf32>
    %309 = vector.broadcast %308 : vector<16x1xf32> to vector<16x32xf32>
    %310 = arith.mulf %305, %309 : vector<16x32xf32>
    %311 = vector.broadcast %45 : vector<1x32xf32> to vector<16x32xf32>
    %312 = arith.mulf %310, %311 : vector<16x32xf32>
    %313 = vector.broadcast %46 : vector<1x32xf32> to vector<16x32xf32>
    %314 = arith.addf %312, %313 : vector<16x32xf32>
    %c1 = arith.constant 1 : index
    %c0_82 = arith.constant 0 : index
    %c0_83 = arith.constant 0 : index
    %315 = vector.load %arg3[%c1, %c0_82, %c0_83] : memref<2x32x96xbf16, #tpu.memory_space<vmem>>, vector<1x32x96xbf16>
    %316 = vector.shape_cast %315 : vector<1x32x96xbf16> to vector<32x96xbf16>
    %c1_84 = arith.constant 1 : index
    %c0_85 = arith.constant 0 : index
    %c0_86 = arith.constant 0 : index
    %317 = vector.load %arg4[%c1_84, %c0_85, %c0_86] : memref<2x32x32xbf16, #tpu.memory_space<vmem>>, vector<1x32x32xbf16>
    %318 = vector.shape_cast %317 : vector<1x32x32xbf16> to vector<32x32xbf16>
    %c1_87 = arith.constant 1 : index
    %c0_88 = arith.constant 0 : index
    %c0_89 = arith.constant 0 : index
    %319 = vector.load %arg5[%c1_87, %c0_88, %c0_89] : memref<2x32x64xbf16, #tpu.memory_space<vmem>>, vector<1x32x64xbf16>
    %320 = vector.shape_cast %319 : vector<1x32x64xbf16> to vector<32x64xbf16>
    %c1_90 = arith.constant 1 : index
    %c0_91 = arith.constant 0 : index
    %c0_92 = arith.constant 0 : index
    %321 = vector.load %arg6[%c1_90, %c0_91, %c0_92] : memref<2x64x32xbf16, #tpu.memory_space<vmem>>, vector<1x64x32xbf16>
    %322 = vector.shape_cast %321 : vector<1x64x32xbf16> to vector<64x32xbf16>
    %c1_93 = arith.constant 1 : index
    %c0_94 = arith.constant 0 : index
    %c0_95 = arith.constant 0 : index
    %323 = vector.load %arg7[%c1_93, %c0_94, %c0_95] : memref<2x8x128xf32, #tpu.memory_space<vmem>>, vector<1x8x128xf32>
    %324 = vector.shape_cast %323 : vector<1x8x128xf32> to vector<8x128xf32>
    %325 = vector.extract_strided_slice %324 {offsets = [0, 0], sizes = [1, 96], strides = [1, 1]} : vector<8x128xf32> to vector<1x96xf32>
    %326 = vector.extract_strided_slice %324 {offsets = [1, 0], sizes = [1, 32], strides = [1, 1]} : vector<8x128xf32> to vector<1x32xf32>
    %327 = vector.extract_strided_slice %324 {offsets = [2, 0], sizes = [1, 32], strides = [1, 1]} : vector<8x128xf32> to vector<1x32xf32>
    %328 = vector.extract_strided_slice %324 {offsets = [3, 0], sizes = [1, 32], strides = [1, 1]} : vector<8x128xf32> to vector<1x32xf32>
    %329 = vector.extract_strided_slice %324 {offsets = [4, 0], sizes = [1, 64], strides = [1, 1]} : vector<8x128xf32> to vector<1x64xf32>
    %330 = vector.extract_strided_slice %324 {offsets = [5, 0], sizes = [1, 32], strides = [1, 1]} : vector<8x128xf32> to vector<1x32xf32>
    %331 = vector.extract_strided_slice %324 {offsets = [6, 0], sizes = [1, 32], strides = [1, 1]} : vector<8x128xf32> to vector<1x32xf32>
    %332 = vector.extract_strided_slice %324 {offsets = [7, 0], sizes = [1, 32], strides = [1, 1]} : vector<8x128xf32> to vector<1x32xf32>
    %333 = arith.truncf %314 : vector<16x32xf32> to vector<16x32xbf16>
    %cst_96 = arith.constant dense<0.000000e+00> : vector<16x96xf32>
    %334 = tpu.matmul %333, %316, %cst_96 {dimension_numbers = #tpu.dot_dimension_numbers<[1], [0], [0], [1], [0, 0, 1, 1], [], []>} : vector<16x32xbf16>, vector<32x96xbf16>, vector<16x96xf32> -> vector<16x96xf32>
    %335 = vector.broadcast %325 : vector<1x96xf32> to vector<16x96xf32>
    %336 = arith.addf %334, %335 : vector<16x96xf32>
    %337 = vector.extract_strided_slice %28 {offsets = [0, 0], sizes = [1, 8], strides = [1, 1]} : vector<2x8xf32> to vector<1x8xf32>
    %338 = vector.extract_strided_slice %336 {offsets = [0, 0], sizes = [8, 8], strides = [1, 1]} : vector<16x96xf32> to vector<8x8xf32>
    %339 = arith.truncf %338 : vector<8x8xf32> to vector<8x8xbf16>
    %340 = vector.extract_strided_slice %336 {offsets = [0, 32], sizes = [8, 8], strides = [1, 1]} : vector<16x96xf32> to vector<8x8xf32>
    %341 = arith.truncf %340 : vector<8x8xf32> to vector<8x8xbf16>
    %342 = vector.extract_strided_slice %336 {offsets = [0, 64], sizes = [8, 8], strides = [1, 1]} : vector<16x96xf32> to vector<8x8xf32>
    %343 = arith.truncf %342 : vector<8x8xf32> to vector<8x8xbf16>
    %cst_97 = arith.constant dense<0.000000e+00> : vector<8x8xf32>
    %344 = tpu.matmul %339, %341, %cst_97 {dimension_numbers = #tpu.dot_dimension_numbers<[1], [1], [0], [0], [0, 0, 1, 0], [], []>} : vector<8x8xbf16>, vector<8x8xbf16>, vector<8x8xf32> -> vector<8x8xf32>
    %cst_98 = arith.constant 0.353553385 : f32
    %345 = vector.broadcast %cst_98 : f32 to vector<8x8xf32>
    %346 = arith.mulf %344, %345 : vector<8x8xf32>
    %347 = vector.broadcast %337 : vector<1x8xf32> to vector<8x8xf32>
    %348 = arith.addf %346, %347 : vector<8x8xf32>
    %cst_99 = arith.constant dense<0xFF800000> : vector<8xf32>
    %349 = vector.multi_reduction <maximumf>, %348, %cst_99 [1] : vector<8x8xf32> to vector<8xf32>
    %350 = vector.shape_cast %349 : vector<8xf32> to vector<8x1xf32>
    %351 = vector.broadcast %350 : vector<8x1xf32> to vector<8x8xf32>
    %352 = arith.subf %348, %351 : vector<8x8xf32>
    %353 = math.exp %352 : vector<8x8xf32>
    %cst_100 = arith.constant dense<0.000000e+00> : vector<8xf32>
    %354 = vector.multi_reduction <add>, %353, %cst_100 [1] : vector<8x8xf32> to vector<8xf32>
    %355 = vector.shape_cast %354 : vector<8xf32> to vector<8x1xf32>
    %356 = tpu.reciprocal %355 {approx = true} : vector<8x1xf32> -> vector<8x1xf32>
    %357 = vector.broadcast %356 : vector<8x1xf32> to vector<8x8xf32>
    %358 = arith.mulf %353, %357 : vector<8x8xf32>
    %359 = arith.truncf %358 : vector<8x8xf32> to vector<8x8xbf16>
    %cst_101 = arith.constant dense<0.000000e+00> : vector<8x8xf32>
    %360 = tpu.matmul %359, %343, %cst_101 {dimension_numbers = #tpu.dot_dimension_numbers<[1], [0], [0], [1], [0, 0, 1, 1], [], []>} : vector<8x8xbf16>, vector<8x8xbf16>, vector<8x8xf32> -> vector<8x8xf32>
    %361 = vector.extract_strided_slice %336 {offsets = [0, 8], sizes = [8, 8], strides = [1, 1]} : vector<16x96xf32> to vector<8x8xf32>
    %362 = arith.truncf %361 : vector<8x8xf32> to vector<8x8xbf16>
    %363 = vector.extract_strided_slice %336 {offsets = [0, 40], sizes = [8, 8], strides = [1, 1]} : vector<16x96xf32> to vector<8x8xf32>
    %364 = arith.truncf %363 : vector<8x8xf32> to vector<8x8xbf16>
    %365 = vector.extract_strided_slice %336 {offsets = [0, 72], sizes = [8, 8], strides = [1, 1]} : vector<16x96xf32> to vector<8x8xf32>
    %366 = arith.truncf %365 : vector<8x8xf32> to vector<8x8xbf16>
    %cst_102 = arith.constant dense<0.000000e+00> : vector<8x8xf32>
    %367 = tpu.matmul %362, %364, %cst_102 {dimension_numbers = #tpu.dot_dimension_numbers<[1], [1], [0], [0], [0, 0, 1, 0], [], []>} : vector<8x8xbf16>, vector<8x8xbf16>, vector<8x8xf32> -> vector<8x8xf32>
    %cst_103 = arith.constant 0.353553385 : f32
    %368 = vector.broadcast %cst_103 : f32 to vector<8x8xf32>
    %369 = arith.mulf %367, %368 : vector<8x8xf32>
    %370 = vector.broadcast %337 : vector<1x8xf32> to vector<8x8xf32>
    %371 = arith.addf %369, %370 : vector<8x8xf32>
    %cst_104 = arith.constant dense<0xFF800000> : vector<8xf32>
    %372 = vector.multi_reduction <maximumf>, %371, %cst_104 [1] : vector<8x8xf32> to vector<8xf32>
    %373 = vector.shape_cast %372 : vector<8xf32> to vector<8x1xf32>
    %374 = vector.broadcast %373 : vector<8x1xf32> to vector<8x8xf32>
    %375 = arith.subf %371, %374 : vector<8x8xf32>
    %376 = math.exp %375 : vector<8x8xf32>
    %cst_105 = arith.constant dense<0.000000e+00> : vector<8xf32>
    %377 = vector.multi_reduction <add>, %376, %cst_105 [1] : vector<8x8xf32> to vector<8xf32>
    %378 = vector.shape_cast %377 : vector<8xf32> to vector<8x1xf32>
    %379 = tpu.reciprocal %378 {approx = true} : vector<8x1xf32> -> vector<8x1xf32>
    %380 = vector.broadcast %379 : vector<8x1xf32> to vector<8x8xf32>
    %381 = arith.mulf %376, %380 : vector<8x8xf32>
    %382 = arith.truncf %381 : vector<8x8xf32> to vector<8x8xbf16>
    %cst_106 = arith.constant dense<0.000000e+00> : vector<8x8xf32>
    %383 = tpu.matmul %382, %366, %cst_106 {dimension_numbers = #tpu.dot_dimension_numbers<[1], [0], [0], [1], [0, 0, 1, 1], [], []>} : vector<8x8xbf16>, vector<8x8xbf16>, vector<8x8xf32> -> vector<8x8xf32>
    %384 = vector.extract_strided_slice %336 {offsets = [0, 16], sizes = [8, 8], strides = [1, 1]} : vector<16x96xf32> to vector<8x8xf32>
    %385 = arith.truncf %384 : vector<8x8xf32> to vector<8x8xbf16>
    %386 = vector.extract_strided_slice %336 {offsets = [0, 48], sizes = [8, 8], strides = [1, 1]} : vector<16x96xf32> to vector<8x8xf32>
    %387 = arith.truncf %386 : vector<8x8xf32> to vector<8x8xbf16>
    %388 = vector.extract_strided_slice %336 {offsets = [0, 80], sizes = [8, 8], strides = [1, 1]} : vector<16x96xf32> to vector<8x8xf32>
    %389 = arith.truncf %388 : vector<8x8xf32> to vector<8x8xbf16>
    %cst_107 = arith.constant dense<0.000000e+00> : vector<8x8xf32>
    %390 = tpu.matmul %385, %387, %cst_107 {dimension_numbers = #tpu.dot_dimension_numbers<[1], [1], [0], [0], [0, 0, 1, 0], [], []>} : vector<8x8xbf16>, vector<8x8xbf16>, vector<8x8xf32> -> vector<8x8xf32>
    %cst_108 = arith.constant 0.353553385 : f32
    %391 = vector.broadcast %cst_108 : f32 to vector<8x8xf32>
    %392 = arith.mulf %390, %391 : vector<8x8xf32>
    %393 = vector.broadcast %337 : vector<1x8xf32> to vector<8x8xf32>
    %394 = arith.addf %392, %393 : vector<8x8xf32>
    %cst_109 = arith.constant dense<0xFF800000> : vector<8xf32>
    %395 = vector.multi_reduction <maximumf>, %394, %cst_109 [1] : vector<8x8xf32> to vector<8xf32>
    %396 = vector.shape_cast %395 : vector<8xf32> to vector<8x1xf32>
    %397 = vector.broadcast %396 : vector<8x1xf32> to vector<8x8xf32>
    %398 = arith.subf %394, %397 : vector<8x8xf32>
    %399 = math.exp %398 : vector<8x8xf32>
    %cst_110 = arith.constant dense<0.000000e+00> : vector<8xf32>
    %400 = vector.multi_reduction <add>, %399, %cst_110 [1] : vector<8x8xf32> to vector<8xf32>
    %401 = vector.shape_cast %400 : vector<8xf32> to vector<8x1xf32>
    %402 = tpu.reciprocal %401 {approx = true} : vector<8x1xf32> -> vector<8x1xf32>
    %403 = vector.broadcast %402 : vector<8x1xf32> to vector<8x8xf32>
    %404 = arith.mulf %399, %403 : vector<8x8xf32>
    %405 = arith.truncf %404 : vector<8x8xf32> to vector<8x8xbf16>
    %cst_111 = arith.constant dense<0.000000e+00> : vector<8x8xf32>
    %406 = tpu.matmul %405, %389, %cst_111 {dimension_numbers = #tpu.dot_dimension_numbers<[1], [0], [0], [1], [0, 0, 1, 1], [], []>} : vector<8x8xbf16>, vector<8x8xbf16>, vector<8x8xf32> -> vector<8x8xf32>
    %407 = vector.extract_strided_slice %336 {offsets = [0, 24], sizes = [8, 8], strides = [1, 1]} : vector<16x96xf32> to vector<8x8xf32>
    %408 = arith.truncf %407 : vector<8x8xf32> to vector<8x8xbf16>
    %409 = vector.extract_strided_slice %336 {offsets = [0, 56], sizes = [8, 8], strides = [1, 1]} : vector<16x96xf32> to vector<8x8xf32>
    %410 = arith.truncf %409 : vector<8x8xf32> to vector<8x8xbf16>
    %411 = vector.extract_strided_slice %336 {offsets = [0, 88], sizes = [8, 8], strides = [1, 1]} : vector<16x96xf32> to vector<8x8xf32>
    %412 = arith.truncf %411 : vector<8x8xf32> to vector<8x8xbf16>
    %cst_112 = arith.constant dense<0.000000e+00> : vector<8x8xf32>
    %413 = tpu.matmul %408, %410, %cst_112 {dimension_numbers = #tpu.dot_dimension_numbers<[1], [1], [0], [0], [0, 0, 1, 0], [], []>} : vector<8x8xbf16>, vector<8x8xbf16>, vector<8x8xf32> -> vector<8x8xf32>
    %cst_113 = arith.constant 0.353553385 : f32
    %414 = vector.broadcast %cst_113 : f32 to vector<8x8xf32>
    %415 = arith.mulf %413, %414 : vector<8x8xf32>
    %416 = vector.broadcast %337 : vector<1x8xf32> to vector<8x8xf32>
    %417 = arith.addf %415, %416 : vector<8x8xf32>
    %cst_114 = arith.constant dense<0xFF800000> : vector<8xf32>
    %418 = vector.multi_reduction <maximumf>, %417, %cst_114 [1] : vector<8x8xf32> to vector<8xf32>
    %419 = vector.shape_cast %418 : vector<8xf32> to vector<8x1xf32>
    %420 = vector.broadcast %419 : vector<8x1xf32> to vector<8x8xf32>
    %421 = arith.subf %417, %420 : vector<8x8xf32>
    %422 = math.exp %421 : vector<8x8xf32>
    %cst_115 = arith.constant dense<0.000000e+00> : vector<8xf32>
    %423 = vector.multi_reduction <add>, %422, %cst_115 [1] : vector<8x8xf32> to vector<8xf32>
    %424 = vector.shape_cast %423 : vector<8xf32> to vector<8x1xf32>
    %425 = tpu.reciprocal %424 {approx = true} : vector<8x1xf32> -> vector<8x1xf32>
    %426 = vector.broadcast %425 : vector<8x1xf32> to vector<8x8xf32>
    %427 = arith.mulf %422, %426 : vector<8x8xf32>
    %428 = arith.truncf %427 : vector<8x8xf32> to vector<8x8xbf16>
    %cst_116 = arith.constant dense<0.000000e+00> : vector<8x8xf32>
    %429 = tpu.matmul %428, %412, %cst_116 {dimension_numbers = #tpu.dot_dimension_numbers<[1], [0], [0], [1], [0, 0, 1, 1], [], []>} : vector<8x8xbf16>, vector<8x8xbf16>, vector<8x8xf32> -> vector<8x8xf32>
    %430 = tpu.concatenate %360, %383, %406, %429 in 1 : vector<8x8xf32>, vector<8x8xf32>, vector<8x8xf32>, vector<8x8xf32> -> vector<8x32xf32>
    %431 = vector.extract_strided_slice %28 {offsets = [1, 0], sizes = [1, 8], strides = [1, 1]} : vector<2x8xf32> to vector<1x8xf32>
    %432 = vector.extract_strided_slice %336 {offsets = [8, 0], sizes = [8, 8], strides = [1, 1]} : vector<16x96xf32> to vector<8x8xf32>
    %433 = arith.truncf %432 : vector<8x8xf32> to vector<8x8xbf16>
    %434 = vector.extract_strided_slice %336 {offsets = [8, 32], sizes = [8, 8], strides = [1, 1]} : vector<16x96xf32> to vector<8x8xf32>
    %435 = arith.truncf %434 : vector<8x8xf32> to vector<8x8xbf16>
    %436 = vector.extract_strided_slice %336 {offsets = [8, 64], sizes = [8, 8], strides = [1, 1]} : vector<16x96xf32> to vector<8x8xf32>
    %437 = arith.truncf %436 : vector<8x8xf32> to vector<8x8xbf16>
    %cst_117 = arith.constant dense<0.000000e+00> : vector<8x8xf32>
    %438 = tpu.matmul %433, %435, %cst_117 {dimension_numbers = #tpu.dot_dimension_numbers<[1], [1], [0], [0], [0, 0, 1, 0], [], []>} : vector<8x8xbf16>, vector<8x8xbf16>, vector<8x8xf32> -> vector<8x8xf32>
    %cst_118 = arith.constant 0.353553385 : f32
    %439 = vector.broadcast %cst_118 : f32 to vector<8x8xf32>
    %440 = arith.mulf %438, %439 : vector<8x8xf32>
    %441 = vector.broadcast %431 : vector<1x8xf32> to vector<8x8xf32>
    %442 = arith.addf %440, %441 : vector<8x8xf32>
    %cst_119 = arith.constant dense<0xFF800000> : vector<8xf32>
    %443 = vector.multi_reduction <maximumf>, %442, %cst_119 [1] : vector<8x8xf32> to vector<8xf32>
    %444 = vector.shape_cast %443 : vector<8xf32> to vector<8x1xf32>
    %445 = vector.broadcast %444 : vector<8x1xf32> to vector<8x8xf32>
    %446 = arith.subf %442, %445 : vector<8x8xf32>
    %447 = math.exp %446 : vector<8x8xf32>
    %cst_120 = arith.constant dense<0.000000e+00> : vector<8xf32>
    %448 = vector.multi_reduction <add>, %447, %cst_120 [1] : vector<8x8xf32> to vector<8xf32>
    %449 = vector.shape_cast %448 : vector<8xf32> to vector<8x1xf32>
    %450 = tpu.reciprocal %449 {approx = true} : vector<8x1xf32> -> vector<8x1xf32>
    %451 = vector.broadcast %450 : vector<8x1xf32> to vector<8x8xf32>
    %452 = arith.mulf %447, %451 : vector<8x8xf32>
    %453 = arith.truncf %452 : vector<8x8xf32> to vector<8x8xbf16>
    %cst_121 = arith.constant dense<0.000000e+00> : vector<8x8xf32>
    %454 = tpu.matmul %453, %437, %cst_121 {dimension_numbers = #tpu.dot_dimension_numbers<[1], [0], [0], [1], [0, 0, 1, 1], [], []>} : vector<8x8xbf16>, vector<8x8xbf16>, vector<8x8xf32> -> vector<8x8xf32>
    %455 = vector.extract_strided_slice %336 {offsets = [8, 8], sizes = [8, 8], strides = [1, 1]} : vector<16x96xf32> to vector<8x8xf32>
    %456 = arith.truncf %455 : vector<8x8xf32> to vector<8x8xbf16>
    %457 = vector.extract_strided_slice %336 {offsets = [8, 40], sizes = [8, 8], strides = [1, 1]} : vector<16x96xf32> to vector<8x8xf32>
    %458 = arith.truncf %457 : vector<8x8xf32> to vector<8x8xbf16>
    %459 = vector.extract_strided_slice %336 {offsets = [8, 72], sizes = [8, 8], strides = [1, 1]} : vector<16x96xf32> to vector<8x8xf32>
    %460 = arith.truncf %459 : vector<8x8xf32> to vector<8x8xbf16>
    %cst_122 = arith.constant dense<0.000000e+00> : vector<8x8xf32>
    %461 = tpu.matmul %456, %458, %cst_122 {dimension_numbers = #tpu.dot_dimension_numbers<[1], [1], [0], [0], [0, 0, 1, 0], [], []>} : vector<8x8xbf16>, vector<8x8xbf16>, vector<8x8xf32> -> vector<8x8xf32>
    %cst_123 = arith.constant 0.353553385 : f32
    %462 = vector.broadcast %cst_123 : f32 to vector<8x8xf32>
    %463 = arith.mulf %461, %462 : vector<8x8xf32>
    %464 = vector.broadcast %431 : vector<1x8xf32> to vector<8x8xf32>
    %465 = arith.addf %463, %464 : vector<8x8xf32>
    %cst_124 = arith.constant dense<0xFF800000> : vector<8xf32>
    %466 = vector.multi_reduction <maximumf>, %465, %cst_124 [1] : vector<8x8xf32> to vector<8xf32>
    %467 = vector.shape_cast %466 : vector<8xf32> to vector<8x1xf32>
    %468 = vector.broadcast %467 : vector<8x1xf32> to vector<8x8xf32>
    %469 = arith.subf %465, %468 : vector<8x8xf32>
    %470 = math.exp %469 : vector<8x8xf32>
    %cst_125 = arith.constant dense<0.000000e+00> : vector<8xf32>
    %471 = vector.multi_reduction <add>, %470, %cst_125 [1] : vector<8x8xf32> to vector<8xf32>
    %472 = vector.shape_cast %471 : vector<8xf32> to vector<8x1xf32>
    %473 = tpu.reciprocal %472 {approx = true} : vector<8x1xf32> -> vector<8x1xf32>
    %474 = vector.broadcast %473 : vector<8x1xf32> to vector<8x8xf32>
    %475 = arith.mulf %470, %474 : vector<8x8xf32>
    %476 = arith.truncf %475 : vector<8x8xf32> to vector<8x8xbf16>
    %cst_126 = arith.constant dense<0.000000e+00> : vector<8x8xf32>
    %477 = tpu.matmul %476, %460, %cst_126 {dimension_numbers = #tpu.dot_dimension_numbers<[1], [0], [0], [1], [0, 0, 1, 1], [], []>} : vector<8x8xbf16>, vector<8x8xbf16>, vector<8x8xf32> -> vector<8x8xf32>
    %478 = vector.extract_strided_slice %336 {offsets = [8, 16], sizes = [8, 8], strides = [1, 1]} : vector<16x96xf32> to vector<8x8xf32>
    %479 = arith.truncf %478 : vector<8x8xf32> to vector<8x8xbf16>
    %480 = vector.extract_strided_slice %336 {offsets = [8, 48], sizes = [8, 8], strides = [1, 1]} : vector<16x96xf32> to vector<8x8xf32>
    %481 = arith.truncf %480 : vector<8x8xf32> to vector<8x8xbf16>
    %482 = vector.extract_strided_slice %336 {offsets = [8, 80], sizes = [8, 8], strides = [1, 1]} : vector<16x96xf32> to vector<8x8xf32>
    %483 = arith.truncf %482 : vector<8x8xf32> to vector<8x8xbf16>
    %cst_127 = arith.constant dense<0.000000e+00> : vector<8x8xf32>
    %484 = tpu.matmul %479, %481, %cst_127 {dimension_numbers = #tpu.dot_dimension_numbers<[1], [1], [0], [0], [0, 0, 1, 0], [], []>} : vector<8x8xbf16>, vector<8x8xbf16>, vector<8x8xf32> -> vector<8x8xf32>
    %cst_128 = arith.constant 0.353553385 : f32
    %485 = vector.broadcast %cst_128 : f32 to vector<8x8xf32>
    %486 = arith.mulf %484, %485 : vector<8x8xf32>
    %487 = vector.broadcast %431 : vector<1x8xf32> to vector<8x8xf32>
    %488 = arith.addf %486, %487 : vector<8x8xf32>
    %cst_129 = arith.constant dense<0xFF800000> : vector<8xf32>
    %489 = vector.multi_reduction <maximumf>, %488, %cst_129 [1] : vector<8x8xf32> to vector<8xf32>
    %490 = vector.shape_cast %489 : vector<8xf32> to vector<8x1xf32>
    %491 = vector.broadcast %490 : vector<8x1xf32> to vector<8x8xf32>
    %492 = arith.subf %488, %491 : vector<8x8xf32>
    %493 = math.exp %492 : vector<8x8xf32>
    %cst_130 = arith.constant dense<0.000000e+00> : vector<8xf32>
    %494 = vector.multi_reduction <add>, %493, %cst_130 [1] : vector<8x8xf32> to vector<8xf32>
    %495 = vector.shape_cast %494 : vector<8xf32> to vector<8x1xf32>
    %496 = tpu.reciprocal %495 {approx = true} : vector<8x1xf32> -> vector<8x1xf32>
    %497 = vector.broadcast %496 : vector<8x1xf32> to vector<8x8xf32>
    %498 = arith.mulf %493, %497 : vector<8x8xf32>
    %499 = arith.truncf %498 : vector<8x8xf32> to vector<8x8xbf16>
    %cst_131 = arith.constant dense<0.000000e+00> : vector<8x8xf32>
    %500 = tpu.matmul %499, %483, %cst_131 {dimension_numbers = #tpu.dot_dimension_numbers<[1], [0], [0], [1], [0, 0, 1, 1], [], []>} : vector<8x8xbf16>, vector<8x8xbf16>, vector<8x8xf32> -> vector<8x8xf32>
    %501 = vector.extract_strided_slice %336 {offsets = [8, 24], sizes = [8, 8], strides = [1, 1]} : vector<16x96xf32> to vector<8x8xf32>
    %502 = arith.truncf %501 : vector<8x8xf32> to vector<8x8xbf16>
    %503 = vector.extract_strided_slice %336 {offsets = [8, 56], sizes = [8, 8], strides = [1, 1]} : vector<16x96xf32> to vector<8x8xf32>
    %504 = arith.truncf %503 : vector<8x8xf32> to vector<8x8xbf16>
    %505 = vector.extract_strided_slice %336 {offsets = [8, 88], sizes = [8, 8], strides = [1, 1]} : vector<16x96xf32> to vector<8x8xf32>
    %506 = arith.truncf %505 : vector<8x8xf32> to vector<8x8xbf16>
    %cst_132 = arith.constant dense<0.000000e+00> : vector<8x8xf32>
    %507 = tpu.matmul %502, %504, %cst_132 {dimension_numbers = #tpu.dot_dimension_numbers<[1], [1], [0], [0], [0, 0, 1, 0], [], []>} : vector<8x8xbf16>, vector<8x8xbf16>, vector<8x8xf32> -> vector<8x8xf32>
    %cst_133 = arith.constant 0.353553385 : f32
    %508 = vector.broadcast %cst_133 : f32 to vector<8x8xf32>
    %509 = arith.mulf %507, %508 : vector<8x8xf32>
    %510 = vector.broadcast %431 : vector<1x8xf32> to vector<8x8xf32>
    %511 = arith.addf %509, %510 : vector<8x8xf32>
    %cst_134 = arith.constant dense<0xFF800000> : vector<8xf32>
    %512 = vector.multi_reduction <maximumf>, %511, %cst_134 [1] : vector<8x8xf32> to vector<8xf32>
    %513 = vector.shape_cast %512 : vector<8xf32> to vector<8x1xf32>
    %514 = vector.broadcast %513 : vector<8x1xf32> to vector<8x8xf32>
    %515 = arith.subf %511, %514 : vector<8x8xf32>
    %516 = math.exp %515 : vector<8x8xf32>
    %cst_135 = arith.constant dense<0.000000e+00> : vector<8xf32>
    %517 = vector.multi_reduction <add>, %516, %cst_135 [1] : vector<8x8xf32> to vector<8xf32>
    %518 = vector.shape_cast %517 : vector<8xf32> to vector<8x1xf32>
    %519 = tpu.reciprocal %518 {approx = true} : vector<8x1xf32> -> vector<8x1xf32>
    %520 = vector.broadcast %519 : vector<8x1xf32> to vector<8x8xf32>
    %521 = arith.mulf %516, %520 : vector<8x8xf32>
    %522 = arith.truncf %521 : vector<8x8xf32> to vector<8x8xbf16>
    %cst_136 = arith.constant dense<0.000000e+00> : vector<8x8xf32>
    %523 = tpu.matmul %522, %506, %cst_136 {dimension_numbers = #tpu.dot_dimension_numbers<[1], [0], [0], [1], [0, 0, 1, 1], [], []>} : vector<8x8xbf16>, vector<8x8xbf16>, vector<8x8xf32> -> vector<8x8xf32>
    %524 = tpu.concatenate %454, %477, %500, %523 in 1 : vector<8x8xf32>, vector<8x8xf32>, vector<8x8xf32>, vector<8x8xf32> -> vector<8x32xf32>
    %525 = tpu.concatenate %430, %524 in 0 : vector<8x32xf32>, vector<8x32xf32> -> vector<16x32xf32>
    %526 = arith.truncf %525 : vector<16x32xf32> to vector<16x32xbf16>
    %cst_137 = arith.constant dense<0.000000e+00> : vector<16x32xf32>
    %527 = tpu.matmul %526, %318, %cst_137 {dimension_numbers = #tpu.dot_dimension_numbers<[1], [0], [0], [1], [0, 0, 1, 1], [], []>} : vector<16x32xbf16>, vector<32x32xbf16>, vector<16x32xf32> -> vector<16x32xf32>
    %528 = vector.broadcast %326 : vector<1x32xf32> to vector<16x32xf32>
    %529 = arith.addf %527, %528 : vector<16x32xf32>
    %530 = arith.addf %314, %529 : vector<16x32xf32>
    %cst_138 = arith.constant dense<0.000000e+00> : vector<16xf32>
    %531 = vector.multi_reduction <add>, %530, %cst_138 [1] : vector<16x32xf32> to vector<16xf32>
    %532 = vector.shape_cast %531 : vector<16xf32> to vector<16x1xf32>
    %cst_139 = arith.constant 3.200000e+01 : f32
    %533 = vector.broadcast %cst_139 : f32 to vector<16x1xf32>
    %534 = arith.divf %532, %533 : vector<16x1xf32>
    %535 = vector.broadcast %534 : vector<16x1xf32> to vector<16x32xf32>
    %536 = arith.subf %530, %535 : vector<16x32xf32>
    %537 = vector.broadcast %534 : vector<16x1xf32> to vector<16x32xf32>
    %538 = arith.subf %530, %537 : vector<16x32xf32>
    %539 = arith.mulf %536, %538 : vector<16x32xf32>
    %cst_140 = arith.constant dense<0.000000e+00> : vector<16xf32>
    %540 = vector.multi_reduction <add>, %539, %cst_140 [1] : vector<16x32xf32> to vector<16xf32>
    %541 = vector.shape_cast %540 : vector<16xf32> to vector<16x1xf32>
    %cst_141 = arith.constant 3.200000e+01 : f32
    %542 = vector.broadcast %cst_141 : f32 to vector<16x1xf32>
    %543 = arith.divf %541, %542 : vector<16x1xf32>
    %544 = vector.broadcast %534 : vector<16x1xf32> to vector<16x32xf32>
    %545 = arith.subf %530, %544 : vector<16x32xf32>
    %cst_142 = arith.constant 9.99999996E-13 : f32
    %546 = vector.broadcast %cst_142 : f32 to vector<16x1xf32>
    %547 = arith.addf %543, %546 : vector<16x1xf32>
    %548 = math.rsqrt %547 : vector<16x1xf32>
    %549 = vector.broadcast %548 : vector<16x1xf32> to vector<16x32xf32>
    %550 = arith.mulf %545, %549 : vector<16x32xf32>
    %551 = vector.broadcast %327 : vector<1x32xf32> to vector<16x32xf32>
    %552 = arith.mulf %550, %551 : vector<16x32xf32>
    %553 = vector.broadcast %328 : vector<1x32xf32> to vector<16x32xf32>
    %554 = arith.addf %552, %553 : vector<16x32xf32>
    %555 = arith.truncf %554 : vector<16x32xf32> to vector<16x32xbf16>
    %cst_143 = arith.constant dense<0.000000e+00> : vector<16x64xf32>
    %556 = tpu.matmul %555, %320, %cst_143 {dimension_numbers = #tpu.dot_dimension_numbers<[1], [0], [0], [1], [0, 0, 1, 1], [], []>} : vector<16x32xbf16>, vector<32x64xbf16>, vector<16x64xf32> -> vector<16x64xf32>
    %557 = vector.broadcast %329 : vector<1x64xf32> to vector<16x64xf32>
    %558 = arith.addf %556, %557 : vector<16x64xf32>
    %cst_144 = arith.constant 5.000000e-01 : f32
    %559 = vector.broadcast %cst_144 : f32 to vector<16x64xf32>
    %560 = arith.mulf %559, %558 : vector<16x64xf32>
    %cst_145 = arith.constant 4.471500e-02 : f32
    %561 = vector.broadcast %cst_145 : f32 to vector<16x64xf32>
    %562 = arith.mulf %561, %558 : vector<16x64xf32>
    %563 = arith.mulf %562, %558 : vector<16x64xf32>
    %564 = arith.mulf %563, %558 : vector<16x64xf32>
    %565 = arith.addf %558, %564 : vector<16x64xf32>
    %cst_146 = arith.constant 0.797884583 : f32
    %566 = vector.broadcast %cst_146 : f32 to vector<16x64xf32>
    %567 = arith.mulf %566, %565 : vector<16x64xf32>
    %568 = math.tanh %567 : vector<16x64xf32>
    %cst_147 = arith.constant 1.000000e+00 : f32
    %569 = vector.broadcast %cst_147 : f32 to vector<16x64xf32>
    %570 = arith.addf %569, %568 : vector<16x64xf32>
    %571 = arith.mulf %560, %570 : vector<16x64xf32>
    %572 = arith.truncf %571 : vector<16x64xf32> to vector<16x64xbf16>
    %cst_148 = arith.constant dense<0.000000e+00> : vector<16x32xf32>
    %573 = tpu.matmul %572, %322, %cst_148 {dimension_numbers = #tpu.dot_dimension_numbers<[1], [0], [0], [1], [0, 0, 1, 1], [], []>} : vector<16x64xbf16>, vector<64x32xbf16>, vector<16x32xf32> -> vector<16x32xf32>
    %574 = vector.broadcast %330 : vector<1x32xf32> to vector<16x32xf32>
    %575 = arith.addf %573, %574 : vector<16x32xf32>
    %576 = arith.addf %554, %575 : vector<16x32xf32>
    %cst_149 = arith.constant dense<0.000000e+00> : vector<16xf32>
    %577 = vector.multi_reduction <add>, %576, %cst_149 [1] : vector<16x32xf32> to vector<16xf32>
    %578 = vector.shape_cast %577 : vector<16xf32> to vector<16x1xf32>
    %cst_150 = arith.constant 3.200000e+01 : f32
    %579 = vector.broadcast %cst_150 : f32 to vector<16x1xf32>
    %580 = arith.divf %578, %579 : vector<16x1xf32>
    %581 = vector.broadcast %580 : vector<16x1xf32> to vector<16x32xf32>
    %582 = arith.subf %576, %581 : vector<16x32xf32>
    %583 = vector.broadcast %580 : vector<16x1xf32> to vector<16x32xf32>
    %584 = arith.subf %576, %583 : vector<16x32xf32>
    %585 = arith.mulf %582, %584 : vector<16x32xf32>
    %cst_151 = arith.constant dense<0.000000e+00> : vector<16xf32>
    %586 = vector.multi_reduction <add>, %585, %cst_151 [1] : vector<16x32xf32> to vector<16xf32>
    %587 = vector.shape_cast %586 : vector<16xf32> to vector<16x1xf32>
    %cst_152 = arith.constant 3.200000e+01 : f32
    %588 = vector.broadcast %cst_152 : f32 to vector<16x1xf32>
    %589 = arith.divf %587, %588 : vector<16x1xf32>
    %590 = vector.broadcast %580 : vector<16x1xf32> to vector<16x32xf32>
    %591 = arith.subf %576, %590 : vector<16x32xf32>
    %cst_153 = arith.constant 9.99999996E-13 : f32
    %592 = vector.broadcast %cst_153 : f32 to vector<16x1xf32>
    %593 = arith.addf %589, %592 : vector<16x1xf32>
    %594 = math.rsqrt %593 : vector<16x1xf32>
    %595 = vector.broadcast %594 : vector<16x1xf32> to vector<16x32xf32>
    %596 = arith.mulf %591, %595 : vector<16x32xf32>
    %597 = vector.broadcast %331 : vector<1x32xf32> to vector<16x32xf32>
    %598 = arith.mulf %596, %597 : vector<16x32xf32>
    %599 = vector.broadcast %332 : vector<1x32xf32> to vector<16x32xf32>
    %600 = arith.addf %598, %599 : vector<16x32xf32>
    %601 = vector.extract_strided_slice %0 {offsets = [2, 0], sizes = [1, 32], strides = [1, 1]} : vector<8x128xf32> to vector<1x32xf32>
    %602 = vector.extract_strided_slice %0 {offsets = [3, 0], sizes = [1, 32], strides = [1, 1]} : vector<8x128xf32> to vector<1x32xf32>
    %603 = vector.extract_strided_slice %0 {offsets = [4, 0], sizes = [1, 32], strides = [1, 1]} : vector<8x128xf32> to vector<1x32xf32>
    %604 = vector.extract_strided_slice %0 {offsets = [5, 0], sizes = [1, 128], strides = [1, 1]} : vector<8x128xf32> to vector<1x128xf32>
    %605 = vector.extract_strided_slice %0 {offsets = [6, 0], sizes = [1, 128], strides = [1, 1]} : vector<8x128xf32> to vector<1x128xf32>
    %606 = arith.truncf %600 : vector<16x32xf32> to vector<16x32xbf16>
    %c0_154 = arith.constant 0 : index
    %c0_155 = arith.constant 0 : index
    %607 = vector.load %arg8[%c0_154, %c0_155] : memref<32x32xbf16, #tpu.memory_space<vmem>>, vector<32x32xbf16>
    %cst_156 = arith.constant dense<0.000000e+00> : vector<16x32xf32>
    %608 = tpu.matmul %606, %607, %cst_156 {dimension_numbers = #tpu.dot_dimension_numbers<[1], [0], [0], [1], [0, 0, 1, 1], [], []>} : vector<16x32xbf16>, vector<32x32xbf16>, vector<16x32xf32> -> vector<16x32xf32>
    %609 = vector.broadcast %601 : vector<1x32xf32> to vector<16x32xf32>
    %610 = arith.addf %608, %609 : vector<16x32xf32>
    %cst_157 = arith.constant 5.000000e-01 : f32
    %611 = vector.broadcast %cst_157 : f32 to vector<16x32xf32>
    %612 = arith.mulf %611, %610 : vector<16x32xf32>
    %cst_158 = arith.constant 4.471500e-02 : f32
    %613 = vector.broadcast %cst_158 : f32 to vector<16x32xf32>
    %614 = arith.mulf %613, %610 : vector<16x32xf32>
    %615 = arith.mulf %614, %610 : vector<16x32xf32>
    %616 = arith.mulf %615, %610 : vector<16x32xf32>
    %617 = arith.addf %610, %616 : vector<16x32xf32>
    %cst_159 = arith.constant 0.797884583 : f32
    %618 = vector.broadcast %cst_159 : f32 to vector<16x32xf32>
    %619 = arith.mulf %618, %617 : vector<16x32xf32>
    %620 = math.tanh %619 : vector<16x32xf32>
    %cst_160 = arith.constant 1.000000e+00 : f32
    %621 = vector.broadcast %cst_160 : f32 to vector<16x32xf32>
    %622 = arith.addf %621, %620 : vector<16x32xf32>
    %623 = arith.mulf %612, %622 : vector<16x32xf32>
    %cst_161 = arith.constant dense<0.000000e+00> : vector<16xf32>
    %624 = vector.multi_reduction <add>, %623, %cst_161 [1] : vector<16x32xf32> to vector<16xf32>
    %625 = vector.shape_cast %624 : vector<16xf32> to vector<16x1xf32>
    %cst_162 = arith.constant 3.200000e+01 : f32
    %626 = vector.broadcast %cst_162 : f32 to vector<16x1xf32>
    %627 = arith.divf %625, %626 : vector<16x1xf32>
    %628 = vector.broadcast %627 : vector<16x1xf32> to vector<16x32xf32>
    %629 = arith.subf %623, %628 : vector<16x32xf32>
    %630 = vector.broadcast %627 : vector<16x1xf32> to vector<16x32xf32>
    %631 = arith.subf %623, %630 : vector<16x32xf32>
    %632 = arith.mulf %629, %631 : vector<16x32xf32>
    %cst_163 = arith.constant dense<0.000000e+00> : vector<16xf32>
    %633 = vector.multi_reduction <add>, %632, %cst_163 [1] : vector<16x32xf32> to vector<16xf32>
    %634 = vector.shape_cast %633 : vector<16xf32> to vector<16x1xf32>
    %cst_164 = arith.constant 3.200000e+01 : f32
    %635 = vector.broadcast %cst_164 : f32 to vector<16x1xf32>
    %636 = arith.divf %634, %635 : vector<16x1xf32>
    %637 = vector.broadcast %627 : vector<16x1xf32> to vector<16x32xf32>
    %638 = arith.subf %623, %637 : vector<16x32xf32>
    %cst_165 = arith.constant 9.99999996E-13 : f32
    %639 = vector.broadcast %cst_165 : f32 to vector<16x1xf32>
    %640 = arith.addf %636, %639 : vector<16x1xf32>
    %641 = math.rsqrt %640 : vector<16x1xf32>
    %642 = vector.broadcast %641 : vector<16x1xf32> to vector<16x32xf32>
    %643 = arith.mulf %638, %642 : vector<16x32xf32>
    %644 = vector.broadcast %602 : vector<1x32xf32> to vector<16x32xf32>
    %645 = arith.mulf %643, %644 : vector<16x32xf32>
    %646 = vector.broadcast %603 : vector<1x32xf32> to vector<16x32xf32>
    %647 = arith.addf %645, %646 : vector<16x32xf32>
    %648 = arith.truncf %647 : vector<16x32xf32> to vector<16x32xbf16>
    %c0_166 = arith.constant 0 : index
    %c0_167 = arith.constant 0 : index
    %c0_168 = arith.constant 0 : index
    %649 = vector.load %arg9[%c0_166, %c0_167, %c0_168] : memref<2x32x128xbf16, #tpu.memory_space<vmem>>, vector<1x32x128xbf16>
    %650 = vector.shape_cast %649 : vector<1x32x128xbf16> to vector<32x128xbf16>
    %cst_169 = arith.constant dense<0.000000e+00> : vector<16x128xf32>
    %651 = tpu.matmul %648, %650, %cst_169 {dimension_numbers = #tpu.dot_dimension_numbers<[1], [0], [0], [1], [0, 0, 1, 1], [], []>} : vector<16x32xbf16>, vector<32x128xbf16>, vector<16x128xf32> -> vector<16x128xf32>
    %652 = vector.broadcast %604 : vector<1x128xf32> to vector<16x128xf32>
    %653 = arith.addf %651, %652 : vector<16x128xf32>
    %c0_170 = arith.constant 0 : index
    %c0_171 = arith.constant 0 : index
    %654 = vector.load %arg11[%c0_170, %c0_171] : memref<16x128xf32, #tpu.memory_space<vmem>>, vector<16x128xf32>
    tpu.vector_store %arg11[%c0_170, %c0_171], %653 {strides = array<i32>} : memref<16x128xf32, #tpu.memory_space<vmem>>, vector<16x128xf32>,
    %655 = vector.extract_strided_slice %600 {offsets = [0, 0], sizes = [1, 32], strides = [1, 1]} : vector<16x32xf32> to vector<1x32xf32>
    %656 = vector.extract_strided_slice %600 {offsets = [8, 0], sizes = [1, 32], strides = [1, 1]} : vector<16x32xf32> to vector<1x32xf32>
    %657 = tpu.concatenate %655, %656 in 0 : vector<1x32xf32>, vector<1x32xf32> -> vector<2x32xf32>
    %658 = arith.truncf %657 : vector<2x32xf32> to vector<2x32xbf16>
    %c1_172 = arith.constant 1 : index
    %c0_173 = arith.constant 0 : index
    %c0_174 = arith.constant 0 : index
    %659 = vector.load %arg9[%c1_172, %c0_173, %c0_174] : memref<2x32x128xbf16, #tpu.memory_space<vmem>>, vector<1x32x128xbf16>
    %660 = vector.shape_cast %659 : vector<1x32x128xbf16> to vector<32x128xbf16>
    %cst_175 = arith.constant dense<0.000000e+00> : vector<2x128xf32>
    %661 = tpu.matmul %658, %660, %cst_175 {dimension_numbers = #tpu.dot_dimension_numbers<[1], [0], [0], [1], [0, 0, 1, 1], [], []>} : vector<2x32xbf16>, vector<32x128xbf16>, vector<2x128xf32> -> vector<2x128xf32>
    %662 = vector.broadcast %605 : vector<1x128xf32> to vector<2x128xf32>
    %663 = arith.addf %661, %662 : vector<2x128xf32>
    %c0_176 = arith.constant 0 : index
    %c0_177 = arith.constant 0 : index
    %664 = vector.load %arg12[%c0_176, %c0_177] : memref<2x128xf32, #tpu.memory_space<vmem>>, vector<2x128xf32>
    tpu.vector_store %arg12[%c0_176, %c0_177], %663 {strides = array<i32>} : memref<2x128xf32, #tpu.memory_space<vmem>>, vector<2x128xf32>,
    %c0_178 = arith.constant 0 : index
    %c0_179 = arith.constant 0 : index
    %665 = vector.load %arg2[%c0_178, %c0_179] : memref<16x1xi32, #tpu.memory_space<vmem>>, vector<16x1xi32>
    %666 = tpu.iota {dimensions = array<i32: 1>} : vector<16x128xi32>
    %c64_i32 = arith.constant 64 : i32
    %667 = vector.broadcast %c64_i32 : i32 to vector<16x128xi32>
    %668 = arith.cmpi slt, %666, %667 : vector<16x128xi32>
    %cst_180 = arith.constant -1.000000e+30 : f32
    %669 = vector.broadcast %cst_180 : f32 to vector<16x128xf32>
    %670 = arith.select %668, %653, %669 : vector<16x128xi1>, vector<16x128xf32>
    %cst_181 = arith.constant dense<0xFF800000> : vector<16xf32>
    %671 = vector.multi_reduction <maximumf>, %670, %cst_181 [1] : vector<16x128xf32> to vector<16xf32>
    %672 = vector.shape_cast %671 : vector<16xf32> to vector<16x1xf32>
    %673 = vector.broadcast %672 : vector<16x1xf32> to vector<16x128xf32>
    %674 = arith.subf %670, %673 : vector<16x128xf32>
    %675 = math.exp %674 : vector<16x128xf32>
    %cst_182 = arith.constant dense<0.000000e+00> : vector<16xf32>
    %676 = vector.multi_reduction <add>, %675, %cst_182 [1] : vector<16x128xf32> to vector<16xf32>
    %677 = vector.shape_cast %676 : vector<16xf32> to vector<16x1xf32>
    %678 = math.log %677 : vector<16x1xf32>
    %679 = arith.addf %678, %672 : vector<16x1xf32>
    %680 = vector.broadcast %665 : vector<16x1xi32> to vector<16x128xi32>
    %681 = arith.cmpi eq, %666, %680 : vector<16x128xi32>
    %cst_183 = arith.constant 0.000000e+00 : f32
    %682 = vector.broadcast %cst_183 : f32 to vector<16x128xf32>
    %683 = arith.select %681, %653, %682 : vector<16x128xi1>, vector<16x128xf32>
    %cst_184 = arith.constant dense<0.000000e+00> : vector<16xf32>
    %684 = vector.multi_reduction <add>, %683, %cst_184 [1] : vector<16x128xf32> to vector<16xf32>
    %685 = vector.shape_cast %684 : vector<16xf32> to vector<16x1xf32>
    %c-100_i32 = arith.constant -100 : i32
    %686 = vector.broadcast %c-100_i32 : i32 to vector<16x1xi32>
    %687 = arith.cmpi ne, %665, %686 : vector<16x1xi32>
    %688 = arith.extui %687 : vector<16x1xi1> to vector<16x1xi32>
    %689 = arith.sitofp %688 : vector<16x1xi32> to vector<16x1xf32>
    %690 = arith.subf %679, %685 : vector<16x1xf32>
    %691 = arith.mulf %690, %689 : vector<16x1xf32>
    %cst_185 = arith.constant dense<0.000000e+00> : vector<1xf32>
    %692 = vector.multi_reduction <add>, %691, %cst_185 [0] : vector<16x1xf32> to vector<1xf32>
    %693 = vector.shape_cast %692 : vector<1xf32> to vector<1x1xf32>
    %c0_186 = arith.constant 0 : index
    %c0_187 = arith.constant 0 : index
    %694 = vector.load %arg13[%c0_186, %c0_187] : memref<1x1xf32, #tpu.memory_space<vmem>>, vector<1x1xf32>
    tpu.vector_store %arg13[%c0_186, %c0_187], %693 {strides = array<i32>} : memref<1x1xf32, #tpu.memory_space<vmem>>, vector<1x1xf32>,
    %cst_188 = arith.constant dense<0.000000e+00> : vector<1xf32>
    %695 = vector.multi_reduction <add>, %689, %cst_188 [0] : vector<16x1xf32> to vector<1xf32>
    %696 = vector.shape_cast %695 : vector<1xf32> to vector<1x1xf32>
    %c0_189 = arith.constant 0 : index
    %c0_190 = arith.constant 0 : index
    %697 = vector.load %arg14[%c0_189, %c0_190] : memref<1x1xf32, #tpu.memory_space<vmem>>, vector<1x1xf32>
    tpu.vector_store %arg14[%c0_189, %c0_190], %696 {strides = array<i32>} : memref<1x1xf32, #tpu.memory_space<vmem>>, vector<1x1xf32>,
    return
  }
}

</mosaic_0001>

<llo_original>
// kernel: uhcbert_forward.1
$region0: #{uhcbert_forward.1}
  #allocation0 [shape = 'u32[]', space=smem, size = 0x4, offset = 0x4, fixed_abs, tag = 'smem constant byte address 0x4 - core index']
  #allocation1 [shape = 'u32[72,128]{1,0:T(1,128)}', space=vmem, size = 0x9000, scoped, tag = 'internal scratch']
  %s0 = inlined_call_operand.vmem [shape: f32[16,32], index: 0, kind: input, shape index: {}]
  %s1 = inlined_call_operand.vmem [shape: f32[2,8], index: 1, kind: input, shape index: {}]
  %s2 = inlined_call_operand.vmem [shape: s32[16,1], index: 2, kind: input, shape index: {}]
  %s3 = inlined_call_operand.vmem [shape: bf16[2,32,96], index: 3, kind: input, shape index: {}]
  %s4 = inlined_call_operand.vmem [shape: bf16[2,32,32], index: 4, kind: input, shape index: {}]
  %s5 = inlined_call_operand.vmem [shape: bf16[2,32,64], index: 5, kind: input, shape index: {}]
  %s6 = inlined_call_operand.vmem [shape: bf16[2,64,32], index: 6, kind: input, shape index: {}]
  %s7 = inlined_call_operand.vmem [shape: f32[2,8,128], index: 7, kind: input, shape index: {}]
  %s8 = inlined_call_operand.vmem [shape: bf16[32,32], index: 8, kind: input, shape index: {}]
  %s9 = inlined_call_operand.vmem [shape: bf16[2,32,128], index: 9, kind: input, shape index: {}]
  %s10 = inlined_call_operand.vmem [shape: f32[8,128], index: 10, kind: input, shape index: {}]
  %s11 = inlined_call_operand.vmem [shape: f32[16,128], index: 11, kind: output, shape index: {0}]
  %s12 = inlined_call_operand.vmem [shape: f32[2,128], index: 12, kind: output, shape index: {1}]
  %s13 = inlined_call_operand.hbm [shape: f32[1,1], index: 13, kind: output, shape index: {2}]
  %s14 = inlined_call_operand.hbm [shape: f32[1,1], index: 14, kind: output, shape index: {3}]
  %15 = xla_tuple %s11, %s12, %s13, %s14
  %s16 = sld [smem:[#allocation0]]
  $region78: #{uhcbert_forward.1} parent=0
    _
  %s18 = ssub.s32 1, %s16
  %s19 = scalar_select 0, %s18, %s16
  $region1: #{uhcbert_forward.1} parent=0
    #allocation2 [shape = 'u8[512]{0}', space=vmem, size = 0x400, scoped, tag = 'output window, operand 2, single buffered']
    #allocation3 [shape = 's32[1]{0}', space=sflag, size = 0x4, scoped, tag = 'scoped memory for uhcbert_forward.1']
    #allocation4 [shape = 'u8[512]{0}', space=vmem, size = 0x400, scoped, tag = 'output window, operand 3, single buffered']
    #allocation5 [shape = 's32[1]{0}', space=sflag, size = 0x4, scoped, tag = 'scoped memory for uhcbert_forward.1']
    %20 = vsyncpa [#allocation3], 0
    %21 = vsyncpa [#allocation5], 0
    // Predicated region
    $region2: #{uhcbert_forward.1} parent=1 // pred_check
      _
    $region3: #{uhcbert_forward.1} parent=1 // pred_check_branch
      %23 = sbr.rel (0) target = $region5
    $region4: #{uhcbert_forward.1} parent=1 // pred_region
      _
    $region5: #{uhcbert_forward.1} parent=1 // pred_fallthru
      _
    // Predicated region
    $region6: #{uhcbert_forward.1} parent=1 // pred_check
      _
    $region7: #{uhcbert_forward.1} parent=1 // pred_check_branch
      %25 = sbr.rel (0) target = $region9
    $region8: #{uhcbert_forward.1} parent=1 // pred_region
      _
    $region9: #{uhcbert_forward.1} parent=1 // pred_fallthru
      _
    // Predicated region
    $region10: #{uhcbert_forward.1} parent=1 // pred_check
      _
    $region11: #{uhcbert_forward.1} parent=1 // pred_check_branch
      %27 = sbr.rel (0) target = $region13
    $region12: #{uhcbert_forward.1} parent=1 // pred_region
      _
    $region13: #{uhcbert_forward.1} parent=1 // pred_fallthru
      _
    // Predicated region
    $region14: #{uhcbert_forward.1} parent=1 // pred_check
      _
    $region15: #{uhcbert_forward.1} parent=1 // pred_check_branch
      %29 = sbr.rel (0) target = $region17
    $region16: #{uhcbert_forward.1} parent=1 // pred_region
      _
    $region17: #{uhcbert_forward.1} parent=1 // pred_fallthru
      _
    // Predicated region
    $region18: #{uhcbert_forward.1} parent=1 // pred_check
      _
    $region19: #{uhcbert_forward.1} parent=1 // pred_check_branch
      %31 = sbr.rel (0) target = $region21
    $region20: #{uhcbert_forward.1} parent=1 // pred_region
      _
    $region21: #{uhcbert_forward.1} parent=1 // pred_fallthru
      _
    // Predicated region
    $region22: #{uhcbert_forward.1} parent=1 // pred_check
      _
    $region23: #{uhcbert_forward.1} parent=1 // pred_check_branch
      %33 = sbr.rel (0) target = $region25
    $region24: #{uhcbert_forward.1} parent=1 // pred_region
      _
    $region25: #{uhcbert_forward.1} parent=1 // pred_fallthru
      _
    // Predicated region
    $region26: #{uhcbert_forward.1} parent=1 // pred_check
      _
    $region27: #{uhcbert_forward.1} parent=1 // pred_check_branch
      %35 = sbr.rel (0) target = $region29
    $region28: #{uhcbert_forward.1} parent=1 // pred_region
      _
    $region29: #{uhcbert_forward.1} parent=1 // pred_fallthru
      _
    // Predicated region
    $region30: #{uhcbert_forward.1} parent=1 // pred_check
      _
    $region31: #{uhcbert_forward.1} parent=1 // pred_check_branch
      %37 = sbr.rel (0) target = $region33
    $region32: #{uhcbert_forward.1} parent=1 // pred_region
      _
    $region33: #{uhcbert_forward.1} parent=1 // pred_fallthru
      _
    // Predicated region
    $region34: #{uhcbert_forward.1} parent=1 // pred_check
      _
    $region35: #{uhcbert_forward.1} parent=1 // pred_check_branch
      %39 = sbr.rel (0) target = $region37
    $region36: #{uhcbert_forward.1} parent=1 // pred_region
      _
    $region37: #{uhcbert_forward.1} parent=1 // pred_fallthru
      _
    // Predicated region
    $region38: #{uhcbert_forward.1} parent=1 // pred_check
      _
    $region39: #{uhcbert_forward.1} parent=1 // pred_check_branch
      %41 = sbr.rel (0) target = $region41
    $region40: #{uhcbert_forward.1} parent=1 // pred_region
      _
    $region41: #{uhcbert_forward.1} parent=1 // pred_fallthru
      _
    // Predicated region
    $region42: #{uhcbert_forward.1} parent=1 // pred_check
      _
    $region43: #{uhcbert_forward.1} parent=1 // pred_check_branch
      %43 = sbr.rel (0) target = $region45
    $region44: #{uhcbert_forward.1} parent=1 // pred_region
      _
    $region45: #{uhcbert_forward.1} parent=1 // pred_fallthru
      _
    %v45 = vld [vmem:[%s10] sm:$0xff]
    %v46 = vld [vmem:[%s0] sm:$0xff]
    %v47 = vld [vmem:[%s0 + $0x8] sm:$0xff]
    %vm48 = vcmask 261120
    %v49 = vsel %vm48, %v46, 0.0
    %50 = vadd.xlane.f32.xlu0 %v49
    %v51 = vpop.xlane.xlu0 %50
    %v52 = vsel %vm48, %v47, 0.0
    %53 = vadd.xlane.f32.xlu0 %v52
    %v54 = vpop.xlane.xlu0 %53
    %v55 = vrcp.pop 32.0
    %v56 = vmul.f32 32.0, %v55
    %v57 = vsub.f32 1.0, %v56
    %v58 = vmul.f32 %v55, %v57
    %v59 = vadd.f32 %v55, %v58
    %vm60 = vweird.f32 %v55
    %v61 = vsel %vm60, %v55, %v59
    %v62 = vmul.f32 %v51, %v61
    %v63 = vmul.f32 %v54, %v61
    %v64 = vsub.f32 %v46, %v62
    %v65 = vsub.f32 %v47, %v63
    %v66 = vmul.f32 %v64, %v64
    %v67 = vmul.f32 %v65, %v65
    %v68 = vsel %vm48, %v66, 0.0
    %69 = vadd.xlane.f32.xlu0 %v68
    %v70 = vpop.xlane.xlu0 %69
    %v71 = vsel %vm48, %v67, 0.0
    %72 = vadd.xlane.f32.xlu0 %v71
    %v73 = vpop.xlane.xlu0 %72
    %v74 = vmul.f32 %v70, %v61
    %v75 = vmul.f32 %v73, %v61
    %v76 = vadd.f32 %v74, 1e-12
    %v77 = vadd.f32 %v75, 1e-12
    %v78 = vrsqrt.pop %v76
    %v79 = vmul.f32 %v78, %v76
    %v80 = vmul.f32 %v79, %v78
    %v81 = vmul.f32 0.5, %v80
    %v82 = vsub.f32 1.5, %v81
    %v83 = vmul.f32 %v78, %v82
    %vm84 = vweird.f32 %v76
    %vm85 = vweird.f32 %v78
    %vm86 = vmor %vm84, %vm85
    %v87 = vsel %vm86, %v78, %v83
    %v88 = vrsqrt.pop %v77
    %v89 = vmul.f32 %v88, %v77
    %v90 = vmul.f32 %v89, %v88
    %v91 = vmul.f32 0.5, %v90
    %v92 = vsub.f32 1.5, %v91
    %v93 = vmul.f32 %v88, %v92
    %vm94 = vweird.f32 %v77
    %vm95 = vweird.f32 %v88
    %vm96 = vmor %vm94, %vm95
    %v97 = vsel %vm96, %v88, %v93
    %v98 = vmul.f32 %v64, %v87
    %v99 = vmul.f32 %v65, %v97
    %v100 = vperm.slane %v45, 0
    %v101 = vmul.f32 %v98, %v100
    %v102 = vmul.f32 %v99, %v100
    %v103 = vperm.slane %v45, 1
    %v104 = vadd.f32 %v101, %v103
    %v105 = vadd.f32 %v102, %v103
    %v106 = vld [vmem:[%s1] sm:$0x3]
    %v107 = vld [vmem:[%s3] sm:$0xf]
    %v108 = vld [vmem:[%s3 + $0x4] sm:$0xf]
    %v109 = vld [vmem:[%s3 + $0x8] sm:$0xf]
    %v110 = vld [vmem:[%s3 + $0xc] sm:$0xf]
    %v111 = vld [vmem:[%s4] sm:$0xf]
    %v112 = vld [vmem:[%s4 + $0x4] sm:$0xf]
    %v113 = vld [vmem:[%s4 + $0x8] sm:$0xf]
    %v114 = vld [vmem:[%s4 + $0xc] sm:$0xf]
    %v115 = vld [vmem:[%s5] sm:$0xf]
    %v116 = vld [vmem:[%s5 + $0x4] sm:$0xf]
    %v117 = vld [vmem:[%s5 + $0x8] sm:$0xf]
    %v118 = vld [vmem:[%s5 + $0xc] sm:$0xf]
    %v119 = vld [vmem:[%s6] sm:$0xf]
    %v120 = vld [vmem:[%s6 + $0x4] sm:$0xf]
    %v121 = vld [vmem:[%s6 + $0x8] sm:$0xf]
    %v122 = vld [vmem:[%s6 + $0xc] sm:$0xf]
    %v123 = vld [vmem:[%s6 + $0x10] sm:$0xf]
    %v124 = vld [vmem:[%s6 + $0x14] sm:$0xf]
    %v125 = vld [vmem:[%s6 + $0x18] sm:$0xf]
    %v126 = vld [vmem:[%s6 + $0x1c] sm:$0xf]
    %v127 = vld [vmem:[%s7] sm:$0xff]
    %v128 = vpack.c.bf16 %v105, %v104
    %v129 = vperm.slane %v127, 0
    %v134 = vunpack.c.l.b16 %v107
    %v135 = vunpack.c.l.b16 %v108
    %v136 = vunpack.c.l.b16 %v109
    %v137 = vunpack.c.l.b16 %v110
    %v138 = vpack.c.b16 %v135, %v134
    %v139 = vpack.c.b16 %v137, %v136
    %v143 = vsel %vm48, %v128, 0
    %145 = vmatpush.bf16.msra.mxu0 0
    %146 = vmatpush.bf16.msra.mxu0 0
    %147 = vmatpush.bf16.msra.mxu0 0
    %148 = vmatpush.bf16.msra.mxu0 0
    %149 = vmatpush.bf16.msra.mxu0 0
    %150 = vmatpush.bf16.msra.mxu0 0
    %151 = vmatpush.bf16.msra.mxu0 %v139
    %152 = vmatpush.bf16.msra.mxu0 %v138
    %153 = vmatmul.bf16.gmra.mxu0 %v143
    %v154 = vpop.f32.mrf.mxu0
    %v155 = vadd.f32 %v129, %v154
    %v156 = vpop.f32.mrf.mxu0
    %v157 = vadd.f32 %v129, %v156
    %158 = vdwg.mxu0
    %v159 = vpack.c.bf16 %v155, %v155
    %161 = vrot.lane.b32.xlu0 %v159, 96
    %v162 = vpop.permute.xlu0 %161
    %vm163 = vcmask 64512
    %v165 = vsel %vm163, %v159, 0
    %v168 = vsel %vm163, %v162, 0
    %170 = vmatpush.bf16.xpose.msra.mxu0 0
    %171 = vmatpush.bf16.xpose.msra.mxu0 0
    %172 = vmatpush.bf16.xpose.msra.mxu0 0
    %173 = vmatpush.bf16.xpose.msra.mxu0 0
    %174 = vmatpush.bf16.xpose.msra.mxu0 0
    %175 = vmatpush.bf16.xpose.msra.mxu0 0
    %176 = vmatpush.bf16.xpose.msra.mxu0 0
    %177 = vmatpush.bf16.xpose.msra.mxu0 %v168
    %178 = vmatmul.bf16.gmra.mxu0 %v165
    %v179 = vpop.f32.mrf.mxu0
    %v180 = vadd.f32 0.0, %v179
    %v181 = vpop.f32.mrf.mxu0
    %182 = vdwg.mxu0
    %v183 = vmul.f32 %v180, 0.35355338
    %v184 = vperm.slane %v106, 0
    %v185 = vadd.f32 %v183, %v184
    %v186 = vsel %vm163, %v185, -inf
    %187 = vmax.xlane.f32.xlu0 %v186
    %v188 = vpop.xlane.xlu0 %187
    %v189 = vsub.f32 %v185, %v188
    %v190 = vmul.f32 %v189, 1.442695
    %v191 = vpow.pop %v190
    %v192 = vsel %vm163, %v191, 0.0
    %193 = vadd.xlane.f32.xlu0 %v192
    %v194 = vpop.xlane.xlu0 %193
    %v195 = vrcp.pop %v194
    %v196 = vmul.f32 %v191, %v195
    %v197 = vpack.c.bf16 %v196, %v196
    %198 = vrot.lane.b32.xlu0 %v159, 64
    %v199 = vpop.permute.xlu0 %198
    %v201 = vsel %vm163, %v197, 0
    %vm203 = vcmask 1043456
    %v205 = vsel %vm203, %v199, 0
    %207 = vmatpush.bf16.msra.mxu0 0
    %208 = vmatpush.bf16.msra.mxu0 0
    %209 = vmatpush.bf16.msra.mxu0 0
    %210 = vmatpush.bf16.msra.mxu0 0
    %211 = vmatpush.bf16.msra.mxu0 0
    %212 = vmatpush.bf16.msra.mxu0 0
    %213 = vmatpush.bf16.msra.mxu0 0
    %214 = vmatpush.bf16.msra.mxu0 %v205
    %215 = vmatmul.bf16.gmra.mxu0 %v201
    %v216 = vpop.f32.mrf.mxu0
    %v217 = vadd.f32 0.0, %v216
    %v218 = vpop.f32.mrf.mxu0
    %219 = vdwg.mxu0
    %220 = vrot.lane.b32.xlu0 %v159, 120
    %v221 = vpop.permute.xlu0 %220
    %222 = vrot.lane.b32.xlu0 %v159, 88
    %v223 = vpop.permute.xlu0 %222
    %v225 = vsel %vm163, %v221, 0
    %v228 = vsel %vm163, %v223, 0
    %230 = vmatpush.bf16.xpose.msra.mxu0 0
    %231 = vmatpush.bf16.xpose.msra.mxu0 0
    %232 = vmatpush.bf16.xpose.msra.mxu0 0
    %233 = vmatpush.bf16.xpose.msra.mxu0 0
    %234 = vmatpush.bf16.xpose.msra.mxu0 0
    %235 = vmatpush.bf16.xpose.msra.mxu0 0
    %236 = vmatpush.bf16.xpose.msra.mxu0 0
    %237 = vmatpush.bf16.xpose.msra.mxu0 %v228
    %238 = vmatmul.bf16.gmra.mxu0 %v225
    %v239 = vpop.f32.mrf.mxu0
    %v240 = vadd.f32 0.0, %v239
    %v241 = vpop.f32.mrf.mxu0
    %242 = vdwg.mxu0
    %v243 = vmul.f32 %v240, 0.35355338
    %v244 = vadd.f32 %v243, %v184
    %v245 = vsel %vm163, %v244, -inf
    %246 = vmax.xlane.f32.xlu0 %v245
    %v247 = vpop.xlane.xlu0 %246
    %v248 = vsub.f32 %v244, %v247
    %v249 = vmul.f32 %v248, 1.442695
    %v250 = vpow.pop %v249
    %v251 = vsel %vm163, %v250, 0.0
    %252 = vadd.xlane.f32.xlu0 %v251
    %v253 = vpop.xlane.xlu0 %252
    %v254 = vrcp.pop %v253
    %v255 = vmul.f32 %v250, %v254
    %v256 = vpack.c.bf16 %v255, %v255
    %257 = vrot.lane.b32.xlu0 %v159, 56
    %v258 = vpop.permute.xlu0 %257
    %v260 = vsel %vm163, %v256, 0
    %v263 = vsel %vm203, %v258, 0
    %265 = vmatpush.bf16.msra.mxu0 0
    %266 = vmatpush.bf16.msra.mxu0 0
    %267 = vmatpush.bf16.msra.mxu0 0
    %268 = vmatpush.bf16.msra.mxu0 0
    %269 = vmatpush.bf16.msra.mxu0 0
    %270 = vmatpush.bf16.msra.mxu0 0
    %271 = vmatpush.bf16.msra.mxu0 0
    %272 = vmatpush.bf16.msra.mxu0 %v263
    %273 = vmatmul.bf16.gmra.mxu0 %v260
    %v274 = vpop.f32.mrf.mxu0
    %v275 = vadd.f32 0.0, %v274
    %v276 = vpop.f32.mrf.mxu0
    %277 = vdwg.mxu0
    %278 = vrot.lane.b32.xlu0 %v159, 112
    %v279 = vpop.permute.xlu0 %278
    %280 = vrot.lane.b32.xlu0 %v159, 80
    %v281 = vpop.permute.xlu0 %280
    %v283 = vsel %vm163, %v279, 0
    %v286 = vsel %vm163, %v281, 0
    %288 = vmatpush.bf16.xpose.msra.mxu0 0
    %289 = vmatpush.bf16.xpose.msra.mxu0 0
    %290 = vmatpush.bf16.xpose.msra.mxu0 0
    %291 = vmatpush.bf16.xpose.msra.mxu0 0
    %292 = vmatpush.bf16.xpose.msra.mxu0 0
    %293 = vmatpush.bf16.xpose.msra.mxu0 0
    %294 = vmatpush.bf16.xpose.msra.mxu0 0
    %295 = vmatpush.bf16.xpose.msra.mxu0 %v286
    %296 = vmatmul.bf16.gmra.mxu0 %v283
    %v297 = vpop.f32.mrf.mxu0
    %v298 = vadd.f32 0.0, %v297
    %v299 = vpop.f32.mrf.mxu0
    %300 = vdwg.mxu0
    %v301 = vmul.f32 %v298, 0.35355338
    %v302 = vadd.f32 %v301, %v184
    %v303 = vsel %vm163, %v302, -inf
    %304 = vmax.xlane.f32.xlu0 %v303
    %v305 = vpop.xlane.xlu0 %304
    %v306 = vsub.f32 %v302, %v305
    %v307 = vmul.f32 %v306, 1.442695
    %v308 = vpow.pop %v307
    %v309 = vsel %vm163, %v308, 0.0
    %310 = vadd.xlane.f32.xlu0 %v309
    %v311 = vpop.xlane.xlu0 %310
    %v312 = vrcp.pop %v311
    %v313 = vmul.f32 %v308, %v312
    %v314 = vpack.c.bf16 %v313, %v313
    %315 = vrot.lane.b32.xlu0 %v159, 48
    %v316 = vpop.permute.xlu0 %315
    %v318 = vsel %vm163, %v314, 0
    %v321 = vsel %vm203, %v316, 0
    %323 = vmatpush.bf16.msra.mxu0 0
    %324 = vmatpush.bf16.msra.mxu0 0
    %325 = vmatpush.bf16.msra.mxu0 0
    %326 = vmatpush.bf16.msra.mxu0 0
    %327 = vmatpush.bf16.msra.mxu0 0
    %328 = vmatpush.bf16.msra.mxu0 0
    %329 = vmatpush.bf16.msra.mxu0 0
    %330 = vmatpush.bf16.msra.mxu0 %v321
    %331 = vmatmul.bf16.gmra.mxu0 %v318
    %v332 = vpop.f32.mrf.mxu0
    %v333 = vadd.f32 0.0, %v332
    %v334 = vpop.f32.mrf.mxu0
    %335 = vdwg.mxu0
    %336 = vrot.lane.b32.xlu0 %v159, 104
    %v337 = vpop.permute.xlu0 %336
    %338 = vrot.lane.b32.xlu0 %v159, 72
    %v339 = vpop.permute.xlu0 %338
    %v341 = vsel %vm163, %v337, 0
    %v344 = vsel %vm163, %v339, 0
    %346 = vmatpush.bf16.xpose.msra.mxu0 0
    %347 = vmatpush.bf16.xpose.msra.mxu0 0
    %348 = vmatpush.bf16.xpose.msra.mxu0 0
    %349 = vmatpush.bf16.xpose.msra.mxu0 0
    %350 = vmatpush.bf16.xpose.msra.mxu0 0
    %351 = vmatpush.bf16.xpose.msra.mxu0 0
    %352 = vmatpush.bf16.xpose.msra.mxu0 0
    %353 = vmatpush.bf16.xpose.msra.mxu0 %v344
    %354 = vmatmul.bf16.gmra.mxu0 %v341
    %v355 = vpop.f32.mrf.mxu0
    %v356 = vadd.f32 0.0, %v355
    %v357 = vpop.f32.mrf.mxu0
    %358 = vdwg.mxu0
    %v359 = vmul.f32 %v356, 0.35355338
    %v360 = vadd.f32 %v359, %v184
    %v361 = vsel %vm163, %v360, -inf
    %362 = vmax.xlane.f32.xlu0 %v361
    %v363 = vpop.xlane.xlu0 %362
    %v364 = vsub.f32 %v360, %v363
    %v365 = vmul.f32 %v364, 1.442695
    %v366 = vpow.pop %v365
    %v367 = vsel %vm163, %v366, 0.0
    %368 = vadd.xlane.f32.xlu0 %v367
    %v369 = vpop.xlane.xlu0 %368
    %v370 = vrcp.pop %v369
    %v371 = vmul.f32 %v366, %v370
    %v372 = vpack.c.bf16 %v371, %v371
    %373 = vrot.lane.b32.xlu0 %v159, 40
    %v374 = vpop.permute.xlu0 %373
    %v376 = vsel %vm163, %v372, 0
    %v379 = vsel %vm203, %v374, 0
    %381 = vmatpush.bf16.msra.mxu0 0
    %382 = vmatpush.bf16.msra.mxu0 0
    %383 = vmatpush.bf16.msra.mxu0 0
    %384 = vmatpush.bf16.msra.mxu0 0
    %385 = vmatpush.bf16.msra.mxu0 0
    %386 = vmatpush.bf16.msra.mxu0 0
    %387 = vmatpush.bf16.msra.mxu0 0
    %388 = vmatpush.bf16.msra.mxu0 %v379
    %389 = vmatmul.bf16.gmra.mxu0 %v376
    %v390 = vpop.f32.mrf.mxu0
    %v391 = vadd.f32 0.0, %v390
    %v392 = vpop.f32.mrf.mxu0
    %393 = vdwg.mxu0
    %395 = vrot.lane.b32.xlu0 %v275, 8
    %v396 = vpop.permute.xlu0 %395
    %399 = vrot.lane.b32.xlu0 %v333, 16
    %v400 = vpop.permute.xlu0 %399
    %403 = vrot.lane.b32.xlu0 %v391, 24
    %v404 = vpop.permute.xlu0 %403
    %v406 = vsel %vm163, %v217, %v396
    %vm407 = vcmask 130048
    %v408 = vsel %vm407, %v406, %v400
    %vm409 = vcmask 195584
    %v410 = vsel %vm409, %v408, %v404
    %v411 = vpack.c.bf16 %v157, %v157
    %413 = vrot.lane.b32.xlu0 %v411, 96
    %v414 = vpop.permute.xlu0 %413
    %v416 = vsel %vm163, %v411, 0
    %v419 = vsel %vm163, %v414, 0
    %421 = vmatpush.bf16.xpose.msra.mxu0 0
    %422 = vmatpush.bf16.xpose.msra.mxu0 0
    %423 = vmatpush.bf16.xpose.msra.mxu0 0
    %424 = vmatpush.bf16.xpose.msra.mxu0 0
    %425 = vmatpush.bf16.xpose.msra.mxu0 0
    %426 = vmatpush.bf16.xpose.msra.mxu0 0
    %427 = vmatpush.bf16.xpose.msra.mxu0 0
    %428 = vmatpush.bf16.xpose.msra.mxu0 %v419
    %429 = vmatmul.bf16.gmra.mxu0 %v416
    %v430 = vpop.f32.mrf.mxu0
    %v431 = vadd.f32 0.0, %v430
    %v432 = vpop.f32.mrf.mxu0
    %433 = vdwg.mxu0
    %v434 = vmul.f32 %v431, 0.35355338
    %v435 = vperm.slane %v106, 1
    %v436 = vadd.f32 %v434, %v435
    %v437 = vsel %vm163, %v436, -inf
    %438 = vmax.xlane.f32.xlu0 %v437
    %v439 = vpop.xlane.xlu0 %438
    %v440 = vsub.f32 %v436, %v439
    %v441 = vmul.f32 %v440, 1.442695
    %v442 = vpow.pop %v441
    %v443 = vsel %vm163, %v442, 0.0
    %444 = vadd.xlane.f32.xlu0 %v443
    %v445 = vpop.xlane.xlu0 %444
    %v446 = vrcp.pop %v445
    %v447 = vmul.f32 %v442, %v446
    %v448 = vpack.c.bf16 %v447, %v447
    %449 = vrot.lane.b32.xlu0 %v411, 64
    %v450 = vpop.permute.xlu0 %449
    %v452 = vsel %vm163, %v448, 0
    %v455 = vsel %vm203, %v450, 0
    %457 = vmatpush.bf16.msra.mxu0 0
    %458 = vmatpush.bf16.msra.mxu0 0
    %459 = vmatpush.bf16.msra.mxu0 0
    %460 = vmatpush.bf16.msra.mxu0 0
    %461 = vmatpush.bf16.msra.mxu0 0
    %462 = vmatpush.bf16.msra.mxu0 0
    %463 = vmatpush.bf16.msra.mxu0 0
    %464 = vmatpush.bf16.msra.mxu0 %v455
    %465 = vmatmul.bf16.gmra.mxu0 %v452
    %v466 = vpop.f32.mrf.mxu0
    %v467 = vadd.f32 0.0, %v466
    %v468 = vpop.f32.mrf.mxu0
    %469 = vdwg.mxu0
    %470 = vrot.lane.b32.xlu0 %v411, 120
    %v471 = vpop.permute.xlu0 %470
    %472 = vrot.lane.b32.xlu0 %v411, 88
    %v473 = vpop.permute.xlu0 %472
    %v475 = vsel %vm163, %v471, 0
    %v478 = vsel %vm163, %v473, 0
    %480 = vmatpush.bf16.xpose.msra.mxu0 0
    %481 = vmatpush.bf16.xpose.msra.mxu0 0
    %482 = vmatpush.bf16.xpose.msra.mxu0 0
    %483 = vmatpush.bf16.xpose.msra.mxu0 0
    %484 = vmatpush.bf16.xpose.msra.mxu0 0
    %485 = vmatpush.bf16.xpose.msra.mxu0 0
    %486 = vmatpush.bf16.xpose.msra.mxu0 0
    %487 = vmatpush.bf16.xpose.msra.mxu0 %v478
    %488 = vmatmul.bf16.gmra.mxu0 %v475
    %v489 = vpop.f32.mrf.mxu0
    %v490 = vadd.f32 0.0, %v489
    %v491 = vpop.f32.mrf.mxu0
    %492 = vdwg.mxu0
    %v493 = vmul.f32 %v490, 0.35355338
    %v494 = vadd.f32 %v493, %v435
    %v495 = vsel %vm163, %v494, -inf
    %496 = vmax.xlane.f32.xlu0 %v495
    %v497 = vpop.xlane.xlu0 %496
    %v498 = vsub.f32 %v494, %v497
    %v499 = vmul.f32 %v498, 1.442695
    %v500 = vpow.pop %v499
    %v501 = vsel %vm163, %v500, 0.0
    %502 = vadd.xlane.f32.xlu0 %v501
    %v503 = vpop.xlane.xlu0 %502
    %v504 = vrcp.pop %v503
    %v505 = vmul.f32 %v500, %v504
    %v506 = vpack.c.bf16 %v505, %v505
    %507 = vrot.lane.b32.xlu0 %v411, 56
    %v508 = vpop.permute.xlu0 %507
    %v510 = vsel %vm163, %v506, 0
    %v513 = vsel %vm203, %v508, 0
    %515 = vmatpush.bf16.msra.mxu0 0
    %516 = vmatpush.bf16.msra.mxu0 0
    %517 = vmatpush.bf16.msra.mxu0 0
    %518 = vmatpush.bf16.msra.mxu0 0
    %519 = vmatpush.bf16.msra.mxu0 0
    %520 = vmatpush.bf16.msra.mxu0 0
    %521 = vmatpush.bf16.msra.mxu0 0
    %522 = vmatpush.bf16.msra.mxu0 %v513
    %523 = vmatmul.bf16.gmra.mxu0 %v510
    %v524 = vpop.f32.mrf.mxu0
    %v525 = vadd.f32 0.0, %v524
    %v526 = vpop.f32.mrf.mxu0
    %527 = vdwg.mxu0
    %528 = vrot.lane.b32.xlu0 %v411, 112
    %v529 = vpop.permute.xlu0 %528
    %530 = vrot.lane.b32.xlu0 %v411, 80
    %v531 = vpop.permute.xlu0 %530
    %v533 = vsel %vm163, %v529, 0
    %v536 = vsel %vm163, %v531, 0
    %538 = vmatpush.bf16.xpose.msra.mxu0 0
    %539 = vmatpush.bf16.xpose.msra.mxu0 0
    %540 = vmatpush.bf16.xpose.msra.mxu0 0
    %541 = vmatpush.bf16.xpose.msra.mxu0 0
    %542 = vmatpush.bf16.xpose.msra.mxu0 0
    %543 = vmatpush.bf16.xpose.msra.mxu0 0
    %544 = vmatpush.bf16.xpose.msra.mxu0 0
    %545 = vmatpush.bf16.xpose.msra.mxu0 %v536
    %546 = vmatmul.bf16.gmra.mxu0 %v533
    %v547 = vpop.f32.mrf.mxu0
    %v548 = vadd.f32 0.0, %v547
    %v549 = vpop.f32.mrf.mxu0
    %550 = vdwg.mxu0
    %v551 = vmul.f32 %v548, 0.35355338
    %v552 = vadd.f32 %v551, %v435
    %v553 = vsel %vm163, %v552, -inf
    %554 = vmax.xlane.f32.xlu0 %v553
    %v555 = vpop.xlane.xlu0 %554
    %v556 = vsub.f32 %v552, %v555
    %v557 = vmul.f32 %v556, 1.442695
    %v558 = vpow.pop %v557
    %v559 = vsel %vm163, %v558, 0.0
    %560 = vadd.xlane.f32.xlu0 %v559
    %v561 = vpop.xlane.xlu0 %560
    %v562 = vrcp.pop %v561
    %v563 = vmul.f32 %v558, %v562
    %v564 = vpack.c.bf16 %v563, %v563
    %565 = vrot.lane.b32.xlu0 %v411, 48
    %v566 = vpop.permute.xlu0 %565
    %v568 = vsel %vm163, %v564, 0
    %v571 = vsel %vm203, %v566, 0
    %573 = vmatpush.bf16.msra.mxu0 0
    %574 = vmatpush.bf16.msra.mxu0 0
    %575 = vmatpush.bf16.msra.mxu0 0
    %576 = vmatpush.bf16.msra.mxu0 0
    %577 = vmatpush.bf16.msra.mxu0 0
    %578 = vmatpush.bf16.msra.mxu0 0
    %579 = vmatpush.bf16.msra.mxu0 0
    %580 = vmatpush.bf16.msra.mxu0 %v571
    %581 = vmatmul.bf16.gmra.mxu0 %v568
    %v582 = vpop.f32.mrf.mxu0
    %v583 = vadd.f32 0.0, %v582
    %v584 = vpop.f32.mrf.mxu0
    %585 = vdwg.mxu0
    %586 = vrot.lane.b32.xlu0 %v411, 104
    %v587 = vpop.permute.xlu0 %586
    %588 = vrot.lane.b32.xlu0 %v411, 72
    %v589 = vpop.permute.xlu0 %588
    %v591 = vsel %vm163, %v587, 0
    %v594 = vsel %vm163, %v589, 0
    %596 = vmatpush.bf16.xpose.msra.mxu0 0
    %597 = vmatpush.bf16.xpose.msra.mxu0 0
    %598 = vmatpush.bf16.xpose.msra.mxu0 0
    %599 = vmatpush.bf16.xpose.msra.mxu0 0
    %600 = vmatpush.bf16.xpose.msra.mxu0 0
    %601 = vmatpush.bf16.xpose.msra.mxu0 0
    %602 = vmatpush.bf16.xpose.msra.mxu0 0
    %603 = vmatpush.bf16.xpose.msra.mxu0 %v594
    %604 = vmatmul.bf16.gmra.mxu0 %v591
    %v605 = vpop.f32.mrf.mxu0
    %v606 = vadd.f32 0.0, %v605
    %v607 = vpop.f32.mrf.mxu0
    %608 = vdwg.mxu0
    %v609 = vmul.f32 %v606, 0.35355338
    %v610 = vadd.f32 %v609, %v435
    %v611 = vsel %vm163, %v610, -inf
    %612 = vmax.xlane.f32.xlu0 %v611
    %v613 = vpop.xlane.xlu0 %612
    %v614 = vsub.f32 %v610, %v613
    %v615 = vmul.f32 %v614, 1.442695
    %v616 = vpow.pop %v615
    %v617 = vsel %vm163, %v616, 0.0
    %618 = vadd.xlane.f32.xlu0 %v617
    %v619 = vpop.xlane.xlu0 %618
    %v620 = vrcp.pop %v619
    %v621 = vmul.f32 %v616, %v620
    %v622 = vpack.c.bf16 %v621, %v621
    %623 = vrot.lane.b32.xlu0 %v411, 40
    %v624 = vpop.permute.xlu0 %623
    %v626 = vsel %vm163, %v622, 0
    %v629 = vsel %vm203, %v624, 0
    %631 = vmatpush.bf16.msra.mxu0 0
    %632 = vmatpush.bf16.msra.mxu0 0
    %633 = vmatpush.bf16.msra.mxu0 0
    %634 = vmatpush.bf16.msra.mxu0 0
    %635 = vmatpush.bf16.msra.mxu0 0
    %636 = vmatpush.bf16.msra.mxu0 0
    %637 = vmatpush.bf16.msra.mxu0 0
    %638 = vmatpush.bf16.msra.mxu0 %v629
    %639 = vmatmul.bf16.gmra.mxu0 %v626
    %v640 = vpop.f32.mrf.mxu0
    %v641 = vadd.f32 0.0, %v640
    %v642 = vpop.f32.mrf.mxu0
    %643 = vdwg.mxu0
    %645 = vrot.lane.b32.xlu0 %v525, 8
    %v646 = vpop.permute.xlu0 %645
    %649 = vrot.lane.b32.xlu0 %v583, 16
    %v650 = vpop.permute.xlu0 %649
    %653 = vrot.lane.b32.xlu0 %v641, 24
    %v654 = vpop.permute.xlu0 %653
    %v656 = vsel %vm163, %v467, %v646
    %v657 = vsel %vm407, %v656, %v650
    %v658 = vsel %vm409, %v657, %v654
    %v659 = vpack.c.bf16 %v658, %v410
    %v660 = vperm.slane %v127, 1
    %v665 = vunpack.c.l.b16 %v111
    %v666 = vunpack.c.l.b16 %v112
    %v667 = vunpack.c.l.b16 %v113
    %v668 = vunpack.c.l.b16 %v114
    %v669 = vpack.c.b16 %v666, %v665
    %v670 = vpack.c.b16 %v668, %v667
    %v674 = vsel %vm48, %v659, 0
    %676 = vmatpush.bf16.msra.mxu0 0
    %677 = vmatpush.bf16.msra.mxu0 0
    %678 = vmatpush.bf16.msra.mxu0 0
    %679 = vmatpush.bf16.msra.mxu0 0
    %680 = vmatpush.bf16.msra.mxu0 0
    %681 = vmatpush.bf16.msra.mxu0 0
    %682 = vmatpush.bf16.msra.mxu0 %v670
    %683 = vmatpush.bf16.msra.mxu0 %v669
    %684 = vmatmul.bf16.gmra.mxu0 %v674
    %v685 = vpop.f32.mrf.mxu0
    %v686 = vadd.f32 %v660, %v685
    %v687 = vpop.f32.mrf.mxu0
    %v688 = vadd.f32 %v660, %v687
    %689 = vdwg.mxu0
    %v690 = vadd.f32 %v104, %v686
    %v691 = vadd.f32 %v105, %v688
    %v692 = vsel %vm48, %v690, 0.0
    %693 = vadd.xlane.f32.xlu0 %v692
    %v694 = vpop.xlane.xlu0 %693
    %v695 = vsel %vm48, %v691, 0.0
    %696 = vadd.xlane.f32.xlu0 %v695
    %v697 = vpop.xlane.xlu0 %696
    %v698 = vmul.f32 %v694, %v61
    %v699 = vmul.f32 %v697, %v61
    %v700 = vsub.f32 %v690, %v698
    %v701 = vsub.f32 %v691, %v699
    %v702 = vmul.f32 %v700, %v700
    %v703 = vmul.f32 %v701, %v701
    %v704 = vsel %vm48, %v702, 0.0
    %705 = vadd.xlane.f32.xlu0 %v704
    %v706 = vpop.xlane.xlu0 %705
    %v707 = vsel %vm48, %v703, 0.0
    %708 = vadd.xlane.f32.xlu0 %v707
    %v709 = vpop.xlane.xlu0 %708
    %v710 = vmul.f32 %v706, %v61
    %v711 = vmul.f32 %v709, %v61
    %v712 = vadd.f32 %v710, 1e-12
    %v713 = vadd.f32 %v711, 1e-12
    %v714 = vrsqrt.pop %v712
    %v715 = vmul.f32 %v714, %v712
    %v716 = vmul.f32 %v715, %v714
    %v717 = vmul.f32 0.5, %v716
    %v718 = vsub.f32 1.5, %v717
    %v719 = vmul.f32 %v714, %v718
    %vm720 = vweird.f32 %v712
    %vm721 = vweird.f32 %v714
    %vm722 = vmor %vm720, %vm721
    %v723 = vsel %vm722, %v714, %v719
    %v724 = vrsqrt.pop %v713
    %v725 = vmul.f32 %v724, %v713
    %v726 = vmul.f32 %v725, %v724
    %v727 = vmul.f32 0.5, %v726
    %v728 = vsub.f32 1.5, %v727
    %v729 = vmul.f32 %v724, %v728
    %vm730 = vweird.f32 %v713
    %vm731 = vweird.f32 %v724
    %vm732 = vmor %vm730, %vm731
    %v733 = vsel %vm732, %v724, %v729
    %v734 = vmul.f32 %v700, %v723
    %v735 = vmul.f32 %v701, %v733
    %v736 = vperm.slane %v127, 2
    %v737 = vmul.f32 %v734, %v736
    %v738 = vmul.f32 %v735, %v736
    %v739 = vperm.slane %v127, 3
    %v740 = vadd.f32 %v737, %v739
    %v741 = vadd.f32 %v738, %v739
    %v742 = vpack.c.bf16 %v741, %v740
    %v743 = vperm.slane %v127, 4
    %v748 = vunpack.c.l.b16 %v115
    %v749 = vunpack.c.l.b16 %v116
    %v750 = vunpack.c.l.b16 %v117
    %v751 = vunpack.c.l.b16 %v118
    %v752 = vpack.c.b16 %v749, %v748
    %v753 = vpack.c.b16 %v751, %v750
    %v757 = vsel %vm48, %v742, 0
    %759 = vmatpush.bf16.msra.mxu0 0
    %760 = vmatpush.bf16.msra.mxu0 0
    %761 = vmatpush.bf16.msra.mxu0 0
    %762 = vmatpush.bf16.msra.mxu0 0
    %763 = vmatpush.bf16.msra.mxu0 0
    %764 = vmatpush.bf16.msra.mxu0 0
    %765 = vmatpush.bf16.msra.mxu0 %v753
    %766 = vmatpush.bf16.msra.mxu0 %v752
    %767 = vmatmul.bf16.gmra.mxu0 %v757
    %v768 = vpop.f32.mrf.mxu0
    %v769 = vadd.f32 %v743, %v768
    %v770 = vpop.f32.mrf.mxu0
    %v771 = vadd.f32 %v743, %v770
    %772 = vdwg.mxu0
    %v773 = vmul.f32 %v769, 0.5
    %v774 = vmul.f32 %v771, 0.5
    %v775 = vmul.f32 %v769, 0.044715
    %v776 = vmul.f32 %v771, 0.044715
    %v777 = vmul.f32 %v775, %v769
    %v778 = vmul.f32 %v776, %v771
    %v779 = vmul.f32 %v777, %v769
    %v780 = vmul.f32 %v778, %v771
    %v781 = vadd.f32 %v769, %v779
    %v782 = vadd.f32 %v771, %v780
    %v783 = vmul.f32 %v781, 0.7978846
    %v784 = vmul.f32 %v782, 0.7978846
    %v785 = vtanh.pop %v783
    %v786 = vtanh.pop %v784
    %v787 = vadd.f32 %v785, 1.0
    %v788 = vadd.f32 %v786, 1.0
    %v789 = vmul.f32 %v773, %v787
    %v790 = vmul.f32 %v774, %v788
    %v791 = vpack.c.bf16 %v790, %v789
    %v792 = vperm.slane %v127, 5
    %v801 = vunpack.c.l.b16 %v119
    %v802 = vunpack.c.l.b16 %v120
    %v803 = vunpack.c.l.b16 %v121
    %v804 = vunpack.c.l.b16 %v122
    %v805 = vunpack.c.l.b16 %v123
    %v806 = vunpack.c.l.b16 %v124
    %v807 = vunpack.c.l.b16 %v125
    %v808 = vunpack.c.l.b16 %v126
    %v809 = vpack.c.b16 %v802, %v801
    %v810 = vpack.c.b16 %v804, %v803
    %v811 = vpack.c.b16 %v806, %v805
    %v812 = vpack.c.b16 %v808, %v807
    %vm817 = vcmask 523264
    %v819 = vsel %vm817, %v791, 0
    %821 = vmatpush.bf16.msra.mxu0 0
    %822 = vmatpush.bf16.msra.mxu0 0
    %823 = vmatpush.bf16.msra.mxu0 0
    %824 = vmatpush.bf16.msra.mxu0 0
    %825 = vmatpush.bf16.msra.mxu0 %v812
    %826 = vmatpush.bf16.msra.mxu0 %v811
    %827 = vmatpush.bf16.msra.mxu0 %v810
    %828 = vmatpush.bf16.msra.mxu0 %v809
    %829 = vmatmul.bf16.gmra.mxu0 %v819
    %v830 = vpop.f32.mrf.mxu0
    %v831 = vadd.f32 %v792, %v830
    %v832 = vpop.f32.mrf.mxu0
    %v833 = vadd.f32 %v792, %v832
    %834 = vdwg.mxu0
    %v835 = vadd.f32 %v740, %v831
    %v836 = vadd.f32 %v741, %v833
    %v837 = vsel %vm48, %v835, 0.0
    %838 = vadd.xlane.f32.xlu0 %v837
    %v839 = vpop.xlane.xlu0 %838
    %v840 = vsel %vm48, %v836, 0.0
    %841 = vadd.xlane.f32.xlu0 %v840
    %v842 = vpop.xlane.xlu0 %841
    %v843 = vmul.f32 %v839, %v61
    %v844 = vmul.f32 %v842, %v61
    %v845 = vsub.f32 %v835, %v843
    %v846 = vsub.f32 %v836, %v844
    %v847 = vmul.f32 %v845, %v845
    %v848 = vmul.f32 %v846, %v846
    %v849 = vsel %vm48, %v847, 0.0
    %850 = vadd.xlane.f32.xlu0 %v849
    %v851 = vpop.xlane.xlu0 %850
    %v852 = vsel %vm48, %v848, 0.0
    %853 = vadd.xlane.f32.xlu0 %v852
    %v854 = vpop.xlane.xlu0 %853
    %v855 = vmul.f32 %v851, %v61
    %v856 = vmul.f32 %v854, %v61
    %v857 = vadd.f32 %v855, 1e-12
    %v858 = vadd.f32 %v856, 1e-12
    %v859 = vrsqrt.pop %v857
    %v860 = vmul.f32 %v859, %v857
    %v861 = vmul.f32 %v860, %v859
    %v862 = vmul.f32 0.5, %v861
    %v863 = vsub.f32 1.5, %v862
    %v864 = vmul.f32 %v859, %v863
    %vm865 = vweird.f32 %v857
    %vm866 = vweird.f32 %v859
    %vm867 = vmor %vm865, %vm866
    %v868 = vsel %vm867, %v859, %v864
    %v869 = vrsqrt.pop %v858
    %v870 = vmul.f32 %v869, %v858
    %v871 = vmul.f32 %v870, %v869
    %v872 = vmul.f32 0.5, %v871
    %v873 = vsub.f32 1.5, %v872
    %v874 = vmul.f32 %v869, %v873
    %vm875 = vweird.f32 %v858
    %vm876 = vweird.f32 %v869
    %vm877 = vmor %vm875, %vm876
    %v878 = vsel %vm877, %v869, %v874
    %v879 = vmul.f32 %v845, %v868
    %v880 = vmul.f32 %v846, %v878
    %v881 = vperm.slane %v127, 6
    %v882 = vmul.f32 %v879, %v881
    %v883 = vmul.f32 %v880, %v881
    %v884 = vperm.slane %v127, 7
    %v885 = vadd.f32 %v882, %v884
    %v886 = vadd.f32 %v883, %v884
    %s887 = scalar_lea.vmem %s3, 16
    %v888 = vld [vmem:[%s887] sm:$0xf]
    %v889 = vld [vmem:[%s887 + $0x4] sm:$0xf]
    %v890 = vld [vmem:[%s887 + $0x8] sm:$0xf]
    %v891 = vld [vmem:[%s887 + $0xc] sm:$0xf]
    %s892 = scalar_lea.vmem %s4, 16
    %v893 = vld [vmem:[%s892] sm:$0xf]
    %v894 = vld [vmem:[%s892 + $0x4] sm:$0xf]
    %v895 = vld [vmem:[%s892 + $0x8] sm:$0xf]
    %v896 = vld [vmem:[%s892 + $0xc] sm:$0xf]
    %s897 = scalar_lea.vmem %s5, 16
    %v898 = vld [vmem:[%s897] sm:$0xf]
    %v899 = vld [vmem:[%s897 + $0x4] sm:$0xf]
    %v900 = vld [vmem:[%s897 + $0x8] sm:$0xf]
    %v901 = vld [vmem:[%s897 + $0xc] sm:$0xf]
    %s902 = scalar_lea.vmem %s6, 32
    %v903 = vld [vmem:[%s902] sm:$0xf]
    %v904 = vld [vmem:[%s902 + $0x4] sm:$0xf]
    %v905 = vld [vmem:[%s902 + $0x8] sm:$0xf]
    %v906 = vld [vmem:[%s902 + $0xc] sm:$0xf]
    %v907 = vld [vmem:[%s902 + $0x10] sm:$0xf]
    %v908 = vld [vmem:[%s902 + $0x14] sm:$0xf]
    %v909 = vld [vmem:[%s902 + $0x18] sm:$0xf]
    %v910 = vld [vmem:[%s902 + $0x1c] sm:$0xf]
    %s911 = scalar_lea.vmem %s7, 8
    %v912 = vld [vmem:[%s911] sm:$0xff]
    %v913 = vpack.c.bf16 %v886, %v885
    %v914 = vperm.slane %v912, 0
    %v919 = vunpack.c.l.b16 %v888
    %v920 = vunpack.c.l.b16 %v889
    %v921 = vunpack.c.l.b16 %v890
    %v922 = vunpack.c.l.b16 %v891
    %v923 = vpack.c.b16 %v920, %v919
    %v924 = vpack.c.b16 %v922, %v921
    %v928 = vsel %vm48, %v913, 0
    %930 = vmatpush.bf16.msra.mxu0 0
    %931 = vmatpush.bf16.msra.mxu0 0
    %932 = vmatpush.bf16.msra.mxu0 0
    %933 = vmatpush.bf16.msra.mxu0 0
    %934 = vmatpush.bf16.msra.mxu0 0
    %935 = vmatpush.bf16.msra.mxu0 0
    %936 = vmatpush.bf16.msra.mxu0 %v924
    %937 = vmatpush.bf16.msra.mxu0 %v923
    %938 = vmatmul.bf16.gmra.mxu0 %v928
    %v939 = vpop.f32.mrf.mxu0
    %v940 = vadd.f32 %v914, %v939
    %v941 = vpop.f32.mrf.mxu0
    %v942 = vadd.f32 %v914, %v941
    %943 = vdwg.mxu0
    %v944 = vpack.c.bf16 %v940, %v940
    %946 = vrot.lane.b32.xlu0 %v944, 96
    %v947 = vpop.permute.xlu0 %946
    %v949 = vsel %vm163, %v944, 0
    %v952 = vsel %vm163, %v947, 0
    %954 = vmatpush.bf16.xpose.msra.mxu0 0
    %955 = vmatpush.bf16.xpose.msra.mxu0 0
    %956 = vmatpush.bf16.xpose.msra.mxu0 0
    %957 = vmatpush.bf16.xpose.msra.mxu0 0
    %958 = vmatpush.bf16.xpose.msra.mxu0 0
    %959 = vmatpush.bf16.xpose.msra.mxu0 0
    %960 = vmatpush.bf16.xpose.msra.mxu0 0
    %961 = vmatpush.bf16.xpose.msra.mxu0 %v952
    %962 = vmatmul.bf16.gmra.mxu0 %v949
    %v963 = vpop.f32.mrf.mxu0
    %v964 = vadd.f32 0.0, %v963
    %v965 = vpop.f32.mrf.mxu0
    %966 = vdwg.mxu0
    %v967 = vmul.f32 %v964, 0.35355338
    %v968 = vadd.f32 %v967, %v184
    %v969 = vsel %vm163, %v968, -inf
    %970 = vmax.xlane.f32.xlu0 %v969
    %v971 = vpop.xlane.xlu0 %970
    %v972 = vsub.f32 %v968, %v971
    %v973 = vmul.f32 %v972, 1.442695
    %v974 = vpow.pop %v973
    %v975 = vsel %vm163, %v974, 0.0
    %976 = vadd.xlane.f32.xlu0 %v975
    %v977 = vpop.xlane.xlu0 %976
    %v978 = vrcp.pop %v977
    %v979 = vmul.f32 %v974, %v978
    %v980 = vpack.c.bf16 %v979, %v979
    %981 = vrot.lane.b32.xlu0 %v944, 64
    %v982 = vpop.permute.xlu0 %981
    %v984 = vsel %vm163, %v980, 0
    %v987 = vsel %vm203, %v982, 0
    %989 = vmatpush.bf16.msra.mxu0 0
    %990 = vmatpush.bf16.msra.mxu0 0
    %991 = vmatpush.bf16.msra.mxu0 0
    %992 = vmatpush.bf16.msra.mxu0 0
    %993 = vmatpush.bf16.msra.mxu0 0
    %994 = vmatpush.bf16.msra.mxu0 0
    %995 = vmatpush.bf16.msra.mxu0 0
    %996 = vmatpush.bf16.msra.mxu0 %v987
    %997 = vmatmul.bf16.gmra.mxu0 %v984
    %v998 = vpop.f32.mrf.mxu0
    %v999 = vadd.f32 0.0, %v998
    %v1000 = vpop.f32.mrf.mxu0
    %1001 = vdwg.mxu0
    %1002 = vrot.lane.b32.xlu0 %v944, 120
    %v1003 = vpop.permute.xlu0 %1002
    %1004 = vrot.lane.b32.xlu0 %v944, 88
    %v1005 = vpop.permute.xlu0 %1004
    %v1007 = vsel %vm163, %v1003, 0
    %v1010 = vsel %vm163, %v1005, 0
    %1012 = vmatpush.bf16.xpose.msra.mxu0 0
    %1013 = vmatpush.bf16.xpose.msra.mxu0 0
    %1014 = vmatpush.bf16.xpose.msra.mxu0 0
    %1015 = vmatpush.bf16.xpose.msra.mxu0 0
    %1016 = vmatpush.bf16.xpose.msra.mxu0 0
    %1017 = vmatpush.bf16.xpose.msra.mxu0 0
    %1018 = vmatpush.bf16.xpose.msra.mxu0 0
    %1019 = vmatpush.bf16.xpose.msra.mxu0 %v1010
    %1020 = vmatmul.bf16.gmra.mxu0 %v1007
    %v1021 = vpop.f32.mrf.mxu0
    %v1022 = vadd.f32 0.0, %v1021
    %v1023 = vpop.f32.mrf.mxu0
    %1024 = vdwg.mxu0
    %v1025 = vmul.f32 %v1022, 0.35355338
    %v1026 = vadd.f32 %v1025, %v184
    %v1027 = vsel %vm163, %v1026, -inf
    %1028 = vmax.xlane.f32.xlu0 %v1027
    %v1029 = vpop.xlane.xlu0 %1028
    %v1030 = vsub.f32 %v1026, %v1029
    %v1031 = vmul.f32 %v1030, 1.442695
    %v1032 = vpow.pop %v1031
    %v1033 = vsel %vm163, %v1032, 0.0
    %1034 = vadd.xlane.f32.xlu0 %v1033
    %v1035 = vpop.xlane.xlu0 %1034
    %v1036 = vrcp.pop %v1035
    %v1037 = vmul.f32 %v1032, %v1036
    %v1038 = vpack.c.bf16 %v1037, %v1037
    %1039 = vrot.lane.b32.xlu0 %v944, 56
    %v1040 = vpop.permute.xlu0 %1039
    %v1042 = vsel %vm163, %v1038, 0
    %v1045 = vsel %vm203, %v1040, 0
    %1047 = vmatpush.bf16.msra.mxu0 0
    %1048 = vmatpush.bf16.msra.mxu0 0
    %1049 = vmatpush.bf16.msra.mxu0 0
    %1050 = vmatpush.bf16.msra.mxu0 0
    %1051 = vmatpush.bf16.msra.mxu0 0
    %1052 = vmatpush.bf16.msra.mxu0 0
    %1053 = vmatpush.bf16.msra.mxu0 0
    %1054 = vmatpush.bf16.msra.mxu0 %v1045
    %1055 = vmatmul.bf16.gmra.mxu0 %v1042
    %v1056 = vpop.f32.mrf.mxu0
    %v1057 = vadd.f32 0.0, %v1056
    %v1058 = vpop.f32.mrf.mxu0
    %1059 = vdwg.mxu0
    %1060 = vrot.lane.b32.xlu0 %v944, 112
    %v1061 = vpop.permute.xlu0 %1060
    %1062 = vrot.lane.b32.xlu0 %v944, 80
    %v1063 = vpop.permute.xlu0 %1062
    %v1065 = vsel %vm163, %v1061, 0
    %v1068 = vsel %vm163, %v1063, 0
    %1070 = vmatpush.bf16.xpose.msra.mxu0 0
    %1071 = vmatpush.bf16.xpose.msra.mxu0 0
    %1072 = vmatpush.bf16.xpose.msra.mxu0 0
    %1073 = vmatpush.bf16.xpose.msra.mxu0 0
    %1074 = vmatpush.bf16.xpose.msra.mxu0 0
    %1075 = vmatpush.bf16.xpose.msra.mxu0 0
    %1076 = vmatpush.bf16.xpose.msra.mxu0 0
    %1077 = vmatpush.bf16.xpose.msra.mxu0 %v1068
    %1078 = vmatmul.bf16.gmra.mxu0 %v1065
    %v1079 = vpop.f32.mrf.mxu0
    %v1080 = vadd.f32 0.0, %v1079
    %v1081 = vpop.f32.mrf.mxu0
    %1082 = vdwg.mxu0
    %v1083 = vmul.f32 %v1080, 0.35355338
    %v1084 = vadd.f32 %v1083, %v184
    %v1085 = vsel %vm163, %v1084, -inf
    %1086 = vmax.xlane.f32.xlu0 %v1085
    %v1087 = vpop.xlane.xlu0 %1086
    %v1088 = vsub.f32 %v1084, %v1087
    %v1089 = vmul.f32 %v1088, 1.442695
    %v1090 = vpow.pop %v1089
    %v1091 = vsel %vm163, %v1090, 0.0
    %1092 = vadd.xlane.f32.xlu0 %v1091
    %v1093 = vpop.xlane.xlu0 %1092
    %v1094 = vrcp.pop %v1093
    %v1095 = vmul.f32 %v1090, %v1094
    %v1096 = vpack.c.bf16 %v1095, %v1095
    %1097 = vrot.lane.b32.xlu0 %v944, 48
    %v1098 = vpop.permute.xlu0 %1097
    %v1100 = vsel %vm163, %v1096, 0
    %v1103 = vsel %vm203, %v1098, 0
    %1105 = vmatpush.bf16.msra.mxu0 0
    %1106 = vmatpush.bf16.msra.mxu0 0
    %1107 = vmatpush.bf16.msra.mxu0 0
    %1108 = vmatpush.bf16.msra.mxu0 0
    %1109 = vmatpush.bf16.msra.mxu0 0
    %1110 = vmatpush.bf16.msra.mxu0 0
    %1111 = vmatpush.bf16.msra.mxu0 0
    %1112 = vmatpush.bf16.msra.mxu0 %v1103
    %1113 = vmatmul.bf16.gmra.mxu0 %v1100
    %v1114 = vpop.f32.mrf.mxu0
    %v1115 = vadd.f32 0.0, %v1114
    %v1116 = vpop.f32.mrf.mxu0
    %1117 = vdwg.mxu0
    %1118 = vrot.lane.b32.xlu0 %v944, 104
    %v1119 = vpop.permute.xlu0 %1118
    %1120 = vrot.lane.b32.xlu0 %v944, 72
    %v1121 = vpop.permute.xlu0 %1120
    %v1123 = vsel %vm163, %v1119, 0
    %v1126 = vsel %vm163, %v1121, 0
    %1128 = vmatpush.bf16.xpose.msra.mxu0 0
    %1129 = vmatpush.bf16.xpose.msra.mxu0 0
    %1130 = vmatpush.bf16.xpose.msra.mxu0 0
    %1131 = vmatpush.bf16.xpose.msra.mxu0 0
    %1132 = vmatpush.bf16.xpose.msra.mxu0 0
    %1133 = vmatpush.bf16.xpose.msra.mxu0 0
    %1134 = vmatpush.bf16.xpose.msra.mxu0 0
    %1135 = vmatpush.bf16.xpose.msra.mxu0 %v1126
    %1136 = vmatmul.bf16.gmra.mxu0 %v1123
    %v1137 = vpop.f32.mrf.mxu0
    %v1138 = vadd.f32 0.0, %v1137
    %v1139 = vpop.f32.mrf.mxu0
    %1140 = vdwg.mxu0
    %v1141 = vmul.f32 %v1138, 0.35355338
    %v1142 = vadd.f32 %v1141, %v184
    %v1143 = vsel %vm163, %v1142, -inf
    %1144 = vmax.xlane.f32.xlu0 %v1143
    %v1145 = vpop.xlane.xlu0 %1144
    %v1146 = vsub.f32 %v1142, %v1145
    %v1147 = vmul.f32 %v1146, 1.442695
    %v1148 = vpow.pop %v1147
    %v1149 = vsel %vm163, %v1148, 0.0
    %1150 = vadd.xlane.f32.xlu0 %v1149
    %v1151 = vpop.xlane.xlu0 %1150
    %v1152 = vrcp.pop %v1151
    %v1153 = vmul.f32 %v1148, %v1152
    %v1154 = vpack.c.bf16 %v1153, %v1153
    %1155 = vrot.lane.b32.xlu0 %v944, 40
    %v1156 = vpop.permute.xlu0 %1155
    %v1158 = vsel %vm163, %v1154, 0
    %v1161 = vsel %vm203, %v1156, 0
    %1163 = vmatpush.bf16.msra.mxu0 0
    %1164 = vmatpush.bf16.msra.mxu0 0
    %1165 = vmatpush.bf16.msra.mxu0 0
    %1166 = vmatpush.bf16.msra.mxu0 0
    %1167 = vmatpush.bf16.msra.mxu0 0
    %1168 = vmatpush.bf16.msra.mxu0 0
    %1169 = vmatpush.bf16.msra.mxu0 0
    %1170 = vmatpush.bf16.msra.mxu0 %v1161
    %1171 = vmatmul.bf16.gmra.mxu0 %v1158
    %v1172 = vpop.f32.mrf.mxu0
    %v1173 = vadd.f32 0.0, %v1172
    %v1174 = vpop.f32.mrf.mxu0
    %1175 = vdwg.mxu0
    %1177 = vrot.lane.b32.xlu0 %v1057, 8
    %v1178 = vpop.permute.xlu0 %1177
    %1181 = vrot.lane.b32.xlu0 %v1115, 16
    %v1182 = vpop.permute.xlu0 %1181
    %1185 = vrot.lane.b32.xlu0 %v1173, 24
    %v1186 = vpop.permute.xlu0 %1185
    %v1188 = vsel %vm163, %v999, %v1178
    %v1189 = vsel %vm407, %v1188, %v1182
    %v1190 = vsel %vm409, %v1189, %v1186
    %v1191 = vpack.c.bf16 %v942, %v942
    %1193 = vrot.lane.b32.xlu0 %v1191, 96
    %v1194 = vpop.permute.xlu0 %1193
    %v1196 = vsel %vm163, %v1191, 0
    %v1199 = vsel %vm163, %v1194, 0
    %1201 = vmatpush.bf16.xpose.msra.mxu0 0
    %1202 = vmatpush.bf16.xpose.msra.mxu0 0
    %1203 = vmatpush.bf16.xpose.msra.mxu0 0
    %1204 = vmatpush.bf16.xpose.msra.mxu0 0
    %1205 = vmatpush.bf16.xpose.msra.mxu0 0
    %1206 = vmatpush.bf16.xpose.msra.mxu0 0
    %1207 = vmatpush.bf16.xpose.msra.mxu0 0
    %1208 = vmatpush.bf16.xpose.msra.mxu0 %v1199
    %1209 = vmatmul.bf16.gmra.mxu0 %v1196
    %v1210 = vpop.f32.mrf.mxu0
    %v1211 = vadd.f32 0.0, %v1210
    %v1212 = vpop.f32.mrf.mxu0
    %1213 = vdwg.mxu0
    %v1214 = vmul.f32 %v1211, 0.35355338
    %v1215 = vadd.f32 %v1214, %v435
    %v1216 = vsel %vm163, %v1215, -inf
    %1217 = vmax.xlane.f32.xlu0 %v1216
    %v1218 = vpop.xlane.xlu0 %1217
    %v1219 = vsub.f32 %v1215, %v1218
    %v1220 = vmul.f32 %v1219, 1.442695
    %v1221 = vpow.pop %v1220
    %v1222 = vsel %vm163, %v1221, 0.0
    %1223 = vadd.xlane.f32.xlu0 %v1222
    %v1224 = vpop.xlane.xlu0 %1223
    %v1225 = vrcp.pop %v1224
    %v1226 = vmul.f32 %v1221, %v1225
    %v1227 = vpack.c.bf16 %v1226, %v1226
    %1228 = vrot.lane.b32.xlu0 %v1191, 64
    %v1229 = vpop.permute.xlu0 %1228
    %v1231 = vsel %vm163, %v1227, 0
    %v1234 = vsel %vm203, %v1229, 0
    %1236 = vmatpush.bf16.msra.mxu0 0
    %1237 = vmatpush.bf16.msra.mxu0 0
    %1238 = vmatpush.bf16.msra.mxu0 0
    %1239 = vmatpush.bf16.msra.mxu0 0
    %1240 = vmatpush.bf16.msra.mxu0 0
    %1241 = vmatpush.bf16.msra.mxu0 0
    %1242 = vmatpush.bf16.msra.mxu0 0
    %1243 = vmatpush.bf16.msra.mxu0 %v1234
    %1244 = vmatmul.bf16.gmra.mxu0 %v1231
    %v1245 = vpop.f32.mrf.mxu0
    %v1246 = vadd.f32 0.0, %v1245
    %v1247 = vpop.f32.mrf.mxu0
    %1248 = vdwg.mxu0
    %1249 = vrot.lane.b32.xlu0 %v1191, 120
    %v1250 = vpop.permute.xlu0 %1249
    %1251 = vrot.lane.b32.xlu0 %v1191, 88
    %v1252 = vpop.permute.xlu0 %1251
    %v1254 = vsel %vm163, %v1250, 0
    %v1257 = vsel %vm163, %v1252, 0
    %1259 = vmatpush.bf16.xpose.msra.mxu0 0
    %1260 = vmatpush.bf16.xpose.msra.mxu0 0
    %1261 = vmatpush.bf16.xpose.msra.mxu0 0
    %1262 = vmatpush.bf16.xpose.msra.mxu0 0
    %1263 = vmatpush.bf16.xpose.msra.mxu0 0
    %1264 = vmatpush.bf16.xpose.msra.mxu0 0
    %1265 = vmatpush.bf16.xpose.msra.mxu0 0
    %1266 = vmatpush.bf16.xpose.msra.mxu0 %v1257
    %1267 = vmatmul.bf16.gmra.mxu0 %v1254
    %v1268 = vpop.f32.mrf.mxu0
    %v1269 = vadd.f32 0.0, %v1268
    %v1270 = vpop.f32.mrf.mxu0
    %1271 = vdwg.mxu0
    %v1272 = vmul.f32 %v1269, 0.35355338
    %v1273 = vadd.f32 %v1272, %v435
    %v1274 = vsel %vm163, %v1273, -inf
    %1275 = vmax.xlane.f32.xlu0 %v1274
    %v1276 = vpop.xlane.xlu0 %1275
    %v1277 = vsub.f32 %v1273, %v1276
    %v1278 = vmul.f32 %v1277, 1.442695
    %v1279 = vpow.pop %v1278
    %v1280 = vsel %vm163, %v1279, 0.0
    %1281 = vadd.xlane.f32.xlu0 %v1280
    %v1282 = vpop.xlane.xlu0 %1281
    %v1283 = vrcp.pop %v1282
    %v1284 = vmul.f32 %v1279, %v1283
    %v1285 = vpack.c.bf16 %v1284, %v1284
    %1286 = vrot.lane.b32.xlu0 %v1191, 56
    %v1287 = vpop.permute.xlu0 %1286
    %v1289 = vsel %vm163, %v1285, 0
    %v1292 = vsel %vm203, %v1287, 0
    %1294 = vmatpush.bf16.msra.mxu0 0
    %1295 = vmatpush.bf16.msra.mxu0 0
    %1296 = vmatpush.bf16.msra.mxu0 0
    %1297 = vmatpush.bf16.msra.mxu0 0
    %1298 = vmatpush.bf16.msra.mxu0 0
    %1299 = vmatpush.bf16.msra.mxu0 0
    %1300 = vmatpush.bf16.msra.mxu0 0
    %1301 = vmatpush.bf16.msra.mxu0 %v1292
    %1302 = vmatmul.bf16.gmra.mxu0 %v1289
    %v1303 = vpop.f32.mrf.mxu0
    %v1304 = vadd.f32 0.0, %v1303
    %v1305 = vpop.f32.mrf.mxu0
    %1306 = vdwg.mxu0
    %1307 = vrot.lane.b32.xlu0 %v1191, 112
    %v1308 = vpop.permute.xlu0 %1307
    %1309 = vrot.lane.b32.xlu0 %v1191, 80
    %v1310 = vpop.permute.xlu0 %1309
    %v1312 = vsel %vm163, %v1308, 0
    %v1315 = vsel %vm163, %v1310, 0
    %1317 = vmatpush.bf16.xpose.msra.mxu0 0
    %1318 = vmatpush.bf16.xpose.msra.mxu0 0
    %1319 = vmatpush.bf16.xpose.msra.mxu0 0
    %1320 = vmatpush.bf16.xpose.msra.mxu0 0
    %1321 = vmatpush.bf16.xpose.msra.mxu0 0
    %1322 = vmatpush.bf16.xpose.msra.mxu0 0
    %1323 = vmatpush.bf16.xpose.msra.mxu0 0
    %1324 = vmatpush.bf16.xpose.msra.mxu0 %v1315
    %1325 = vmatmul.bf16.gmra.mxu0 %v1312
    %v1326 = vpop.f32.mrf.mxu0
    %v1327 = vadd.f32 0.0, %v1326
    %v1328 = vpop.f32.mrf.mxu0
    %1329 = vdwg.mxu0
    %v1330 = vmul.f32 %v1327, 0.35355338
    %v1331 = vadd.f32 %v1330, %v435
    %v1332 = vsel %vm163, %v1331, -inf
    %1333 = vmax.xlane.f32.xlu0 %v1332
    %v1334 = vpop.xlane.xlu0 %1333
    %v1335 = vsub.f32 %v1331, %v1334
    %v1336 = vmul.f32 %v1335, 1.442695
    %v1337 = vpow.pop %v1336
    %v1338 = vsel %vm163, %v1337, 0.0
    %1339 = vadd.xlane.f32.xlu0 %v1338
    %v1340 = vpop.xlane.xlu0 %1339
    %v1341 = vrcp.pop %v1340
    %v1342 = vmul.f32 %v1337, %v1341
    %v1343 = vpack.c.bf16 %v1342, %v1342
    %1344 = vrot.lane.b32.xlu0 %v1191, 48
    %v1345 = vpop.permute.xlu0 %1344
    %v1347 = vsel %vm163, %v1343, 0
    %v1350 = vsel %vm203, %v1345, 0
    %1352 = vmatpush.bf16.msra.mxu0 0
    %1353 = vmatpush.bf16.msra.mxu0 0
    %1354 = vmatpush.bf16.msra.mxu0 0
    %1355 = vmatpush.bf16.msra.mxu0 0
    %1356 = vmatpush.bf16.msra.mxu0 0
    %1357 = vmatpush.bf16.msra.mxu0 0
    %1358 = vmatpush.bf16.msra.mxu0 0
    %1359 = vmatpush.bf16.msra.mxu0 %v1350
    %1360 = vmatmul.bf16.gmra.mxu0 %v1347
    %v1361 = vpop.f32.mrf.mxu0
    %v1362 = vadd.f32 0.0, %v1361
    %v1363 = vpop.f32.mrf.mxu0
    %1364 = vdwg.mxu0
    %1365 = vrot.lane.b32.xlu0 %v1191, 104
    %v1366 = vpop.permute.xlu0 %1365
    %1367 = vrot.lane.b32.xlu0 %v1191, 72
    %v1368 = vpop.permute.xlu0 %1367
    %v1370 = vsel %vm163, %v1366, 0
    %v1373 = vsel %vm163, %v1368, 0
    %1375 = vmatpush.bf16.xpose.msra.mxu0 0
    %1376 = vmatpush.bf16.xpose.msra.mxu0 0
    %1377 = vmatpush.bf16.xpose.msra.mxu0 0
    %1378 = vmatpush.bf16.xpose.msra.mxu0 0
    %1379 = vmatpush.bf16.xpose.msra.mxu0 0
    %1380 = vmatpush.bf16.xpose.msra.mxu0 0
    %1381 = vmatpush.bf16.xpose.msra.mxu0 0
    %1382 = vmatpush.bf16.xpose.msra.mxu0 %v1373
    %1383 = vmatmul.bf16.gmra.mxu0 %v1370
    %v1384 = vpop.f32.mrf.mxu0
    %v1385 = vadd.f32 0.0, %v1384
    %v1386 = vpop.f32.mrf.mxu0
    %1387 = vdwg.mxu0
    %v1388 = vmul.f32 %v1385, 0.35355338
    %v1389 = vadd.f32 %v1388, %v435
    %v1390 = vsel %vm163, %v1389, -inf
    %1391 = vmax.xlane.f32.xlu0 %v1390
    %v1392 = vpop.xlane.xlu0 %1391
    %v1393 = vsub.f32 %v1389, %v1392
    %v1394 = vmul.f32 %v1393, 1.442695
    %v1395 = vpow.pop %v1394
    %v1396 = vsel %vm163, %v1395, 0.0
    %1397 = vadd.xlane.f32.xlu0 %v1396
    %v1398 = vpop.xlane.xlu0 %1397
    %v1399 = vrcp.pop %v1398
    %v1400 = vmul.f32 %v1395, %v1399
    %v1401 = vpack.c.bf16 %v1400, %v1400
    %1402 = vrot.lane.b32.xlu0 %v1191, 40
    %v1403 = vpop.permute.xlu0 %1402
    %v1405 = vsel %vm163, %v1401, 0
    %v1408 = vsel %vm203, %v1403, 0
    %1410 = vmatpush.bf16.msra.mxu0 0
    %1411 = vmatpush.bf16.msra.mxu0 0
    %1412 = vmatpush.bf16.msra.mxu0 0
    %1413 = vmatpush.bf16.msra.mxu0 0
    %1414 = vmatpush.bf16.msra.mxu0 0
    %1415 = vmatpush.bf16.msra.mxu0 0
    %1416 = vmatpush.bf16.msra.mxu0 0
    %1417 = vmatpush.bf16.msra.mxu0 %v1408
    %1418 = vmatmul.bf16.gmra.mxu0 %v1405
    %v1419 = vpop.f32.mrf.mxu0
    %v1420 = vadd.f32 0.0, %v1419
    %v1421 = vpop.f32.mrf.mxu0
    %1422 = vdwg.mxu0
    %1424 = vrot.lane.b32.xlu0 %v1304, 8
    %v1425 = vpop.permute.xlu0 %1424
    %1428 = vrot.lane.b32.xlu0 %v1362, 16
    %v1429 = vpop.permute.xlu0 %1428
    %1432 = vrot.lane.b32.xlu0 %v1420, 24
    %v1433 = vpop.permute.xlu0 %1432
    %v1435 = vsel %vm163, %v1246, %v1425
    %v1436 = vsel %vm407, %v1435, %v1429
    %v1437 = vsel %vm409, %v1436, %v1433
    %v1438 = vpack.c.bf16 %v1437, %v1190
    %v1439 = vperm.slane %v912, 1
    %v1444 = vunpack.c.l.b16 %v893
    %v1445 = vunpack.c.l.b16 %v894
    %v1446 = vunpack.c.l.b16 %v895
    %v1447 = vunpack.c.l.b16 %v896
    %v1448 = vpack.c.b16 %v1445, %v1444
    %v1449 = vpack.c.b16 %v1447, %v1446
    %v1453 = vsel %vm48, %v1438, 0
    %1455 = vmatpush.bf16.msra.mxu0 0
    %1456 = vmatpush.bf16.msra.mxu0 0
    %1457 = vmatpush.bf16.msra.mxu0 0
    %1458 = vmatpush.bf16.msra.mxu0 0
    %1459 = vmatpush.bf16.msra.mxu0 0
    %1460 = vmatpush.bf16.msra.mxu0 0
    %1461 = vmatpush.bf16.msra.mxu0 %v1449
    %1462 = vmatpush.bf16.msra.mxu0 %v1448
    %1463 = vmatmul.bf16.gmra.mxu0 %v1453
    %v1464 = vpop.f32.mrf.mxu0
    %v1465 = vadd.f32 %v1439, %v1464
    %v1466 = vpop.f32.mrf.mxu0
    %v1467 = vadd.f32 %v1439, %v1466
    %1468 = vdwg.mxu0
    %v1469 = vadd.f32 %v885, %v1465
    %v1470 = vadd.f32 %v886, %v1467
    %v1471 = vsel %vm48, %v1469, 0.0
    %1472 = vadd.xlane.f32.xlu0 %v1471
    %v1473 = vpop.xlane.xlu0 %1472
    %v1474 = vsel %vm48, %v1470, 0.0
    %1475 = vadd.xlane.f32.xlu0 %v1474
    %v1476 = vpop.xlane.xlu0 %1475
    %v1477 = vmul.f32 %v1473, %v61
    %v1478 = vmul.f32 %v1476, %v61
    %v1479 = vsub.f32 %v1469, %v1477
    %v1480 = vsub.f32 %v1470, %v1478
    %v1481 = vmul.f32 %v1479, %v1479
    %v1482 = vmul.f32 %v1480, %v1480
    %v1483 = vsel %vm48, %v1481, 0.0
    %1484 = vadd.xlane.f32.xlu0 %v1483
    %v1485 = vpop.xlane.xlu0 %1484
    %v1486 = vsel %vm48, %v1482, 0.0
    %1487 = vadd.xlane.f32.xlu0 %v1486
    %v1488 = vpop.xlane.xlu0 %1487
    %v1489 = vmul.f32 %v1485, %v61
    %v1490 = vmul.f32 %v1488, %v61
    %v1491 = vadd.f32 %v1489, 1e-12
    %v1492 = vadd.f32 %v1490, 1e-12
    %v1493 = vrsqrt.pop %v1491
    %v1494 = vmul.f32 %v1493, %v1491
    %v1495 = vmul.f32 %v1494, %v1493
    %v1496 = vmul.f32 0.5, %v1495
    %v1497 = vsub.f32 1.5, %v1496
    %v1498 = vmul.f32 %v1493, %v1497
    %vm1499 = vweird.f32 %v1491
    %vm1500 = vweird.f32 %v1493
    %vm1501 = vmor %vm1499, %vm1500
    %v1502 = vsel %vm1501, %v1493, %v1498
    %v1503 = vrsqrt.pop %v1492
    %v1504 = vmul.f32 %v1503, %v1492
    %v1505 = vmul.f32 %v1504, %v1503
    %v1506 = vmul.f32 0.5, %v1505
    %v1507 = vsub.f32 1.5, %v1506
    %v1508 = vmul.f32 %v1503, %v1507
    %vm1509 = vweird.f32 %v1492
    %vm1510 = vweird.f32 %v1503
    %vm1511 = vmor %vm1509, %vm1510
    %v1512 = vsel %vm1511, %v1503, %v1508
    %v1513 = vmul.f32 %v1479, %v1502
    %v1514 = vmul.f32 %v1480, %v1512
    %v1515 = vperm.slane %v912, 2
    %v1516 = vmul.f32 %v1513, %v1515
    %v1517 = vmul.f32 %v1514, %v1515
    %v1518 = vperm.slane %v912, 3
    %v1519 = vadd.f32 %v1516, %v1518
    %v1520 = vadd.f32 %v1517, %v1518
    %v1521 = vpack.c.bf16 %v1520, %v1519
    %v1522 = vperm.slane %v912, 4
    %v1527 = vunpack.c.l.b16 %v898
    %v1528 = vunpack.c.l.b16 %v899
    %v1529 = vunpack.c.l.b16 %v900
    %v1530 = vunpack.c.l.b16 %v901
    %v1531 = vpack.c.b16 %v1528, %v1527
    %v1532 = vpack.c.b16 %v1530, %v1529
    %v1536 = vsel %vm48, %v1521, 0
    %1538 = vmatpush.bf16.msra.mxu0 0
    %1539 = vmatpush.bf16.msra.mxu0 0
    %1540 = vmatpush.bf16.msra.mxu0 0
    %1541 = vmatpush.bf16.msra.mxu0 0
    %1542 = vmatpush.bf16.msra.mxu0 0
    %1543 = vmatpush.bf16.msra.mxu0 0
    %1544 = vmatpush.bf16.msra.mxu0 %v1532
    %1545 = vmatpush.bf16.msra.mxu0 %v1531
    %1546 = vmatmul.bf16.gmra.mxu0 %v1536
    %v1547 = vpop.f32.mrf.mxu0
    %v1548 = vadd.f32 %v1522, %v1547
    %v1549 = vpop.f32.mrf.mxu0
    %v1550 = vadd.f32 %v1522, %v1549
    %1551 = vdwg.mxu0
    %v1552 = vmul.f32 %v1548, 0.5
    %v1553 = vmul.f32 %v1550, 0.5
    %v1554 = vmul.f32 %v1548, 0.044715
    %v1555 = vmul.f32 %v1550, 0.044715
    %v1556 = vmul.f32 %v1554, %v1548
    %v1557 = vmul.f32 %v1555, %v1550
    %v1558 = vmul.f32 %v1556, %v1548
    %v1559 = vmul.f32 %v1557, %v1550
    %v1560 = vadd.f32 %v1548, %v1558
    %v1561 = vadd.f32 %v1550, %v1559
    %v1562 = vmul.f32 %v1560, 0.7978846
    %v1563 = vmul.f32 %v1561, 0.7978846
    %v1564 = vtanh.pop %v1562
    %v1565 = vtanh.pop %v1563
    %v1566 = vadd.f32 %v1564, 1.0
    %v1567 = vadd.f32 %v1565, 1.0
    %v1568 = vmul.f32 %v1552, %v1566
    %v1569 = vmul.f32 %v1553, %v1567
    %v1570 = vpack.c.bf16 %v1569, %v1568
    %v1571 = vperm.slane %v912, 5
    %v1580 = vunpack.c.l.b16 %v903
    %v1581 = vunpack.c.l.b16 %v904
    %v1582 = vunpack.c.l.b16 %v905
    %v1583 = vunpack.c.l.b16 %v906
    %v1584 = vunpack.c.l.b16 %v907
    %v1585 = vunpack.c.l.b16 %v908
    %v1586 = vunpack.c.l.b16 %v909
    %v1587 = vunpack.c.l.b16 %v910
    %v1588 = vpack.c.b16 %v1581, %v1580
    %v1589 = vpack.c.b16 %v1583, %v1582
    %v1590 = vpack.c.b16 %v1585, %v1584
    %v1591 = vpack.c.b16 %v1587, %v1586
    %v1597 = vsel %vm817, %v1570, 0
    %1599 = vmatpush.bf16.msra.mxu0 0
    %1600 = vmatpush.bf16.msra.mxu0 0
    %1601 = vmatpush.bf16.msra.mxu0 0
    %1602 = vmatpush.bf16.msra.mxu0 0
    %1603 = vmatpush.bf16.msra.mxu0 %v1591
    %1604 = vmatpush.bf16.msra.mxu0 %v1590
    %1605 = vmatpush.bf16.msra.mxu0 %v1589
    %1606 = vmatpush.bf16.msra.mxu0 %v1588
    %1607 = vmatmul.bf16.gmra.mxu0 %v1597
    %v1608 = vpop.f32.mrf.mxu0
    %v1609 = vadd.f32 %v1571, %v1608
    %v1610 = vpop.f32.mrf.mxu0
    %v1611 = vadd.f32 %v1571, %v1610
    %1612 = vdwg.mxu0
    %v1613 = vadd.f32 %v1519, %v1609
    %v1614 = vadd.f32 %v1520, %v1611
    %v1615 = vsel %vm48, %v1613, 0.0
    %1616 = vadd.xlane.f32.xlu0 %v1615
    %v1617 = vpop.xlane.xlu0 %1616
    %v1618 = vsel %vm48, %v1614, 0.0
    %1619 = vadd.xlane.f32.xlu0 %v1618
    %v1620 = vpop.xlane.xlu0 %1619
    %v1621 = vmul.f32 %v1617, %v61
    %v1622 = vmul.f32 %v1620, %v61
    %v1623 = vsub.f32 %v1613, %v1621
    %v1624 = vsub.f32 %v1614, %v1622
    %v1625 = vmul.f32 %v1623, %v1623
    %v1626 = vmul.f32 %v1624, %v1624
    %v1627 = vsel %vm48, %v1625, 0.0
    %1628 = vadd.xlane.f32.xlu0 %v1627
    %v1629 = vpop.xlane.xlu0 %1628
    %v1630 = vsel %vm48, %v1626, 0.0
    %1631 = vadd.xlane.f32.xlu0 %v1630
    %v1632 = vpop.xlane.xlu0 %1631
    %v1633 = vmul.f32 %v1629, %v61
    %v1634 = vmul.f32 %v1632, %v61
    %v1635 = vadd.f32 %v1633, 1e-12
    %v1636 = vadd.f32 %v1634, 1e-12
    %v1637 = vrsqrt.pop %v1635
    %v1638 = vmul.f32 %v1637, %v1635
    %v1639 = vmul.f32 %v1638, %v1637
    %v1640 = vmul.f32 0.5, %v1639
    %v1641 = vsub.f32 1.5, %v1640
    %v1642 = vmul.f32 %v1637, %v1641
    %vm1643 = vweird.f32 %v1635
    %vm1644 = vweird.f32 %v1637
    %vm1645 = vmor %vm1643, %vm1644
    %v1646 = vsel %vm1645, %v1637, %v1642
    %v1647 = vrsqrt.pop %v1636
    %v1648 = vmul.f32 %v1647, %v1636
    %v1649 = vmul.f32 %v1648, %v1647
    %v1650 = vmul.f32 0.5, %v1649
    %v1651 = vsub.f32 1.5, %v1650
    %v1652 = vmul.f32 %v1647, %v1651
    %vm1653 = vweird.f32 %v1636
    %vm1654 = vweird.f32 %v1647
    %vm1655 = vmor %vm1653, %vm1654
    %v1656 = vsel %vm1655, %v1647, %v1652
    %v1657 = vmul.f32 %v1623, %v1646
    %v1658 = vmul.f32 %v1624, %v1656
    %v1659 = vperm.slane %v912, 6
    %v1660 = vmul.f32 %v1657, %v1659
    %v1661 = vmul.f32 %v1658, %v1659
    %v1662 = vperm.slane %v912, 7
    %v1663 = vadd.f32 %v1660, %v1662
    %v1664 = vadd.f32 %v1661, %v1662
    %v1665 = vpack.c.bf16 %v1664, %v1663
    %v1666 = vld [vmem:[%s8] sm:$0xf]
    %v1667 = vld [vmem:[%s8 + $0x4] sm:$0xf]
    %v1668 = vld [vmem:[%s8 + $0x8] sm:$0xf]
    %v1669 = vld [vmem:[%s8 + $0xc] sm:$0xf]
    %v1670 = vperm.slane %v45, 2
    %v1675 = vunpack.c.l.b16 %v1666
    %v1676 = vunpack.c.l.b16 %v1667
    %v1677 = vunpack.c.l.b16 %v1668
    %v1678 = vunpack.c.l.b16 %v1669
    %v1679 = vpack.c.b16 %v1676, %v1675
    %v1680 = vpack.c.b16 %v1678, %v1677
    %v1684 = vsel %vm48, %v1665, 0
    %1686 = vmatpush.bf16.msra.mxu0 0
    %1687 = vmatpush.bf16.msra.mxu0 0
    %1688 = vmatpush.bf16.msra.mxu0 0
    %1689 = vmatpush.bf16.msra.mxu0 0
    %1690 = vmatpush.bf16.msra.mxu0 0
    %1691 = vmatpush.bf16.msra.mxu0 0
    %1692 = vmatpush.bf16.msra.mxu0 %v1680
    %1693 = vmatpush.bf16.msra.mxu0 %v1679
    %1694 = vmatmul.bf16.gmra.mxu0 %v1684
    %v1695 = vpop.f32.mrf.mxu0
    %v1696 = vadd.f32 %v1670, %v1695
    %v1697 = vpop.f32.mrf.mxu0
    %v1698 = vadd.f32 %v1670, %v1697
    %1699 = vdwg.mxu0
    %v1700 = vmul.f32 %v1696, 0.5
    %v1701 = vmul.f32 %v1698, 0.5
    %v1702 = vmul.f32 %v1696, 0.044715
    %v1703 = vmul.f32 %v1698, 0.044715
    %v1704 = vmul.f32 %v1702, %v1696
    %v1705 = vmul.f32 %v1703, %v1698
    %v1706 = vmul.f32 %v1704, %v1696
    %v1707 = vmul.f32 %v1705, %v1698
    %v1708 = vadd.f32 %v1696, %v1706
    %v1709 = vadd.f32 %v1698, %v1707
    %v1710 = vmul.f32 %v1708, 0.7978846
    %v1711 = vmul.f32 %v1709, 0.7978846
    %v1712 = vtanh.pop %v1710
    %v1713 = vtanh.pop %v1711
    %v1714 = vadd.f32 %v1712, 1.0
    %v1715 = vadd.f32 %v1713, 1.0
    %v1716 = vmul.f32 %v1700, %v1714
    %v1717 = vmul.f32 %v1701, %v1715
    %v1718 = vsel %vm48, %v1716, 0.0
    %1719 = vadd.xlane.f32.xlu0 %v1718
    %v1720 = vpop.xlane.xlu0 %1719
    %v1721 = vsel %vm48, %v1717, 0.0
    %1722 = vadd.xlane.f32.xlu0 %v1721
    %v1723 = vpop.xlane.xlu0 %1722
    %v1724 = vmul.f32 %v1720, %v61
    %v1725 = vmul.f32 %v1723, %v61
    %v1726 = vsub.f32 %v1716, %v1724
    %v1727 = vsub.f32 %v1717, %v1725
    %v1728 = vmul.f32 %v1726, %v1726
    %v1729 = vmul.f32 %v1727, %v1727
    %v1730 = vsel %vm48, %v1728, 0.0
    %1731 = vadd.xlane.f32.xlu0 %v1730
    %v1732 = vpop.xlane.xlu0 %1731
    %v1733 = vsel %vm48, %v1729, 0.0
    %1734 = vadd.xlane.f32.xlu0 %v1733
    %v1735 = vpop.xlane.xlu0 %1734
    %v1736 = vmul.f32 %v1732, %v61
    %v1737 = vmul.f32 %v1735, %v61
    %v1738 = vadd.f32 %v1736, 1e-12
    %v1739 = vadd.f32 %v1737, 1e-12
    %v1740 = vrsqrt.pop %v1738
    %v1741 = vmul.f32 %v1740, %v1738
    %v1742 = vmul.f32 %v1741, %v1740
    %v1743 = vmul.f32 0.5, %v1742
    %v1744 = vsub.f32 1.5, %v1743
    %v1745 = vmul.f32 %v1740, %v1744
    %vm1746 = vweird.f32 %v1738
    %vm1747 = vweird.f32 %v1740
    %vm1748 = vmor %vm1746, %vm1747
    %v1749 = vsel %vm1748, %v1740, %v1745
    %v1750 = vrsqrt.pop %v1739
    %v1751 = vmul.f32 %v1750, %v1739
    %v1752 = vmul.f32 %v1751, %v1750
    %v1753 = vmul.f32 0.5, %v1752
    %v1754 = vsub.f32 1.5, %v1753
    %v1755 = vmul.f32 %v1750, %v1754
    %vm1756 = vweird.f32 %v1739
    %vm1757 = vweird.f32 %v1750
    %vm1758 = vmor %vm1756, %vm1757
    %v1759 = vsel %vm1758, %v1750, %v1755
    %v1760 = vmul.f32 %v1726, %v1749
    %v1761 = vmul.f32 %v1727, %v1759
    %v1762 = vperm.slane %v45, 3
    %v1763 = vmul.f32 %v1760, %v1762
    %v1764 = vmul.f32 %v1761, %v1762
    %v1765 = vperm.slane %v45, 4
    %v1766 = vadd.f32 %v1763, %v1765
    %v1767 = vadd.f32 %v1764, %v1765
    %v1768 = vpack.c.bf16 %v1767, %v1766
    %v1769 = vld [vmem:[%s9] sm:$0xf]
    %v1770 = vld [vmem:[%s9 + $0x4] sm:$0xf]
    %v1771 = vld [vmem:[%s9 + $0x8] sm:$0xf]
    %v1772 = vld [vmem:[%s9 + $0xc] sm:$0xf]
    %v1773 = vperm.slane %v45, 5
    %v1778 = vunpack.c.l.b16 %v1769
    %v1779 = vunpack.c.l.b16 %v1770
    %v1780 = vunpack.c.l.b16 %v1771
    %v1781 = vunpack.c.l.b16 %v1772
    %v1782 = vpack.c.b16 %v1779, %v1778
    %v1783 = vpack.c.b16 %v1781, %v1780
    %v1787 = vsel %vm48, %v1768, 0
    %1789 = vmatpush.bf16.msra.mxu0 0
    %1790 = vmatpush.bf16.msra.mxu0 0
    %1791 = vmatpush.bf16.msra.mxu0 0
    %1792 = vmatpush.bf16.msra.mxu0 0
    %1793 = vmatpush.bf16.msra.mxu0 0
    %1794 = vmatpush.bf16.msra.mxu0 0
    %1795 = vmatpush.bf16.msra.mxu0 %v1783
    %1796 = vmatpush.bf16.msra.mxu0 %v1782
    %1797 = vmatmul.bf16.gmra.mxu0 %v1787
    %v1798 = vpop.f32.mrf.mxu0
    %v1799 = vadd.f32 %v1773, %v1798
    %v1800 = vpop.f32.mrf.mxu0
    %v1801 = vadd.f32 %v1773, %v1800
    %1802 = vdwg.mxu0
    %1803 = vst [vmem:[%s11] sm:$0xff] %v1799
    %1804 = vst [vmem:[%s11 + $0x8] sm:$0xff] %v1801
    %v1806 = vrot.slane %v1664, 7
    %vm1808 = vcmask 1040384
    %v1809 = vsel %vm1808, %v1663, %v1806
    %v1810 = vpack.c.bf16 %v1809, %v1809
    %s1811 = scalar_lea.vmem %s9, 16
    %v1812 = vld [vmem:[%s1811] sm:$0xf]
    %v1813 = vld [vmem:[%s1811 + $0x4] sm:$0xf]
    %v1814 = vld [vmem:[%s1811 + $0x8] sm:$0xf]
    %v1815 = vld [vmem:[%s1811 + $0xc] sm:$0xf]
    %v1816 = vperm.slane %v45, 6
    %v1821 = vunpack.c.l.b16 %v1812
    %v1822 = vunpack.c.l.b16 %v1813
    %v1823 = vunpack.c.l.b16 %v1814
    %v1824 = vunpack.c.l.b16 %v1815
    %v1825 = vpack.c.b16 %v1822, %v1821
    %v1826 = vpack.c.b16 %v1824, %v1823
    %v1830 = vsel %vm48, %v1810, 0
    %1832 = vmatpush.bf16.msra.mxu0 0
    %1833 = vmatpush.bf16.msra.mxu0 0
    %1834 = vmatpush.bf16.msra.mxu0 0
    %1835 = vmatpush.bf16.msra.mxu0 0
    %1836 = vmatpush.bf16.msra.mxu0 0
    %1837 = vmatpush.bf16.msra.mxu0 0
    %1838 = vmatpush.bf16.msra.mxu0 %v1826
    %1839 = vmatpush.bf16.msra.mxu0 %v1825
    %1840 = vmatmul.bf16.gmra.mxu0 %v1830
    %v1841 = vpop.f32.mrf.mxu0
    %v1842 = vadd.f32 %v1816, %v1841
    %v1843 = vpop.f32.mrf.mxu0
    %1844 = vdwg.mxu0
    %1845 = vst [vmem:[%s12] sm:$0x3] %v1842
    %v1846 = vld [vmem:[%s2] sm:$0xff]
    %v1847 = vld [vmem:[%s2 + $0x8] sm:$0xff]
    %v1848 = vlaneseq
    %v1849 = vand.u32 %v1848, 127
    %vm1850 = vcmp.lt.s32.totalorder %v1849, 64
    %v1851 = vsel %vm1850, %v1799, -1e+30
    %v1852 = vsel %vm1850, %v1801, -1e+30
    %1853 = vmax.xlane.f32.xlu0 %v1851
    %v1854 = vpop.xlane.xlu0 %1853
    %1855 = vmax.xlane.f32.xlu0 %v1852
    %v1856 = vpop.xlane.xlu0 %1855
    %v1857 = vsub.f32 %v1851, %v1854
    %v1858 = vsub.f32 %v1852, %v1856
    %v1859 = vmul.f32 %v1857, 1.442695
    %v1860 = vpow.pop %v1859
    %v1861 = vmul.f32 %v1858, 1.442695
    %v1862 = vpow.pop %v1861
    %1863 = vadd.xlane.f32.xlu0 %v1860
    %v1864 = vpop.xlane.xlu0 %1863
    %1865 = vadd.xlane.f32.xlu0 %v1862
    %v1866 = vpop.xlane.xlu0 %1865
    %v1867 = vlog2.pop %v1864
    %v1868 = vmul.f32 %v1867, 0.6931472
    %v1869 = vlog2.pop %v1866
    %v1870 = vmul.f32 %v1869, 0.6931472
    %v1871 = vadd.f32 %v1868, %v1854
    %v1872 = vadd.f32 %v1870, %v1856
    %1873 = vset.pattern.permute.xlu0 0
    %1874 = vperm.xlu0 %1873, %v1846
    %v1875 = vpop.permute.xlu0 %1874
    %1876 = vset.pattern.permute.xlu0 0
    %1877 = vperm.xlu0 %1876, %v1847
    %v1878 = vpop.permute.xlu0 %1877
    %vm1879 = vcmp.eq.s32.totalorder %v1849, %v1875
    %vm1880 = vcmp.eq.s32.totalorder %v1849, %v1878
    %v1881 = vsel %vm1879, %v1799, 0.0
    %v1882 = vsel %vm1880, %v1801, 0.0
    %1883 = vadd.xlane.f32.xlu0 %v1881
    %v1884 = vpop.xlane.xlu0 %1883
    %1885 = vadd.xlane.f32.xlu0 %v1882
    %v1886 = vpop.xlane.xlu0 %1885
    %vm1887 = vcmp.ne.s32.totalorder %v1846, 4294967196
    %vm1888 = vcmp.ne.s32.totalorder %v1847, 4294967196
    %v1889 = vsel %vm1887, 1, 0
    %v1890 = vsel %vm1888, 1, 0
    %v1891 = vcvt.s32.f32 %v1889
    %v1892 = vcvt.s32.f32 %v1890
    %v1893 = vsub.f32 %v1871, %v1884
    %v1894 = vsub.f32 %v1872, %v1886
    %v1895 = vmul.f32 %v1893, %v1891
    %v1896 = vmul.f32 %v1894, %v1892
    %vm1897 = vcmask 7168
    %v1898 = vsel %vm1897, %v1895, 0.0
    %v1899 = vsel %vm1897, %v1896, 0.0
    %v1900 = vadd.f32 %v1898, %v1899
    %v1901 = vrot.slane %v1900, 4
    %v1902 = vadd.f32 %v1900, %v1901
    %v1903 = vrot.slane %v1902, 2
    %v1904 = vadd.f32 %v1902, %v1903
    %v1905 = vrot.slane %v1904, 1
    %v1906 = vadd.f32 %v1904, %v1905
    %vm1907 = vcmask 0
    %1908 = vst.msk [vmem:[#allocation2] sm:$0x1] %vm1907, %v1906
    %v1909 = vsel %vm1897, %v1891, 0.0
    %v1910 = vsel %vm1897, %v1892, 0.0
    %v1911 = vadd.f32 %v1909, %v1910
    %v1912 = vrot.slane %v1911, 4
    %v1913 = vadd.f32 %v1911, %v1912
    %v1914 = vrot.slane %v1913, 2
    %v1915 = vadd.f32 %v1913, %v1914
    %v1916 = vrot.slane %v1915, 1
    %v1917 = vadd.f32 %v1915, %v1916
    %1918 = vst.msk [vmem:[#allocation4] sm:$0x1] %vm1907, %v1917
    // Predicated region
    $region46: #{uhcbert_forward.1} parent=1 // pred_check
      _
    $region47: #{uhcbert_forward.1} parent=1 // pred_check_branch
      %1920 = sbr.rel (0) target = $region49
    $region48: #{uhcbert_forward.1} parent=1 // pred_region
      _
    $region49: #{uhcbert_forward.1} parent=1 // pred_fallthru
      _
    // Predicated region
    $region50: #{uhcbert_forward.1} parent=1 // pred_check
      _
    $region51: #{uhcbert_forward.1} parent=1 // pred_check_branch
      %1922 = sbr.rel (0) target = $region53
    $region52: #{uhcbert_forward.1} parent=1 // pred_region
      _
    $region53: #{uhcbert_forward.1} parent=1 // pred_fallthru
      _
    // Predicated region
    $region54: #{uhcbert_forward.1} parent=1 // pred_check
      _
    $region55: #{uhcbert_forward.1} parent=1 // pred_check_branch
      %1924 = sbr.rel (0) target = $region57
    $region56: #{uhcbert_forward.1} parent=1 // pred_region
      %1926 = vsyncadd [#allocation3], 0
      %s1928 = sshll.u32 [#allocation2], 4
      %s1929 = int_to_ptr.vmem [resolvable:$true] %s1928
      %s1930 = sshll.u32 %s13, 4
      %s1931 = int_to_ptr.hbm [resolvable:$true] %s1930
      %1933 = dma.vmem_to_hbm [thread:$0]  %s1929, 16, %s1931, [#allocation3]
    $region57: #{uhcbert_forward.1} parent=1 // pred_fallthru
      _
    // Predicated region
    $region58: #{uhcbert_forward.1} parent=1 // pred_check
      _
    $region59: #{uhcbert_forward.1} parent=1 // pred_check_branch
      %1935 = sbr.rel (0) target = $region61
    $region60: #{uhcbert_forward.1} parent=1 // pred_region
      %1937 = vsyncadd [#allocation5], 0
      %s1939 = sshll.u32 [#allocation4], 4
      %s1940 = int_to_ptr.vmem [resolvable:$true] %s1939
      %s1941 = sshll.u32 %s14, 4
      %s1942 = int_to_ptr.hbm [resolvable:$true] %s1941
      %1944 = dma.vmem_to_hbm [thread:$0]  %s1940, 16, %s1942, [#allocation5]
    $region61: #{uhcbert_forward.1} parent=1 // pred_fallthru
      _
    // Predicated region
    $region62: #{uhcbert_forward.1} parent=1 // pred_check
      _
    $region63: #{uhcbert_forward.1} parent=1 // pred_check_branch
      %1946 = sbr.rel (0) target = $region65
    $region64: #{uhcbert_forward.1} parent=1 // pred_region
      _
    $region65: #{uhcbert_forward.1} parent=1 // pred_fallthru
      _
    // Predicated region
    $region66: #{uhcbert_forward.1} parent=1 // pred_check
      _
    $region67: #{uhcbert_forward.1} parent=1 // pred_check_branch
      %1948 = sbr.rel (0) target = $region69
    $region68: #{uhcbert_forward.1} parent=1 // pred_region
      _
    $region69: #{uhcbert_forward.1} parent=1 // pred_fallthru
      _
    // Predicated region
    $region70: #{uhcbert_forward.1} parent=1 // pred_check
      _
    $region71: #{uhcbert_forward.1} parent=1 // pred_check_branch
      %1950 = sbr.rel (0) target = $region73
    $region72: #{uhcbert_forward.1} parent=1 // pred_region
      %1952 = dma.done [#allocation3], 16
    $region73: #{uhcbert_forward.1} parent=1 // pred_fallthru
      _
    // Predicated region
    $region74: #{uhcbert_forward.1} parent=1 // pred_check
      _
    $region75: #{uhcbert_forward.1} parent=1 // pred_check_branch
      %1954 = sbr.rel (0) target = $region77
    $region76: #{uhcbert_forward.1} parent=1 // pred_region
      %1956 = dma.done [#allocation5], 16
    $region77: #{uhcbert_forward.1} parent=1 // pred_fallthru
      _
    %1957 = vsyncpa [#allocation3], 1
    %1958 = vsyncpa [#allocation5], 1

</llo_original>
